<compile_context>
chip_gen: v7x
topology: tpu7x:2x2x1
jax: 0.10.0
libtpu: 0.0.40
codegen_flags: <defaults>
</compile_context>

<pallas_src>
import math
import functools

import jax
import jax.numpy as jnp
from jax.experimental import pallas as pl
from jax.experimental.pallas import tpu as pltpu


# ------------------------------ tiling helper -------------------------------

def _pick_tile(dim, target, align):
    """Largest tile <= target that divides dim and is a multiple of align.
    Falls back to the full dim (block == full array dim is always legal)."""
    if dim <= target or dim % align != 0:
        return dim
    t = (target // align) * align
    while t >= align:
        if dim % t == 0:
            return t
        t -= align
    return dim


# --------------------------- in-kernel building blocks ------------------------

def _ln(x, g, b):
    """LayerNorm over the last axis (biased variance, eps=1e-5, like torch)."""
    mu = jnp.mean(x, axis=-1, keepdims=True)
    var = jnp.mean((x - mu) ** 2, axis=-1, keepdims=True)
    return (x - mu) * jax.lax.rsqrt(var + 1e-5) * g + b


def _ffn(x, w1, b1, w2, b2):
    h = jnp.maximum(
        jnp.dot(x.astype(jnp.bfloat16), w1, preferred_element_type=jnp.float32) + b1,
        0.0)
    return jnp.dot(h.astype(jnp.bfloat16), w2,
                   preferred_element_type=jnp.float32) + b2


def _mha(x_q, x_kv, w_qkv, fc_w, fc_b, mask, num_heads, is_self):
    """Multi-head attention on VMEM values.

    x_q: (Lq, E) f32, x_kv: (Lk, E) f32, w_qkv: (E, 3E) bf16, mask: (Lq, Lk) {0,1} f32.
    Returns the projected output (Lq, E) f32 (lane-dense, heads folded into lanes).
    """
    Lq, E = x_q.shape
    D = E // num_heads
    scale = 1.0 / math.sqrt(D)

    if is_self:
        qkv = jnp.dot(x_q.astype(jnp.bfloat16), w_qkv,
                      preferred_element_type=jnp.float32)            # (Lq, 3E)
        q, k, v = qkv[:, :E], qkv[:, E:2 * E], qkv[:, 2 * E:]
    else:
        q = jnp.dot(x_q.astype(jnp.bfloat16), w_qkv[:, :E],
                    preferred_element_type=jnp.float32)              # (Lq, E)
        kv = jnp.dot(x_kv.astype(jnp.bfloat16), w_qkv[:, E:],
                     preferred_element_type=jnp.float32)             # (Lk, 2E) fused K|V
        k, v = kv[:, :E], kv[:, E:]

    q = q * scale                     # fold 1/sqrt(d) into q (cheaper than scaling energy)

    ctx = []
    for h in range(num_heads):        # unrolled; heads stay as lane slices (no reshapes)
        sl = slice(h * D, (h + 1) * D)
        qh = q[:, sl].astype(jnp.bfloat16)                           # (Lq, D)
        kh = k[:, sl].astype(jnp.bfloat16)                           # (Lk, D)
        vh = v[:, sl].astype(jnp.bfloat16)                           # (Lk, D)
        # energy = Q K^T  (B transposed via dot_general contracting dims)
        e = jax.lax.dot_general(qh, kh, (((1,), (1,)), ((), ())),
                                preferred_element_type=jnp.float32)  # (Lq, Lk)
        e = jnp.where(mask == 0.0, jnp.float32(-1e20), e)
        e = e - jnp.max(e, axis=-1, keepdims=True)
        p = jnp.exp(e)
        p = p * pl.reciprocal(jnp.sum(p, axis=-1, keepdims=True), approx=True)
        ctx.append(jnp.dot(p.astype(jnp.bfloat16), vh,
                           preferred_element_type=jnp.float32))      # (Lq, D)
    ctx = jnp.concatenate(ctx, axis=-1)                              # (Lq, E) lane-dense

    return jnp.dot(ctx.astype(jnp.bfloat16), fc_w,
                   preferred_element_type=jnp.float32) + fc_b


# ------------------------------ fused layer kernels ---------------------------

def _encoder_block_kernel(x_ref, mask_ref,
                          w_qkv_ref, fc_w_ref, fc_b_ref,
                          ln1_g_ref, ln1_b_ref,
                          ff1_w_ref, ff1_b_ref, ff2_w_ref, ff2_b_ref,
                          ln2_g_ref, ln2_b_ref,
                          o_ref, *, num_heads):
    # One grid step = one batch element; everything stays in VMEM/vregs.
    x = x_ref[0]                                        # (L, E)
    attn = _mha(x, x, w_qkv_ref[...], fc_w_ref[...], fc_b_ref[...],
                mask_ref[0], num_heads, is_self=True)
    x1 = _ln(attn + x, ln1_g_ref[...], ln1_b_ref[...])
    ff = _ffn(x1, ff1_w_ref[...], ff1_b_ref[...], ff2_w_ref[...], ff2_b_ref[...])
    o_ref[0] = _ln(ff + x1, ln2_g_ref[...], ln2_b_ref[...])


def _decoder_block_kernel(x_ref, enc_ref, trg_mask_ref, src_mask_ref,
                          sa_w_qkv_ref, sa_fc_w_ref, sa_fc_b_ref,
                          ln_g_ref, ln_b_ref,
                          ca_w_qkv_ref, ca_fc_w_ref, ca_fc_b_ref,
                          ln1_g_ref, ln1_b_ref,
                          ff1_w_ref, ff1_b_ref, ff2_w_ref, ff2_b_ref,
                          ln2_g_ref, ln2_b_ref,
                          o_ref, *, num_heads):
    x = x_ref[0]                                        # (Lt, E)
    enc = enc_ref[0]                                    # (Ls, E)
    # masked self-attention + add&norm -> query
    sa = _mha(x, x, sa_w_qkv_ref[...], sa_fc_w_ref[...], sa_fc_b_ref[...],
              trg_mask_ref[0], num_heads, is_self=True)
    query = _ln(sa + x, ln_g_ref[...], ln_b_ref[...])
    # cross-attention transformer block
    ca = _mha(query, enc, ca_w_qkv_ref[...], ca_fc_w_ref[...], ca_fc_b_ref[...],
              src_mask_ref[0], num_heads, is_self=False)
    x1 = _ln(ca + query, ln1_g_ref[...], ln1_b_ref[...])
    ff = _ffn(x1, ff1_w_ref[...], ff1_b_ref[...], ff2_w_ref[...], ff2_b_ref[...])
    o_ref[0] = _ln(ff + x1, ln2_g_ref[...], ln2_b_ref[...])


def _linear_kernel(x_ref, w_ref, b_ref, o_ref):
    o_ref[...] = jnp.dot(x_ref[...].astype(jnp.bfloat16), w_ref[...],
                         preferred_element_type=jnp.float32) + b_ref[...]


# ------------------------------ kernel wrappers -------------------------------

def encoder_block(p, x, mask, num_heads):
    N, L, E = x.shape
    FH = p['ff1_w'].shape[1]

    def wspec(shape):  # whole weight as one block, identical for every grid step
        return pl.BlockSpec(shape, lambda b: (0,) * len(shape))

    return pl.pallas_call(
        functools.partial(_encoder_block_kernel, num_heads=num_heads),
        out_shape=jax.ShapeDtypeStruct((N, L, E), jnp.float32),
        grid=(N,),
        in_specs=[pl.BlockSpec((1, L, E), lambda b: (b, 0, 0)),
                  pl.BlockSpec((1, L, L), lambda b: (b, 0, 0)),
                  wspec((E, 3 * E)), wspec((E, E)), wspec((1, E)),
                  wspec((1, E)), wspec((1, E)),
                  wspec((E, FH)), wspec((1, FH)), wspec((FH, E)), wspec((1, E)),
                  wspec((1, E)), wspec((1, E))],
        out_specs=pl.BlockSpec((1, L, E), lambda b: (b, 0, 0)),
        compiler_params=pltpu.CompilerParams(dimension_semantics=("parallel",)),
    )(x, mask,
      p['attn']['w_qkv'], p['attn']['fc_w'], p['attn']['fc_b'],
      p['ln1_g'], p['ln1_b'],
      p['ff1_w'], p['ff1_b'], p['ff2_w'], p['ff2_b'],
      p['ln2_g'], p['ln2_b'])


def decoder_block(p, x, enc_out, trg_mask, src_mask, num_heads):
    N, Lt, E = x.shape
    Ls = enc_out.shape[1]
    tb = p['tblock']
    FH = tb['ff1_w'].shape[1]

    def wspec(shape):
        return pl.BlockSpec(shape, lambda b: (0,) * len(shape))

    return pl.pallas_call(
        functools.partial(_decoder_block_kernel, num_heads=num_heads),
        out_shape=jax.ShapeDtypeStruct((N, Lt, E), jnp.float32),
        grid=(N,),
        in_specs=[pl.BlockSpec((1, Lt, E), lambda b: (b, 0, 0)),
                  pl.BlockSpec((1, Ls, E), lambda b: (b, 0, 0)),
                  pl.BlockSpec((1, Lt, Lt), lambda b: (b, 0, 0)),
                  pl.BlockSpec((1, Lt, Ls), lambda b: (b, 0, 0)),
                  wspec((E, 3 * E)), wspec((E, E)), wspec((1, E)),
                  wspec((1, E)), wspec((1, E)),
                  wspec((E, 3 * E)), wspec((E, E)), wspec((1, E)),
                  wspec((1, E)), wspec((1, E)),
                  wspec((E, FH)), wspec((1, FH)), wspec((FH, E)), wspec((1, E)),
                  wspec((1, E)), wspec((1, E))],
        out_specs=pl.BlockSpec((1, Lt, E), lambda b: (b, 0, 0)),
        compiler_params=pltpu.CompilerParams(dimension_semantics=("parallel",)),
    )(x, enc_out, trg_mask, src_mask,
      p['attn']['w_qkv'], p['attn']['fc_w'], p['attn']['fc_b'],
      p['ln_g'], p['ln_b'],
      tb['attn']['w_qkv'], tb['attn']['fc_w'], tb['attn']['fc_b'],
      tb['ln1_g'], tb['ln1_b'],
      tb['ff1_w'], tb['ff1_b'], tb['ff2_w'], tb['ff2_b'],
      tb['ln2_g'], tb['ln2_b'])


def linear(x, w, b):
    # Final vocab projection. TODO(synk): add a K-reduction grid axis for real sizes.
    M, K = x.shape
    N = w.shape[1]
    tm = _pick_tile(M, 512, 8)
    tn = _pick_tile(N, 256, 128)
    return pl.pallas_call(
        _linear_kernel,
        out_shape=jax.ShapeDtypeStruct((M, N), jnp.float32),
        grid=(M // tm, N // tn),
        in_specs=[pl.BlockSpec((tm, K), lambda i, j: (i, 0)),
                  pl.BlockSpec((K, tn), lambda i, j: (0, j)),
                  pl.BlockSpec((1, tn), lambda i, j: (0, j))],
        out_specs=pl.BlockSpec((tm, tn), lambda i, j: (i, j)),
        compiler_params=pltpu.CompilerParams(
            dimension_semantics=("parallel", "parallel")),
    )(x, w, b)


# ------------------------------ model forward --------------------------------

def encoder_fwd(p, src, src_keep, num_heads):
    N, Ls = src.shape
    positions = jnp.arange(Ls, dtype=jnp.int32)
    # TODO(synk): embedding gather stays as a wrapper-side XLA op (data-dependent gather).
    out = jnp.take(p['word_emb'], src, axis=0) \
        + jnp.take(p['pos_emb'], positions, axis=0)[None, :, :]
    mask = jnp.broadcast_to(src_keep[:, None, :], (N, Ls, Ls))      # (N, Lq, Lk)
    for lp in p['layers']:
        out = encoder_block(lp, out, mask, num_heads)
    return out


def decoder_fwd(p, trg, enc_out, src_keep, num_heads):
    N, Lt = trg.shape
    Ls, E = enc_out.shape[1], enc_out.shape[2]
    positions = jnp.arange(Lt, dtype=jnp.int32)
    x = jnp.take(p['word_emb'], trg, axis=0) \
        + jnp.take(p['pos_emb'], positions, axis=0)[None, :, :]
    trg_mask = jnp.broadcast_to(
        jnp.tril(jnp.ones((Lt, Lt), jnp.float32))[None, :, :], (N, Lt, Lt))
    src_mask = jnp.broadcast_to(src_keep[:, None, :], (N, Lt, Ls))
    for lp in p['layers']:
        x = decoder_block(lp, x, enc_out, trg_mask, src_mask, num_heads)
    out = linear(x.reshape(N * Lt, E), p['fc_w'], p['fc_b'])
    return out.reshape(N, Lt, -1)


@functools.partial(jax.jit, static_argnums=(5,))
def transformer_fwd(params, src, trg, src_pad_idx, trg_pad_idx, num_heads):
    # src_mask: (src != pad) broadcast over queries; trg_mask: causal tril.
    src_keep = (src != src_pad_idx).astype(jnp.float32)             # (N, Ls)
    enc_src = encoder_fwd(params['encoder'], src, src_keep, num_heads)
    return decoder_fwd(params['decoder'], trg, enc_src, src_keep, num_heads)


# ------------------------------ param init -----------------------------------

def _init_linear(key, fan_in, fan_out, bias=True, scale=0.02):
    k1, k2 = jax.random.split(key)
    w = (jax.random.normal(k1, (fan_in, fan_out), jnp.float32) * scale) \
        .astype(jnp.bfloat16)                     # bf16 weight storage (MXU-native)
    if not bias:
        return w, None
    b = jax.random.normal(k2, (1, fan_out), jnp.float32) * scale
    return w, b


def _init_attention(key, E):
    ks = jax.random.split(key, 4)
    wq, _ = _init_linear(ks[0], E, E, bias=False)
    wk, _ = _init_linear(ks[1], E, E, bias=False)
    wv, _ = _init_linear(ks[2], E, E, bias=False)
    fw, fb = _init_linear(ks[3], E, E, bias=True)
    return {'w_qkv': jnp.concatenate([wq, wk, wv], axis=1),   # (E, 3E) fused
            'fc_w': fw, 'fc_b': fb}


def _init_tblock(key, E, fe):
    ks = jax.random.split(key, 3)
    f1w, f1b = _init_linear(ks[1], E, fe * E)
    f2w, f2b = _init_linear(ks[2], fe * E, E)
    return {'attn': _init_attention(ks[0], E),
            'ln1_g': jnp.ones((1, E), jnp.float32),
            'ln1_b': jnp.zeros((1, E), jnp.float32),
            'ln2_g': jnp.ones((1, E), jnp.float32),
            'ln2_b': jnp.zeros((1, E), jnp.float32),
            'ff1_w': f1w, 'ff1_b': f1b,
            'ff2_w': f2w, 'ff2_b': f2b}


def _init_decoder_block(key, E, fe):
    ks = jax.random.split(key, 2)
    return {'attn': _init_attention(ks[0], E),
            'ln_g': jnp.ones((1, E), jnp.float32),
            'ln_b': jnp.zeros((1, E), jnp.float32),
            'tblock': _init_tblock(ks[1], E, fe)}


def init_transformer(key, src_vocab, trg_vocab, E, num_layers, fe, max_length):
    keys = jax.random.split(key, 8)
    enc = {
        'word_emb': jax.random.normal(keys[0], (src_vocab, E), jnp.float32) * 0.02,
        'pos_emb': jax.random.normal(keys[1], (max_length, E), jnp.float32) * 0.02,
        'layers': [_init_tblock(k, E, fe)
                   for k in jax.random.split(keys[2], num_layers)],
    }
    fcw, fcb = _init_linear(keys[5], E, trg_vocab)
    dec = {
        'word_emb': jax.random.normal(keys[3], (trg_vocab, E), jnp.float32) * 0.02,
        'pos_emb': jax.random.normal(keys[4], (max_length, E), jnp.float32) * 0.02,
        'layers': [_init_decoder_block(k, E, fe)
                   for k in jax.random.split(keys[6], num_layers)],
        'fc_w': fcw, 'fc_b': fcb,
    }
    return {'encoder': enc, 'decoder': dec}


# ---------------------------------- main --------------------------------------

if __name__ == "__main__":
    # small config consistent with the module
    SRC_VOCAB, TRG_VOCAB = 50, 60
    SRC_PAD, TRG_PAD = 0, 0
    EMBED, HEADS, NUM_LAYERS, FE, MAX_LEN = 32, 4, 2, 2, 16
    N, LS, LT = 2, 8, 8

    root = jax.random.PRNGKey(0)
    kp, ks, kt = jax.random.split(root, 3)

    params = init_transformer(kp, SRC_VOCAB, TRG_VOCAB, EMBED,
                              NUM_LAYERS, FE, MAX_LEN)

    src = jax.random.randint(ks, (N, LS), 1, SRC_VOCAB, dtype=jnp.int32)
    trg = jax.random.randint(kt, (N, LT), 1, TRG_VOCAB, dtype=jnp.int32)
    # introduce a couple of pad tokens in src to exercise the source mask
    src = src.at[0, LS - 1].set(SRC_PAD).at[1, LS - 2:].set(SRC_PAD)

    out = transformer_fwd(params, src, trg, SRC_PAD, TRG_PAD, HEADS)
    out = jax.block_until_ready(out)

    assert out.shape == (N, LT, TRG_VOCAB), out.shape
    assert bool(jnp.all(jnp.isfinite(out)))
    print("KERNEL_OK")
</pallas_src>

<mosaic_0001>
module attributes {stable_mosaic.version = 11 : i64} {
  func.func @_linear_kernel(%arg0: i32, %arg1: i32, %arg2: memref<16x32xf32, #tpu.memory_space<vmem>>, %arg3: memref<32x60xbf16, #tpu.memory_space<vmem>>, %arg4: memref<1x60xf32, #tpu.memory_space<vmem>>, %arg5: memref<16x60xf32, #tpu.memory_space<vmem>>) attributes {dimension_semantics = [#tpu.dimension_semantics<parallel>, #tpu.dimension_semantics<parallel>], iteration_bounds = array<i64: 1, 1>, scalar_prefetch = 0 : i64, scratch_operands = 0 : i64, tpu.core_type = #tpu.core_type<tc>, window_params = [{transform_indices = @transform_0, window_bounds = array<i64: 16, 32>}, {transform_indices = @transform_1, window_bounds = array<i64: 32, 60>}, {transform_indices = @transform_2, window_bounds = array<i64: 1, 60>}, {transform_indices = @transform_3, window_bounds = array<i64: 16, 60>}]} {
    %c0 = arith.constant 0 : index
    %c0_0 = arith.constant 0 : index
    %0 = vector.load %arg2[%c0, %c0_0] : memref<16x32xf32, #tpu.memory_space<vmem>>, vector<16x32xf32>
    %1 = arith.truncf %0 : vector<16x32xf32> to vector<16x32xbf16>
    %c0_1 = arith.constant 0 : index
    %c0_2 = arith.constant 0 : index
    %2 = vector.load %arg3[%c0_1, %c0_2] : memref<32x60xbf16, #tpu.memory_space<vmem>>, vector<32x60xbf16>
    %cst = arith.constant dense<0.000000e+00> : vector<16x60xf32>
    %3 = tpu.matmul %1, %2, %cst {dimension_numbers = #tpu.dot_dimension_numbers<[1], [0], [0], [1], [0, 0, 1, 1], [], []>} : vector<16x32xbf16>, vector<32x60xbf16>, vector<16x60xf32> -> vector<16x60xf32>
    %c0_3 = arith.constant 0 : index
    %c0_4 = arith.constant 0 : index
    %4 = vector.load %arg4[%c0_3, %c0_4] : memref<1x60xf32, #tpu.memory_space<vmem>>, vector<1x60xf32>
    %5 = vector.broadcast %4 : vector<1x60xf32> to vector<16x60xf32>
    %6 = arith.addf %3, %5 : vector<16x60xf32>
    %c0_5 = arith.constant 0 : index
    %c0_6 = arith.constant 0 : index
    %7 = vector.load %arg5[%c0_5, %c0_6] : memref<16x60xf32, #tpu.memory_space<vmem>>, vector<16x60xf32>
    tpu.vector_store %arg5[%c0_5, %c0_6], %6 {strides = array<i32>} : memref<16x60xf32, #tpu.memory_space<vmem>>, vector<16x60xf32>,
    return
  }
  func.func @transform_0(%arg0: i32, %arg1: i32) -> (i32, i32) {
    %c0_i32 = arith.constant 0 : i32
    %c0_i32_0 = arith.constant 0 : i32
    return %arg0, %c0_i32 : i32, i32
  }
  func.func @transform_1(%arg0: i32, %arg1: i32) -> (i32, i32) {
    %c0_i32 = arith.constant 0 : i32
    %c0_i32_0 = arith.constant 0 : i32
    return %c0_i32, %arg1 : i32, i32
  }
  func.func @transform_2(%arg0: i32, %arg1: i32) -> (i32, i32) {
    %c0_i32 = arith.constant 0 : i32
    %c0_i32_0 = arith.constant 0 : i32
    return %c0_i32, %arg1 : i32, i32
  }
  func.func @transform_3(%arg0: i32, %arg1: i32) -> (i32, i32) {
    %c0_i32 = arith.constant 0 : i32
    return %arg0, %arg1 : i32, i32
  }
}

module attributes {stable_mosaic.version = 11 : i64} {
  func.func @_encoder_block_kernel(%arg0: i32, %arg1: memref<1x8x32xf32, #tpu.memory_space<vmem>>, %arg2: memref<1x8x8xf32, #tpu.memory_space<vmem>>, %arg3: memref<32x96xbf16, #tpu.memory_space<vmem>>, %arg4: memref<32x32xbf16, #tpu.memory_space<vmem>>, %arg5: memref<1x32xf32, #tpu.memory_space<vmem>>, %arg6: memref<1x32xf32, #tpu.memory_space<vmem>>, %arg7: memref<1x32xf32, #tpu.memory_space<vmem>>, %arg8: memref<32x64xbf16, #tpu.memory_space<vmem>>, %arg9: memref<1x64xf32, #tpu.memory_space<vmem>>, %arg10: memref<64x32xbf16, #tpu.memory_space<vmem>>, %arg11: memref<1x32xf32, #tpu.memory_space<vmem>>, %arg12: memref<1x32xf32, #tpu.memory_space<vmem>>, %arg13: memref<1x32xf32, #tpu.memory_space<vmem>>, %arg14: memref<1x8x32xf32, #tpu.memory_space<vmem>>) attributes {dimension_semantics = [#tpu.dimension_semantics<parallel>], iteration_bounds = array<i64: 2>, scalar_prefetch = 0 : i64, scratch_operands = 0 : i64, tpu.core_type = #tpu.core_type<tc>, window_params = [{transform_indices = @transform_0, window_bounds = array<i64: 1, 8, 32>}, {transform_indices = @transform_1, window_bounds = array<i64: 1, 8, 8>}, {pipeline_mode = #tpu.pipeline_mode<synchronous>, transform_indices = @transform_2, window_bounds = array<i64: 32, 96>}, {pipeline_mode = #tpu.pipeline_mode<synchronous>, transform_indices = @transform_3, window_bounds = array<i64: 32, 32>}, {pipeline_mode = #tpu.pipeline_mode<synchronous>, transform_indices = @transform_4, window_bounds = array<i64: 1, 32>}, {pipeline_mode = #tpu.pipeline_mode<synchronous>, transform_indices = @transform_5, window_bounds = array<i64: 1, 32>}, {pipeline_mode = #tpu.pipeline_mode<synchronous>, transform_indices = @transform_6, window_bounds = array<i64: 1, 32>}, {pipeline_mode = #tpu.pipeline_mode<synchronous>, transform_indices = @transform_7, window_bounds = array<i64: 32, 64>}, {pipeline_mode = #tpu.pipeline_mode<synchronous>, transform_indices = @transform_8, window_bounds = array<i64: 1, 64>}, {pipeline_mode = #tpu.pipeline_mode<synchronous>, transform_indices = @transform_9, window_bounds = array<i64: 64, 32>}, {pipeline_mode = #tpu.pipeline_mode<synchronous>, transform_indices = @transform_10, window_bounds = array<i64: 1, 32>}, {pipeline_mode = #tpu.pipeline_mode<synchronous>, transform_indices = @transform_11, window_bounds = array<i64: 1, 32>}, {pipeline_mode = #tpu.pipeline_mode<synchronous>, transform_indices = @transform_12, window_bounds = array<i64: 1, 32>}, {transform_indices = @transform_13, window_bounds = array<i64: 1, 8, 32>}]} {
    %c0 = arith.constant 0 : index
    %c0_0 = arith.constant 0 : index
    %c0_1 = arith.constant 0 : index
    %0 = vector.load %arg1[%c0, %c0_0, %c0_1] : memref<1x8x32xf32, #tpu.memory_space<vmem>>, vector<1x8x32xf32>
    %1 = vector.shape_cast %0 : vector<1x8x32xf32> to vector<8x32xf32>
    %c0_2 = arith.constant 0 : index
    %c0_3 = arith.constant 0 : index
    %2 = vector.load %arg3[%c0_2, %c0_3] : memref<32x96xbf16, #tpu.memory_space<vmem>>, vector<32x96xbf16>
    %c0_4 = arith.constant 0 : index
    %c0_5 = arith.constant 0 : index
    %3 = vector.load %arg4[%c0_4, %c0_5] : memref<32x32xbf16, #tpu.memory_space<vmem>>, vector<32x32xbf16>
    %c0_6 = arith.constant 0 : index
    %c0_7 = arith.constant 0 : index
    %4 = vector.load %arg5[%c0_6, %c0_7] : memref<1x32xf32, #tpu.memory_space<vmem>>, vector<1x32xf32>
    %c0_8 = arith.constant 0 : index
    %c0_9 = arith.constant 0 : index
    %c0_10 = arith.constant 0 : index
    %5 = vector.load %arg2[%c0_8, %c0_9, %c0_10] : memref<1x8x8xf32, #tpu.memory_space<vmem>>, vector<1x8x8xf32>
    %6 = vector.shape_cast %5 : vector<1x8x8xf32> to vector<8x8xf32>
    %7 = arith.truncf %1 : vector<8x32xf32> to vector<8x32xbf16>
    %cst = arith.constant dense<0.000000e+00> : vector<8x96xf32>
    %8 = tpu.matmul %7, %2, %cst {dimension_numbers = #tpu.dot_dimension_numbers<[1], [0], [0], [1], [0, 0, 1, 1], [], []>} : vector<8x32xbf16>, vector<32x96xbf16>, vector<8x96xf32> -> vector<8x96xf32>
    %9 = vector.extract_strided_slice %8 {offsets = [0, 0], sizes = [8, 32], strides = [1, 1]} : vector<8x96xf32> to vector<8x32xf32>
    %10 = vector.extract_strided_slice %8 {offsets = [0, 32], sizes = [8, 32], strides = [1, 1]} : vector<8x96xf32> to vector<8x32xf32>
    %11 = vector.extract_strided_slice %8 {offsets = [0, 64], sizes = [8, 32], strides = [1, 1]} : vector<8x96xf32> to vector<8x32xf32>
    %cst_11 = arith.constant 0.353553385 : f32
    %12 = vector.broadcast %cst_11 : f32 to vector<8x32xf32>
    %13 = arith.mulf %9, %12 : vector<8x32xf32>
    %14 = vector.extract_strided_slice %13 {offsets = [0, 0], sizes = [8, 8], strides = [1, 1]} : vector<8x32xf32> to vector<8x8xf32>
    %15 = arith.truncf %14 : vector<8x8xf32> to vector<8x8xbf16>
    %16 = vector.extract_strided_slice %10 {offsets = [0, 0], sizes = [8, 8], strides = [1, 1]} : vector<8x32xf32> to vector<8x8xf32>
    %17 = arith.truncf %16 : vector<8x8xf32> to vector<8x8xbf16>
    %18 = vector.extract_strided_slice %11 {offsets = [0, 0], sizes = [8, 8], strides = [1, 1]} : vector<8x32xf32> to vector<8x8xf32>
    %19 = arith.truncf %18 : vector<8x8xf32> to vector<8x8xbf16>
    %cst_12 = arith.constant dense<0.000000e+00> : vector<8x8xf32>
    %20 = tpu.matmul %15, %17, %cst_12 {dimension_numbers = #tpu.dot_dimension_numbers<[1], [1], [0], [0], [0, 0, 1, 0], [], []>} : vector<8x8xbf16>, vector<8x8xbf16>, vector<8x8xf32> -> vector<8x8xf32>
    %cst_13 = arith.constant 0.000000e+00 : f32
    %21 = vector.broadcast %cst_13 : f32 to vector<8x8xf32>
    %22 = arith.cmpf oeq, %6, %21 : vector<8x8xf32>
    %cst_14 = arith.constant -1.000000e+20 : f32
    %23 = vector.broadcast %cst_14 : f32 to vector<8x8xf32>
    %24 = arith.select %22, %23, %20 : vector<8x8xi1>, vector<8x8xf32>
    %cst_15 = arith.constant dense<0xFF800000> : vector<8xf32>
    %25 = vector.multi_reduction <maximumf>, %24, %cst_15 [1] : vector<8x8xf32> to vector<8xf32>
    %26 = vector.shape_cast %25 : vector<8xf32> to vector<8x1xf32>
    %27 = vector.broadcast %26 : vector<8x1xf32> to vector<8x8xf32>
    %28 = arith.subf %24, %27 : vector<8x8xf32>
    %29 = math.exp %28 : vector<8x8xf32>
    %cst_16 = arith.constant dense<0.000000e+00> : vector<8xf32>
    %30 = vector.multi_reduction <add>, %29, %cst_16 [1] : vector<8x8xf32> to vector<8xf32>
    %31 = vector.shape_cast %30 : vector<8xf32> to vector<8x1xf32>
    %32 = tpu.reciprocal %31 {approx = true} : vector<8x1xf32> -> vector<8x1xf32>
    %33 = vector.broadcast %32 : vector<8x1xf32> to vector<8x8xf32>
    %34 = arith.mulf %29, %33 : vector<8x8xf32>
    %35 = arith.truncf %34 : vector<8x8xf32> to vector<8x8xbf16>
    %cst_17 = arith.constant dense<0.000000e+00> : vector<8x8xf32>
    %36 = tpu.matmul %35, %19, %cst_17 {dimension_numbers = #tpu.dot_dimension_numbers<[1], [0], [0], [1], [0, 0, 1, 1], [], []>} : vector<8x8xbf16>, vector<8x8xbf16>, vector<8x8xf32> -> vector<8x8xf32>
    %37 = vector.extract_strided_slice %13 {offsets = [0, 8], sizes = [8, 8], strides = [1, 1]} : vector<8x32xf32> to vector<8x8xf32>
    %38 = arith.truncf %37 : vector<8x8xf32> to vector<8x8xbf16>
    %39 = vector.extract_strided_slice %10 {offsets = [0, 8], sizes = [8, 8], strides = [1, 1]} : vector<8x32xf32> to vector<8x8xf32>
    %40 = arith.truncf %39 : vector<8x8xf32> to vector<8x8xbf16>
    %41 = vector.extract_strided_slice %11 {offsets = [0, 8], sizes = [8, 8], strides = [1, 1]} : vector<8x32xf32> to vector<8x8xf32>
    %42 = arith.truncf %41 : vector<8x8xf32> to vector<8x8xbf16>
    %cst_18 = arith.constant dense<0.000000e+00> : vector<8x8xf32>
    %43 = tpu.matmul %38, %40, %cst_18 {dimension_numbers = #tpu.dot_dimension_numbers<[1], [1], [0], [0], [0, 0, 1, 0], [], []>} : vector<8x8xbf16>, vector<8x8xbf16>, vector<8x8xf32> -> vector<8x8xf32>
    %cst_19 = arith.constant 0.000000e+00 : f32
    %44 = vector.broadcast %cst_19 : f32 to vector<8x8xf32>
    %45 = arith.cmpf oeq, %6, %44 : vector<8x8xf32>
    %cst_20 = arith.constant -1.000000e+20 : f32
    %46 = vector.broadcast %cst_20 : f32 to vector<8x8xf32>
    %47 = arith.select %45, %46, %43 : vector<8x8xi1>, vector<8x8xf32>
    %cst_21 = arith.constant dense<0xFF800000> : vector<8xf32>
    %48 = vector.multi_reduction <maximumf>, %47, %cst_21 [1] : vector<8x8xf32> to vector<8xf32>
    %49 = vector.shape_cast %48 : vector<8xf32> to vector<8x1xf32>
    %50 = vector.broadcast %49 : vector<8x1xf32> to vector<8x8xf32>
    %51 = arith.subf %47, %50 : vector<8x8xf32>
    %52 = math.exp %51 : vector<8x8xf32>
    %cst_22 = arith.constant dense<0.000000e+00> : vector<8xf32>
    %53 = vector.multi_reduction <add>, %52, %cst_22 [1] : vector<8x8xf32> to vector<8xf32>
    %54 = vector.shape_cast %53 : vector<8xf32> to vector<8x1xf32>
    %55 = tpu.reciprocal %54 {approx = true} : vector<8x1xf32> -> vector<8x1xf32>
    %56 = vector.broadcast %55 : vector<8x1xf32> to vector<8x8xf32>
    %57 = arith.mulf %52, %56 : vector<8x8xf32>
    %58 = arith.truncf %57 : vector<8x8xf32> to vector<8x8xbf16>
    %cst_23 = arith.constant dense<0.000000e+00> : vector<8x8xf32>
    %59 = tpu.matmul %58, %42, %cst_23 {dimension_numbers = #tpu.dot_dimension_numbers<[1], [0], [0], [1], [0, 0, 1, 1], [], []>} : vector<8x8xbf16>, vector<8x8xbf16>, vector<8x8xf32> -> vector<8x8xf32>
    %60 = vector.extract_strided_slice %13 {offsets = [0, 16], sizes = [8, 8], strides = [1, 1]} : vector<8x32xf32> to vector<8x8xf32>
    %61 = arith.truncf %60 : vector<8x8xf32> to vector<8x8xbf16>
    %62 = vector.extract_strided_slice %10 {offsets = [0, 16], sizes = [8, 8], strides = [1, 1]} : vector<8x32xf32> to vector<8x8xf32>
    %63 = arith.truncf %62 : vector<8x8xf32> to vector<8x8xbf16>
    %64 = vector.extract_strided_slice %11 {offsets = [0, 16], sizes = [8, 8], strides = [1, 1]} : vector<8x32xf32> to vector<8x8xf32>
    %65 = arith.truncf %64 : vector<8x8xf32> to vector<8x8xbf16>
    %cst_24 = arith.constant dense<0.000000e+00> : vector<8x8xf32>
    %66 = tpu.matmul %61, %63, %cst_24 {dimension_numbers = #tpu.dot_dimension_numbers<[1], [1], [0], [0], [0, 0, 1, 0], [], []>} : vector<8x8xbf16>, vector<8x8xbf16>, vector<8x8xf32> -> vector<8x8xf32>
    %cst_25 = arith.constant 0.000000e+00 : f32
    %67 = vector.broadcast %cst_25 : f32 to vector<8x8xf32>
    %68 = arith.cmpf oeq, %6, %67 : vector<8x8xf32>
    %cst_26 = arith.constant -1.000000e+20 : f32
    %69 = vector.broadcast %cst_26 : f32 to vector<8x8xf32>
    %70 = arith.select %68, %69, %66 : vector<8x8xi1>, vector<8x8xf32>
    %cst_27 = arith.constant dense<0xFF800000> : vector<8xf32>
    %71 = vector.multi_reduction <maximumf>, %70, %cst_27 [1] : vector<8x8xf32> to vector<8xf32>
    %72 = vector.shape_cast %71 : vector<8xf32> to vector<8x1xf32>
    %73 = vector.broadcast %72 : vector<8x1xf32> to vector<8x8xf32>
    %74 = arith.subf %70, %73 : vector<8x8xf32>
    %75 = math.exp %74 : vector<8x8xf32>
    %cst_28 = arith.constant dense<0.000000e+00> : vector<8xf32>
    %76 = vector.multi_reduction <add>, %75, %cst_28 [1] : vector<8x8xf32> to vector<8xf32>
    %77 = vector.shape_cast %76 : vector<8xf32> to vector<8x1xf32>
    %78 = tpu.reciprocal %77 {approx = true} : vector<8x1xf32> -> vector<8x1xf32>
    %79 = vector.broadcast %78 : vector<8x1xf32> to vector<8x8xf32>
    %80 = arith.mulf %75, %79 : vector<8x8xf32>
    %81 = arith.truncf %80 : vector<8x8xf32> to vector<8x8xbf16>
    %cst_29 = arith.constant dense<0.000000e+00> : vector<8x8xf32>
    %82 = tpu.matmul %81, %65, %cst_29 {dimension_numbers = #tpu.dot_dimension_numbers<[1], [0], [0], [1], [0, 0, 1, 1], [], []>} : vector<8x8xbf16>, vector<8x8xbf16>, vector<8x8xf32> -> vector<8x8xf32>
    %83 = vector.extract_strided_slice %13 {offsets = [0, 24], sizes = [8, 8], strides = [1, 1]} : vector<8x32xf32> to vector<8x8xf32>
    %84 = arith.truncf %83 : vector<8x8xf32> to vector<8x8xbf16>
    %85 = vector.extract_strided_slice %10 {offsets = [0, 24], sizes = [8, 8], strides = [1, 1]} : vector<8x32xf32> to vector<8x8xf32>
    %86 = arith.truncf %85 : vector<8x8xf32> to vector<8x8xbf16>
    %87 = vector.extract_strided_slice %11 {offsets = [0, 24], sizes = [8, 8], strides = [1, 1]} : vector<8x32xf32> to vector<8x8xf32>
    %88 = arith.truncf %87 : vector<8x8xf32> to vector<8x8xbf16>
    %cst_30 = arith.constant dense<0.000000e+00> : vector<8x8xf32>
    %89 = tpu.matmul %84, %86, %cst_30 {dimension_numbers = #tpu.dot_dimension_numbers<[1], [1], [0], [0], [0, 0, 1, 0], [], []>} : vector<8x8xbf16>, vector<8x8xbf16>, vector<8x8xf32> -> vector<8x8xf32>
    %cst_31 = arith.constant 0.000000e+00 : f32
    %90 = vector.broadcast %cst_31 : f32 to vector<8x8xf32>
    %91 = arith.cmpf oeq, %6, %90 : vector<8x8xf32>
    %cst_32 = arith.constant -1.000000e+20 : f32
    %92 = vector.broadcast %cst_32 : f32 to vector<8x8xf32>
    %93 = arith.select %91, %92, %89 : vector<8x8xi1>, vector<8x8xf32>
    %cst_33 = arith.constant dense<0xFF800000> : vector<8xf32>
    %94 = vector.multi_reduction <maximumf>, %93, %cst_33 [1] : vector<8x8xf32> to vector<8xf32>
    %95 = vector.shape_cast %94 : vector<8xf32> to vector<8x1xf32>
    %96 = vector.broadcast %95 : vector<8x1xf32> to vector<8x8xf32>
    %97 = arith.subf %93, %96 : vector<8x8xf32>
    %98 = math.exp %97 : vector<8x8xf32>
    %cst_34 = arith.constant dense<0.000000e+00> : vector<8xf32>
    %99 = vector.multi_reduction <add>, %98, %cst_34 [1] : vector<8x8xf32> to vector<8xf32>
    %100 = vector.shape_cast %99 : vector<8xf32> to vector<8x1xf32>
    %101 = tpu.reciprocal %100 {approx = true} : vector<8x1xf32> -> vector<8x1xf32>
    %102 = vector.broadcast %101 : vector<8x1xf32> to vector<8x8xf32>
    %103 = arith.mulf %98, %102 : vector<8x8xf32>
    %104 = arith.truncf %103 : vector<8x8xf32> to vector<8x8xbf16>
    %cst_35 = arith.constant dense<0.000000e+00> : vector<8x8xf32>
    %105 = tpu.matmul %104, %88, %cst_35 {dimension_numbers = #tpu.dot_dimension_numbers<[1], [0], [0], [1], [0, 0, 1, 1], [], []>} : vector<8x8xbf16>, vector<8x8xbf16>, vector<8x8xf32> -> vector<8x8xf32>
    %106 = tpu.concatenate %36, %59, %82, %105 in 1 : vector<8x8xf32>, vector<8x8xf32>, vector<8x8xf32>, vector<8x8xf32> -> vector<8x32xf32>
    %107 = arith.truncf %106 : vector<8x32xf32> to vector<8x32xbf16>
    %cst_36 = arith.constant dense<0.000000e+00> : vector<8x32xf32>
    %108 = tpu.matmul %107, %3, %cst_36 {dimension_numbers = #tpu.dot_dimension_numbers<[1], [0], [0], [1], [0, 0, 1, 1], [], []>} : vector<8x32xbf16>, vector<32x32xbf16>, vector<8x32xf32> -> vector<8x32xf32>
    %109 = vector.broadcast %4 : vector<1x32xf32> to vector<8x32xf32>
    %110 = arith.addf %108, %109 : vector<8x32xf32>
    %111 = arith.addf %110, %1 : vector<8x32xf32>
    %c0_37 = arith.constant 0 : index
    %c0_38 = arith.constant 0 : index
    %112 = vector.load %arg6[%c0_37, %c0_38] : memref<1x32xf32, #tpu.memory_space<vmem>>, vector<1x32xf32>
    %c0_39 = arith.constant 0 : index
    %c0_40 = arith.constant 0 : index
    %113 = vector.load %arg7[%c0_39, %c0_40] : memref<1x32xf32, #tpu.memory_space<vmem>>, vector<1x32xf32>
    %cst_41 = arith.constant dense<0.000000e+00> : vector<8xf32>
    %114 = vector.multi_reduction <add>, %111, %cst_41 [1] : vector<8x32xf32> to vector<8xf32>
    %115 = vector.shape_cast %114 : vector<8xf32> to vector<8x1xf32>
    %cst_42 = arith.constant 3.200000e+01 : f32
    %116 = vector.broadcast %cst_42 : f32 to vector<8x1xf32>
    %117 = arith.divf %115, %116 : vector<8x1xf32>
    %118 = vector.broadcast %117 : vector<8x1xf32> to vector<8x32xf32>
    %119 = arith.subf %111, %118 : vector<8x32xf32>
    %120 = arith.mulf %119, %119 : vector<8x32xf32>
    %cst_43 = arith.constant dense<0.000000e+00> : vector<8xf32>
    %121 = vector.multi_reduction <add>, %120, %cst_43 [1] : vector<8x32xf32> to vector<8xf32>
    %122 = vector.shape_cast %121 : vector<8xf32> to vector<8x1xf32>
    %cst_44 = arith.constant 3.200000e+01 : f32
    %123 = vector.broadcast %cst_44 : f32 to vector<8x1xf32>
    %124 = arith.divf %122, %123 : vector<8x1xf32>
    %125 = vector.broadcast %117 : vector<8x1xf32> to vector<8x32xf32>
    %126 = arith.subf %111, %125 : vector<8x32xf32>
    %cst_45 = arith.constant 9.99999974E-6 : f32
    %127 = vector.broadcast %cst_45 : f32 to vector<8x1xf32>
    %128 = arith.addf %124, %127 : vector<8x1xf32>
    %129 = math.rsqrt %128 : vector<8x1xf32>
    %130 = vector.broadcast %129 : vector<8x1xf32> to vector<8x32xf32>
    %131 = arith.mulf %126, %130 : vector<8x32xf32>
    %132 = vector.broadcast %112 : vector<1x32xf32> to vector<8x32xf32>
    %133 = arith.mulf %131, %132 : vector<8x32xf32>
    %134 = vector.broadcast %113 : vector<1x32xf32> to vector<8x32xf32>
    %135 = arith.addf %133, %134 : vector<8x32xf32>
    %c0_46 = arith.constant 0 : index
    %c0_47 = arith.constant 0 : index
    %136 = vector.load %arg8[%c0_46, %c0_47] : memref<32x64xbf16, #tpu.memory_space<vmem>>, vector<32x64xbf16>
    %c0_48 = arith.constant 0 : index
    %c0_49 = arith.constant 0 : index
    %137 = vector.load %arg9[%c0_48, %c0_49] : memref<1x64xf32, #tpu.memory_space<vmem>>, vector<1x64xf32>
    %c0_50 = arith.constant 0 : index
    %c0_51 = arith.constant 0 : index
    %138 = vector.load %arg10[%c0_50, %c0_51] : memref<64x32xbf16, #tpu.memory_space<vmem>>, vector<64x32xbf16>
    %c0_52 = arith.constant 0 : index
    %c0_53 = arith.constant 0 : index
    %139 = vector.load %arg11[%c0_52, %c0_53] : memref<1x32xf32, #tpu.memory_space<vmem>>, vector<1x32xf32>
    %140 = arith.truncf %135 : vector<8x32xf32> to vector<8x32xbf16>
    %cst_54 = arith.constant dense<0.000000e+00> : vector<8x64xf32>
    %141 = tpu.matmul %140, %136, %cst_54 {dimension_numbers = #tpu.dot_dimension_numbers<[1], [0], [0], [1], [0, 0, 1, 1], [], []>} : vector<8x32xbf16>, vector<32x64xbf16>, vector<8x64xf32> -> vector<8x64xf32>
    %142 = vector.broadcast %137 : vector<1x64xf32> to vector<8x64xf32>
    %143 = arith.addf %141, %142 : vector<8x64xf32>
    %cst_55 = arith.constant 0.000000e+00 : f32
    %144 = vector.broadcast %cst_55 : f32 to vector<8x64xf32>
    %145 = arith.maximumf %143, %144 : vector<8x64xf32>
    %146 = arith.truncf %145 : vector<8x64xf32> to vector<8x64xbf16>
    %cst_56 = arith.constant dense<0.000000e+00> : vector<8x32xf32>
    %147 = tpu.matmul %146, %138, %cst_56 {dimension_numbers = #tpu.dot_dimension_numbers<[1], [0], [0], [1], [0, 0, 1, 1], [], []>} : vector<8x64xbf16>, vector<64x32xbf16>, vector<8x32xf32> -> vector<8x32xf32>
    %148 = vector.broadcast %139 : vector<1x32xf32> to vector<8x32xf32>
    %149 = arith.addf %147, %148 : vector<8x32xf32>
    %150 = arith.addf %149, %135 : vector<8x32xf32>
    %c0_57 = arith.constant 0 : index
    %c0_58 = arith.constant 0 : index
    %151 = vector.load %arg12[%c0_57, %c0_58] : memref<1x32xf32, #tpu.memory_space<vmem>>, vector<1x32xf32>
    %c0_59 = arith.constant 0 : index
    %c0_60 = arith.constant 0 : index
    %152 = vector.load %arg13[%c0_59, %c0_60] : memref<1x32xf32, #tpu.memory_space<vmem>>, vector<1x32xf32>
    %cst_61 = arith.constant dense<0.000000e+00> : vector<8xf32>
    %153 = vector.multi_reduction <add>, %150, %cst_61 [1] : vector<8x32xf32> to vector<8xf32>
    %154 = vector.shape_cast %153 : vector<8xf32> to vector<8x1xf32>
    %cst_62 = arith.constant 3.200000e+01 : f32
    %155 = vector.broadcast %cst_62 : f32 to vector<8x1xf32>
    %156 = arith.divf %154, %155 : vector<8x1xf32>
    %157 = vector.broadcast %156 : vector<8x1xf32> to vector<8x32xf32>
    %158 = arith.subf %150, %157 : vector<8x32xf32>
    %159 = arith.mulf %158, %158 : vector<8x32xf32>
    %cst_63 = arith.constant dense<0.000000e+00> : vector<8xf32>
    %160 = vector.multi_reduction <add>, %159, %cst_63 [1] : vector<8x32xf32> to vector<8xf32>
    %161 = vector.shape_cast %160 : vector<8xf32> to vector<8x1xf32>
    %cst_64 = arith.constant 3.200000e+01 : f32
    %162 = vector.broadcast %cst_64 : f32 to vector<8x1xf32>
    %163 = arith.divf %161, %162 : vector<8x1xf32>
    %164 = vector.broadcast %156 : vector<8x1xf32> to vector<8x32xf32>
    %165 = arith.subf %150, %164 : vector<8x32xf32>
    %cst_65 = arith.constant 9.99999974E-6 : f32
    %166 = vector.broadcast %cst_65 : f32 to vector<8x1xf32>
    %167 = arith.addf %163, %166 : vector<8x1xf32>
    %168 = math.rsqrt %167 : vector<8x1xf32>
    %169 = vector.broadcast %168 : vector<8x1xf32> to vector<8x32xf32>
    %170 = arith.mulf %165, %169 : vector<8x32xf32>
    %171 = vector.broadcast %151 : vector<1x32xf32> to vector<8x32xf32>
    %172 = arith.mulf %170, %171 : vector<8x32xf32>
    %173 = vector.broadcast %152 : vector<1x32xf32> to vector<8x32xf32>
    %174 = arith.addf %172, %173 : vector<8x32xf32>
    %c0_66 = arith.constant 0 : index
    %c0_67 = arith.constant 0 : index
    %c0_68 = arith.constant 0 : index
    %175 = vector.load %arg14[%c0_66, %c0_67, %c0_68] : memref<1x8x32xf32, #tpu.memory_space<vmem>>, vector<1x8x32xf32>
    %176 = vector.shape_cast %175 : vector<1x8x32xf32> to vector<8x32xf32>
    %177 = vector.shape_cast %174 : vector<8x32xf32> to vector<1x8x32xf32>
    tpu.vector_store %arg14[%c0_66, %c0_67, %c0_68], %177 {strides = array<i32>} : memref<1x8x32xf32, #tpu.memory_space<vmem>>, vector<1x8x32xf32>,
    return
  }
  func.func @transform_0(%arg0: i32) -> (i32, i32, i32) {
    %c0_i32 = arith.constant 0 : i32
    %c0_i32_0 = arith.constant 0 : i32
    %c0_i32_1 = arith.constant 0 : i32
    return %arg0, %c0_i32, %c0_i32_0 : i32, i32, i32
  }
  func.func @transform_1(%arg0: i32) -> (i32, i32, i32) {
    %c0_i32 = arith.constant 0 : i32
    %c0_i32_0 = arith.constant 0 : i32
    %c0_i32_1 = arith.constant 0 : i32
    return %arg0, %c0_i32, %c0_i32_0 : i32, i32, i32
  }
  func.func @transform_2(%arg0: i32) -> (i32, i32) {
    %c0_i32 = arith.constant 0 : i32
    %c0_i32_0 = arith.constant 0 : i32
    %c0_i32_1 = arith.constant 0 : i32
    return %c0_i32, %c0_i32_0 : i32, i32
  }
  func.func @transform_3(%arg0: i32) -> (i32, i32) {
    %c0_i32 = arith.constant 0 : i32
    %c0_i32_0 = arith.constant 0 : i32
    %c0_i32_1 = arith.constant 0 : i32
    return %c0_i32, %c0_i32_0 : i32, i32
  }
  func.func @transform_4(%arg0: i32) -> (i32, i32) {
    %c0_i32 = arith.constant 0 : i32
    %c0_i32_0 = arith.constant 0 : i32
    %c0_i32_1 = arith.constant 0 : i32
    return %c0_i32, %c0_i32_0 : i32, i32
  }
  func.func @transform_5(%arg0: i32) -> (i32, i32) {
    %c0_i32 = arith.constant 0 : i32
    %c0_i32_0 = arith.constant 0 : i32
    %c0_i32_1 = arith.constant 0 : i32
    return %c0_i32, %c0_i32_0 : i32, i32
  }
  func.func @transform_6(%arg0: i32) -> (i32, i32) {
    %c0_i32 = arith.constant 0 : i32
    %c0_i32_0 = arith.constant 0 : i32
    %c0_i32_1 = arith.constant 0 : i32
    return %c0_i32, %c0_i32_0 : i32, i32
  }
  func.func @transform_7(%arg0: i32) -> (i32, i32) {
    %c0_i32 = arith.constant 0 : i32
    %c0_i32_0 = arith.constant 0 : i32
    %c0_i32_1 = arith.constant 0 : i32
    return %c0_i32, %c0_i32_0 : i32, i32
  }
  func.func @transform_8(%arg0: i32) -> (i32, i32) {
    %c0_i32 = arith.constant 0 : i32
    %c0_i32_0 = arith.constant 0 : i32
    %c0_i32_1 = arith.constant 0 : i32
    return %c0_i32, %c0_i32_0 : i32, i32
  }
  func.func @transform_9(%arg0: i32) -> (i32, i32) {
    %c0_i32 = arith.constant 0 : i32
    %c0_i32_0 = arith.constant 0 : i32
    %c0_i32_1 = arith.constant 0 : i32
    return %c0_i32, %c0_i32_0 : i32, i32
  }
  func.func @transform_10(%arg0: i32) -> (i32, i32) {
    %c0_i32 = arith.constant 0 : i32
    %c0_i32_0 = arith.constant 0 : i32
    %c0_i32_1 = arith.constant 0 : i32
    return %c0_i32, %c0_i32_0 : i32, i32
  }
  func.func @transform_11(%arg0: i32) -> (i32, i32) {
    %c0_i32 = arith.constant 0 : i32
    %c0_i32_0 = arith.constant 0 : i32
    %c0_i32_1 = arith.constant 0 : i32
    return %c0_i32, %c0_i32_0 : i32, i32
  }
  func.func @transform_12(%arg0: i32) -> (i32, i32) {
    %c0_i32 = arith.constant 0 : i32
    %c0_i32_0 = arith.constant 0 : i32
    %c0_i32_1 = arith.constant 0 : i32
    return %c0_i32, %c0_i32_0 : i32, i32
  }
  func.func @transform_13(%arg0: i32) -> (i32, i32, i32) {
    %c0_i32 = arith.constant 0 : i32
    %c0_i32_0 = arith.constant 0 : i32
    %c0_i32_1 = arith.constant 0 : i32
    return %arg0, %c0_i32, %c0_i32_0 : i32, i32, i32
  }
}

module attributes {stable_mosaic.version = 11 : i64} {
  func.func @_decoder_block_kernel(%arg0: i32, %arg1: memref<1x8x32xf32, #tpu.memory_space<vmem>>, %arg2: memref<1x8x32xf32, #tpu.memory_space<vmem>>, %arg3: memref<1x8x8xf32, #tpu.memory_space<vmem>>, %arg4: memref<1x8x8xf32, #tpu.memory_space<vmem>>, %arg5: memref<32x96xbf16, #tpu.memory_space<vmem>>, %arg6: memref<32x32xbf16, #tpu.memory_space<vmem>>, %arg7: memref<1x32xf32, #tpu.memory_space<vmem>>, %arg8: memref<1x32xf32, #tpu.memory_space<vmem>>, %arg9: memref<1x32xf32, #tpu.memory_space<vmem>>, %arg10: memref<32x96xbf16, #tpu.memory_space<vmem>>, %arg11: memref<32x32xbf16, #tpu.memory_space<vmem>>, %arg12: memref<1x32xf32, #tpu.memory_space<vmem>>, %arg13: memref<1x32xf32, #tpu.memory_space<vmem>>, %arg14: memref<1x32xf32, #tpu.memory_space<vmem>>, %arg15: memref<32x64xbf16, #tpu.memory_space<vmem>>, %arg16: memref<1x64xf32, #tpu.memory_space<vmem>>, %arg17: memref<64x32xbf16, #tpu.memory_space<vmem>>, %arg18: memref<1x32xf32, #tpu.memory_space<vmem>>, %arg19: memref<1x32xf32, #tpu.memory_space<vmem>>, %arg20: memref<1x32xf32, #tpu.memory_space<vmem>>, %arg21: memref<1x8x32xf32, #tpu.memory_space<vmem>>) attributes {dimension_semantics = [#tpu.dimension_semantics<parallel>], iteration_bounds = array<i64: 2>, scalar_prefetch = 0 : i64, scratch_operands = 0 : i64, tpu.core_type = #tpu.core_type<tc>, window_params = [{transform_indices = @transform_0, window_bounds = array<i64: 1, 8, 32>}, {transform_indices = @transform_1, window_bounds = array<i64: 1, 8, 32>}, {transform_indices = @transform_2, window_bounds = array<i64: 1, 8, 8>}, {transform_indices = @transform_3, window_bounds = array<i64: 1, 8, 8>}, {pipeline_mode = #tpu.pipeline_mode<synchronous>, transform_indices = @transform_4, window_bounds = array<i64: 32, 96>}, {pipeline_mode = #tpu.pipeline_mode<synchronous>, transform_indices = @transform_5, window_bounds = array<i64: 32, 32>}, {pipeline_mode = #tpu.pipeline_mode<synchronous>, transform_indices = @transform_6, window_bounds = array<i64: 1, 32>}, {pipeline_mode = #tpu.pipeline_mode<synchronous>, transform_indices = @transform_7, window_bounds = array<i64: 1, 32>}, {pipeline_mode = #tpu.pipeline_mode<synchronous>, transform_indices = @transform_8, window_bounds = array<i64: 1, 32>}, {pipeline_mode = #tpu.pipeline_mode<synchronous>, transform_indices = @transform_9, window_bounds = array<i64: 32, 96>}, {pipeline_mode = #tpu.pipeline_mode<synchronous>, transform_indices = @transform_10, window_bounds = array<i64: 32, 32>}, {pipeline_mode = #tpu.pipeline_mode<synchronous>, transform_indices = @transform_11, window_bounds = array<i64: 1, 32>}, {pipeline_mode = #tpu.pipeline_mode<synchronous>, transform_indices = @transform_12, window_bounds = array<i64: 1, 32>}, {pipeline_mode = #tpu.pipeline_mode<synchronous>, transform_indices = @transform_13, window_bounds = array<i64: 1, 32>}, {pipeline_mode = #tpu.pipeline_mode<synchronous>, transform_indices = @transform_14, window_bounds = array<i64: 32, 64>}, {pipeline_mode = #tpu.pipeline_mode<synchronous>, transform_indices = @transform_15, window_bounds = array<i64: 1, 64>}, {pipeline_mode = #tpu.pipeline_mode<synchronous>, transform_indices = @transform_16, window_bounds = array<i64: 64, 32>}, {pipeline_mode = #tpu.pipeline_mode<synchronous>, transform_indices = @transform_17, window_bounds = array<i64: 1, 32>}, {pipeline_mode = #tpu.pipeline_mode<synchronous>, transform_indices = @transform_18, window_bounds = array<i64: 1, 32>}, {pipeline_mode = #tpu.pipeline_mode<synchronous>, transform_indices = @transform_19, window_bounds = array<i64: 1, 32>}, {transform_indices = @transform_20, window_bounds = array<i64: 1, 8, 32>}]} {
    %c0 = arith.constant 0 : index
    %c0_0 = arith.constant 0 : index
    %c0_1 = arith.constant 0 : index
    %0 = vector.load %arg1[%c0, %c0_0, %c0_1] : memref<1x8x32xf32, #tpu.memory_space<vmem>>, vector<1x8x32xf32>
    %1 = vector.shape_cast %0 : vector<1x8x32xf32> to vector<8x32xf32>
    %c0_2 = arith.constant 0 : index
    %c0_3 = arith.constant 0 : index
    %c0_4 = arith.constant 0 : index
    %2 = vector.load %arg2[%c0_2, %c0_3, %c0_4] : memref<1x8x32xf32, #tpu.memory_space<vmem>>, vector<1x8x32xf32>
    %3 = vector.shape_cast %2 : vector<1x8x32xf32> to vector<8x32xf32>
    %c0_5 = arith.constant 0 : index
    %c0_6 = arith.constant 0 : index
    %4 = vector.load %arg5[%c0_5, %c0_6] : memref<32x96xbf16, #tpu.memory_space<vmem>>, vector<32x96xbf16>
    %c0_7 = arith.constant 0 : index
    %c0_8 = arith.constant 0 : index
    %5 = vector.load %arg6[%c0_7, %c0_8] : memref<32x32xbf16, #tpu.memory_space<vmem>>, vector<32x32xbf16>
    %c0_9 = arith.constant 0 : index
    %c0_10 = arith.constant 0 : index
    %6 = vector.load %arg7[%c0_9, %c0_10] : memref<1x32xf32, #tpu.memory_space<vmem>>, vector<1x32xf32>
    %c0_11 = arith.constant 0 : index
    %c0_12 = arith.constant 0 : index
    %c0_13 = arith.constant 0 : index
    %7 = vector.load %arg3[%c0_11, %c0_12, %c0_13] : memref<1x8x8xf32, #tpu.memory_space<vmem>>, vector<1x8x8xf32>
    %8 = vector.shape_cast %7 : vector<1x8x8xf32> to vector<8x8xf32>
    %9 = arith.truncf %1 : vector<8x32xf32> to vector<8x32xbf16>
    %cst = arith.constant dense<0.000000e+00> : vector<8x96xf32>
    %10 = tpu.matmul %9, %4, %cst {dimension_numbers = #tpu.dot_dimension_numbers<[1], [0], [0], [1], [0, 0, 1, 1], [], []>} : vector<8x32xbf16>, vector<32x96xbf16>, vector<8x96xf32> -> vector<8x96xf32>
    %11 = vector.extract_strided_slice %10 {offsets = [0, 0], sizes = [8, 32], strides = [1, 1]} : vector<8x96xf32> to vector<8x32xf32>
    %12 = vector.extract_strided_slice %10 {offsets = [0, 32], sizes = [8, 32], strides = [1, 1]} : vector<8x96xf32> to vector<8x32xf32>
    %13 = vector.extract_strided_slice %10 {offsets = [0, 64], sizes = [8, 32], strides = [1, 1]} : vector<8x96xf32> to vector<8x32xf32>
    %cst_14 = arith.constant 0.353553385 : f32
    %14 = vector.broadcast %cst_14 : f32 to vector<8x32xf32>
    %15 = arith.mulf %11, %14 : vector<8x32xf32>
    %16 = vector.extract_strided_slice %15 {offsets = [0, 0], sizes = [8, 8], strides = [1, 1]} : vector<8x32xf32> to vector<8x8xf32>
    %17 = arith.truncf %16 : vector<8x8xf32> to vector<8x8xbf16>
    %18 = vector.extract_strided_slice %12 {offsets = [0, 0], sizes = [8, 8], strides = [1, 1]} : vector<8x32xf32> to vector<8x8xf32>
    %19 = arith.truncf %18 : vector<8x8xf32> to vector<8x8xbf16>
    %20 = vector.extract_strided_slice %13 {offsets = [0, 0], sizes = [8, 8], strides = [1, 1]} : vector<8x32xf32> to vector<8x8xf32>
    %21 = arith.truncf %20 : vector<8x8xf32> to vector<8x8xbf16>
    %cst_15 = arith.constant dense<0.000000e+00> : vector<8x8xf32>
    %22 = tpu.matmul %17, %19, %cst_15 {dimension_numbers = #tpu.dot_dimension_numbers<[1], [1], [0], [0], [0, 0, 1, 0], [], []>} : vector<8x8xbf16>, vector<8x8xbf16>, vector<8x8xf32> -> vector<8x8xf32>
    %cst_16 = arith.constant 0.000000e+00 : f32
    %23 = vector.broadcast %cst_16 : f32 to vector<8x8xf32>
    %24 = arith.cmpf oeq, %8, %23 : vector<8x8xf32>
    %cst_17 = arith.constant -1.000000e+20 : f32
    %25 = vector.broadcast %cst_17 : f32 to vector<8x8xf32>
    %26 = arith.select %24, %25, %22 : vector<8x8xi1>, vector<8x8xf32>
    %cst_18 = arith.constant dense<0xFF800000> : vector<8xf32>
    %27 = vector.multi_reduction <maximumf>, %26, %cst_18 [1] : vector<8x8xf32> to vector<8xf32>
    %28 = vector.shape_cast %27 : vector<8xf32> to vector<8x1xf32>
    %29 = vector.broadcast %28 : vector<8x1xf32> to vector<8x8xf32>
    %30 = arith.subf %26, %29 : vector<8x8xf32>
    %31 = math.exp %30 : vector<8x8xf32>
    %cst_19 = arith.constant dense<0.000000e+00> : vector<8xf32>
    %32 = vector.multi_reduction <add>, %31, %cst_19 [1] : vector<8x8xf32> to vector<8xf32>
    %33 = vector.shape_cast %32 : vector<8xf32> to vector<8x1xf32>
    %34 = tpu.reciprocal %33 {approx = true} : vector<8x1xf32> -> vector<8x1xf32>
    %35 = vector.broadcast %34 : vector<8x1xf32> to vector<8x8xf32>
    %36 = arith.mulf %31, %35 : vector<8x8xf32>
    %37 = arith.truncf %36 : vector<8x8xf32> to vector<8x8xbf16>
    %cst_20 = arith.constant dense<0.000000e+00> : vector<8x8xf32>
    %38 = tpu.matmul %37, %21, %cst_20 {dimension_numbers = #tpu.dot_dimension_numbers<[1], [0], [0], [1], [0, 0, 1, 1], [], []>} : vector<8x8xbf16>, vector<8x8xbf16>, vector<8x8xf32> -> vector<8x8xf32>
    %39 = vector.extract_strided_slice %15 {offsets = [0, 8], sizes = [8, 8], strides = [1, 1]} : vector<8x32xf32> to vector<8x8xf32>
    %40 = arith.truncf %39 : vector<8x8xf32> to vector<8x8xbf16>
    %41 = vector.extract_strided_slice %12 {offsets = [0, 8], sizes = [8, 8], strides = [1, 1]} : vector<8x32xf32> to vector<8x8xf32>
    %42 = arith.truncf %41 : vector<8x8xf32> to vector<8x8xbf16>
    %43 = vector.extract_strided_slice %13 {offsets = [0, 8], sizes = [8, 8], strides = [1, 1]} : vector<8x32xf32> to vector<8x8xf32>
    %44 = arith.truncf %43 : vector<8x8xf32> to vector<8x8xbf16>
    %cst_21 = arith.constant dense<0.000000e+00> : vector<8x8xf32>
    %45 = tpu.matmul %40, %42, %cst_21 {dimension_numbers = #tpu.dot_dimension_numbers<[1], [1], [0], [0], [0, 0, 1, 0], [], []>} : vector<8x8xbf16>, vector<8x8xbf16>, vector<8x8xf32> -> vector<8x8xf32>
    %cst_22 = arith.constant 0.000000e+00 : f32
    %46 = vector.broadcast %cst_22 : f32 to vector<8x8xf32>
    %47 = arith.cmpf oeq, %8, %46 : vector<8x8xf32>
    %cst_23 = arith.constant -1.000000e+20 : f32
    %48 = vector.broadcast %cst_23 : f32 to vector<8x8xf32>
    %49 = arith.select %47, %48, %45 : vector<8x8xi1>, vector<8x8xf32>
    %cst_24 = arith.constant dense<0xFF800000> : vector<8xf32>
    %50 = vector.multi_reduction <maximumf>, %49, %cst_24 [1] : vector<8x8xf32> to vector<8xf32>
    %51 = vector.shape_cast %50 : vector<8xf32> to vector<8x1xf32>
    %52 = vector.broadcast %51 : vector<8x1xf32> to vector<8x8xf32>
    %53 = arith.subf %49, %52 : vector<8x8xf32>
    %54 = math.exp %53 : vector<8x8xf32>
    %cst_25 = arith.constant dense<0.000000e+00> : vector<8xf32>
    %55 = vector.multi_reduction <add>, %54, %cst_25 [1] : vector<8x8xf32> to vector<8xf32>
    %56 = vector.shape_cast %55 : vector<8xf32> to vector<8x1xf32>
    %57 = tpu.reciprocal %56 {approx = true} : vector<8x1xf32> -> vector<8x1xf32>
    %58 = vector.broadcast %57 : vector<8x1xf32> to vector<8x8xf32>
    %59 = arith.mulf %54, %58 : vector<8x8xf32>
    %60 = arith.truncf %59 : vector<8x8xf32> to vector<8x8xbf16>
    %cst_26 = arith.constant dense<0.000000e+00> : vector<8x8xf32>
    %61 = tpu.matmul %60, %44, %cst_26 {dimension_numbers = #tpu.dot_dimension_numbers<[1], [0], [0], [1], [0, 0, 1, 1], [], []>} : vector<8x8xbf16>, vector<8x8xbf16>, vector<8x8xf32> -> vector<8x8xf32>
    %62 = vector.extract_strided_slice %15 {offsets = [0, 16], sizes = [8, 8], strides = [1, 1]} : vector<8x32xf32> to vector<8x8xf32>
    %63 = arith.truncf %62 : vector<8x8xf32> to vector<8x8xbf16>
    %64 = vector.extract_strided_slice %12 {offsets = [0, 16], sizes = [8, 8], strides = [1, 1]} : vector<8x32xf32> to vector<8x8xf32>
    %65 = arith.truncf %64 : vector<8x8xf32> to vector<8x8xbf16>
    %66 = vector.extract_strided_slice %13 {offsets = [0, 16], sizes = [8, 8], strides = [1, 1]} : vector<8x32xf32> to vector<8x8xf32>
    %67 = arith.truncf %66 : vector<8x8xf32> to vector<8x8xbf16>
    %cst_27 = arith.constant dense<0.000000e+00> : vector<8x8xf32>
    %68 = tpu.matmul %63, %65, %cst_27 {dimension_numbers = #tpu.dot_dimension_numbers<[1], [1], [0], [0], [0, 0, 1, 0], [], []>} : vector<8x8xbf16>, vector<8x8xbf16>, vector<8x8xf32> -> vector<8x8xf32>
    %cst_28 = arith.constant 0.000000e+00 : f32
    %69 = vector.broadcast %cst_28 : f32 to vector<8x8xf32>
    %70 = arith.cmpf oeq, %8, %69 : vector<8x8xf32>
    %cst_29 = arith.constant -1.000000e+20 : f32
    %71 = vector.broadcast %cst_29 : f32 to vector<8x8xf32>
    %72 = arith.select %70, %71, %68 : vector<8x8xi1>, vector<8x8xf32>
    %cst_30 = arith.constant dense<0xFF800000> : vector<8xf32>
    %73 = vector.multi_reduction <maximumf>, %72, %cst_30 [1] : vector<8x8xf32> to vector<8xf32>
    %74 = vector.shape_cast %73 : vector<8xf32> to vector<8x1xf32>
    %75 = vector.broadcast %74 : vector<8x1xf32> to vector<8x8xf32>
    %76 = arith.subf %72, %75 : vector<8x8xf32>
    %77 = math.exp %76 : vector<8x8xf32>
    %cst_31 = arith.constant dense<0.000000e+00> : vector<8xf32>
    %78 = vector.multi_reduction <add>, %77, %cst_31 [1] : vector<8x8xf32> to vector<8xf32>
    %79 = vector.shape_cast %78 : vector<8xf32> to vector<8x1xf32>
    %80 = tpu.reciprocal %79 {approx = true} : vector<8x1xf32> -> vector<8x1xf32>
    %81 = vector.broadcast %80 : vector<8x1xf32> to vector<8x8xf32>
    %82 = arith.mulf %77, %81 : vector<8x8xf32>
    %83 = arith.truncf %82 : vector<8x8xf32> to vector<8x8xbf16>
    %cst_32 = arith.constant dense<0.000000e+00> : vector<8x8xf32>
    %84 = tpu.matmul %83, %67, %cst_32 {dimension_numbers = #tpu.dot_dimension_numbers<[1], [0], [0], [1], [0, 0, 1, 1], [], []>} : vector<8x8xbf16>, vector<8x8xbf16>, vector<8x8xf32> -> vector<8x8xf32>
    %85 = vector.extract_strided_slice %15 {offsets = [0, 24], sizes = [8, 8], strides = [1, 1]} : vector<8x32xf32> to vector<8x8xf32>
    %86 = arith.truncf %85 : vector<8x8xf32> to vector<8x8xbf16>
    %87 = vector.extract_strided_slice %12 {offsets = [0, 24], sizes = [8, 8], strides = [1, 1]} : vector<8x32xf32> to vector<8x8xf32>
    %88 = arith.truncf %87 : vector<8x8xf32> to vector<8x8xbf16>
    %89 = vector.extract_strided_slice %13 {offsets = [0, 24], sizes = [8, 8], strides = [1, 1]} : vector<8x32xf32> to vector<8x8xf32>
    %90 = arith.truncf %89 : vector<8x8xf32> to vector<8x8xbf16>
    %cst_33 = arith.constant dense<0.000000e+00> : vector<8x8xf32>
    %91 = tpu.matmul %86, %88, %cst_33 {dimension_numbers = #tpu.dot_dimension_numbers<[1], [1], [0], [0], [0, 0, 1, 0], [], []>} : vector<8x8xbf16>, vector<8x8xbf16>, vector<8x8xf32> -> vector<8x8xf32>
    %cst_34 = arith.constant 0.000000e+00 : f32
    %92 = vector.broadcast %cst_34 : f32 to vector<8x8xf32>
    %93 = arith.cmpf oeq, %8, %92 : vector<8x8xf32>
    %cst_35 = arith.constant -1.000000e+20 : f32
    %94 = vector.broadcast %cst_35 : f32 to vector<8x8xf32>
    %95 = arith.select %93, %94, %91 : vector<8x8xi1>, vector<8x8xf32>
    %cst_36 = arith.constant dense<0xFF800000> : vector<8xf32>
    %96 = vector.multi_reduction <maximumf>, %95, %cst_36 [1] : vector<8x8xf32> to vector<8xf32>
    %97 = vector.shape_cast %96 : vector<8xf32> to vector<8x1xf32>
    %98 = vector.broadcast %97 : vector<8x1xf32> to vector<8x8xf32>
    %99 = arith.subf %95, %98 : vector<8x8xf32>
    %100 = math.exp %99 : vector<8x8xf32>
    %cst_37 = arith.constant dense<0.000000e+00> : vector<8xf32>
    %101 = vector.multi_reduction <add>, %100, %cst_37 [1] : vector<8x8xf32> to vector<8xf32>
    %102 = vector.shape_cast %101 : vector<8xf32> to vector<8x1xf32>
    %103 = tpu.reciprocal %102 {approx = true} : vector<8x1xf32> -> vector<8x1xf32>
    %104 = vector.broadcast %103 : vector<8x1xf32> to vector<8x8xf32>
    %105 = arith.mulf %100, %104 : vector<8x8xf32>
    %106 = arith.truncf %105 : vector<8x8xf32> to vector<8x8xbf16>
    %cst_38 = arith.constant dense<0.000000e+00> : vector<8x8xf32>
    %107 = tpu.matmul %106, %90, %cst_38 {dimension_numbers = #tpu.dot_dimension_numbers<[1], [0], [0], [1], [0, 0, 1, 1], [], []>} : vector<8x8xbf16>, vector<8x8xbf16>, vector<8x8xf32> -> vector<8x8xf32>
    %108 = tpu.concatenate %38, %61, %84, %107 in 1 : vector<8x8xf32>, vector<8x8xf32>, vector<8x8xf32>, vector<8x8xf32> -> vector<8x32xf32>
    %109 = arith.truncf %108 : vector<8x32xf32> to vector<8x32xbf16>
    %cst_39 = arith.constant dense<0.000000e+00> : vector<8x32xf32>
    %110 = tpu.matmul %109, %5, %cst_39 {dimension_numbers = #tpu.dot_dimension_numbers<[1], [0], [0], [1], [0, 0, 1, 1], [], []>} : vector<8x32xbf16>, vector<32x32xbf16>, vector<8x32xf32> -> vector<8x32xf32>
    %111 = vector.broadcast %6 : vector<1x32xf32> to vector<8x32xf32>
    %112 = arith.addf %110, %111 : vector<8x32xf32>
    %113 = arith.addf %112, %1 : vector<8x32xf32>
    %c0_40 = arith.constant 0 : index
    %c0_41 = arith.constant 0 : index
    %114 = vector.load %arg8[%c0_40, %c0_41] : memref<1x32xf32, #tpu.memory_space<vmem>>, vector<1x32xf32>
    %c0_42 = arith.constant 0 : index
    %c0_43 = arith.constant 0 : index
    %115 = vector.load %arg9[%c0_42, %c0_43] : memref<1x32xf32, #tpu.memory_space<vmem>>, vector<1x32xf32>
    %cst_44 = arith.constant dense<0.000000e+00> : vector<8xf32>
    %116 = vector.multi_reduction <add>, %113, %cst_44 [1] : vector<8x32xf32> to vector<8xf32>
    %117 = vector.shape_cast %116 : vector<8xf32> to vector<8x1xf32>
    %cst_45 = arith.constant 3.200000e+01 : f32
    %118 = vector.broadcast %cst_45 : f32 to vector<8x1xf32>
    %119 = arith.divf %117, %118 : vector<8x1xf32>
    %120 = vector.broadcast %119 : vector<8x1xf32> to vector<8x32xf32>
    %121 = arith.subf %113, %120 : vector<8x32xf32>
    %122 = arith.mulf %121, %121 : vector<8x32xf32>
    %cst_46 = arith.constant dense<0.000000e+00> : vector<8xf32>
    %123 = vector.multi_reduction <add>, %122, %cst_46 [1] : vector<8x32xf32> to vector<8xf32>
    %124 = vector.shape_cast %123 : vector<8xf32> to vector<8x1xf32>
    %cst_47 = arith.constant 3.200000e+01 : f32
    %125 = vector.broadcast %cst_47 : f32 to vector<8x1xf32>
    %126 = arith.divf %124, %125 : vector<8x1xf32>
    %127 = vector.broadcast %119 : vector<8x1xf32> to vector<8x32xf32>
    %128 = arith.subf %113, %127 : vector<8x32xf32>
    %cst_48 = arith.constant 9.99999974E-6 : f32
    %129 = vector.broadcast %cst_48 : f32 to vector<8x1xf32>
    %130 = arith.addf %126, %129 : vector<8x1xf32>
    %131 = math.rsqrt %130 : vector<8x1xf32>
    %132 = vector.broadcast %131 : vector<8x1xf32> to vector<8x32xf32>
    %133 = arith.mulf %128, %132 : vector<8x32xf32>
    %134 = vector.broadcast %114 : vector<1x32xf32> to vector<8x32xf32>
    %135 = arith.mulf %133, %134 : vector<8x32xf32>
    %136 = vector.broadcast %115 : vector<1x32xf32> to vector<8x32xf32>
    %137 = arith.addf %135, %136 : vector<8x32xf32>
    %c0_49 = arith.constant 0 : index
    %c0_50 = arith.constant 0 : index
    %138 = vector.load %arg10[%c0_49, %c0_50] : memref<32x96xbf16, #tpu.memory_space<vmem>>, vector<32x96xbf16>
    %c0_51 = arith.constant 0 : index
    %c0_52 = arith.constant 0 : index
    %139 = vector.load %arg11[%c0_51, %c0_52] : memref<32x32xbf16, #tpu.memory_space<vmem>>, vector<32x32xbf16>
    %c0_53 = arith.constant 0 : index
    %c0_54 = arith.constant 0 : index
    %140 = vector.load %arg12[%c0_53, %c0_54] : memref<1x32xf32, #tpu.memory_space<vmem>>, vector<1x32xf32>
    %c0_55 = arith.constant 0 : index
    %c0_56 = arith.constant 0 : index
    %c0_57 = arith.constant 0 : index
    %141 = vector.load %arg4[%c0_55, %c0_56, %c0_57] : memref<1x8x8xf32, #tpu.memory_space<vmem>>, vector<1x8x8xf32>
    %142 = vector.shape_cast %141 : vector<1x8x8xf32> to vector<8x8xf32>
    %143 = arith.truncf %137 : vector<8x32xf32> to vector<8x32xbf16>
    %144 = vector.extract_strided_slice %138 {offsets = [0, 0], sizes = [32, 32], strides = [1, 1]} : vector<32x96xbf16> to vector<32x32xbf16>
    %cst_58 = arith.constant dense<0.000000e+00> : vector<8x32xf32>
    %145 = tpu.matmul %143, %144, %cst_58 {dimension_numbers = #tpu.dot_dimension_numbers<[1], [0], [0], [1], [0, 0, 1, 1], [], []>} : vector<8x32xbf16>, vector<32x32xbf16>, vector<8x32xf32> -> vector<8x32xf32>
    %146 = arith.truncf %3 : vector<8x32xf32> to vector<8x32xbf16>
    %147 = vector.extract_strided_slice %138 {offsets = [0, 32], sizes = [32, 64], strides = [1, 1]} : vector<32x96xbf16> to vector<32x64xbf16>
    %cst_59 = arith.constant dense<0.000000e+00> : vector<8x64xf32>
    %148 = tpu.matmul %146, %147, %cst_59 {dimension_numbers = #tpu.dot_dimension_numbers<[1], [0], [0], [1], [0, 0, 1, 1], [], []>} : vector<8x32xbf16>, vector<32x64xbf16>, vector<8x64xf32> -> vector<8x64xf32>
    %149 = vector.extract_strided_slice %148 {offsets = [0, 0], sizes = [8, 32], strides = [1, 1]} : vector<8x64xf32> to vector<8x32xf32>
    %150 = vector.extract_strided_slice %148 {offsets = [0, 32], sizes = [8, 32], strides = [1, 1]} : vector<8x64xf32> to vector<8x32xf32>
    %cst_60 = arith.constant 0.353553385 : f32
    %151 = vector.broadcast %cst_60 : f32 to vector<8x32xf32>
    %152 = arith.mulf %145, %151 : vector<8x32xf32>
    %153 = vector.extract_strided_slice %152 {offsets = [0, 0], sizes = [8, 8], strides = [1, 1]} : vector<8x32xf32> to vector<8x8xf32>
    %154 = arith.truncf %153 : vector<8x8xf32> to vector<8x8xbf16>
    %155 = vector.extract_strided_slice %149 {offsets = [0, 0], sizes = [8, 8], strides = [1, 1]} : vector<8x32xf32> to vector<8x8xf32>
    %156 = arith.truncf %155 : vector<8x8xf32> to vector<8x8xbf16>
    %157 = vector.extract_strided_slice %150 {offsets = [0, 0], sizes = [8, 8], strides = [1, 1]} : vector<8x32xf32> to vector<8x8xf32>
    %158 = arith.truncf %157 : vector<8x8xf32> to vector<8x8xbf16>
    %cst_61 = arith.constant dense<0.000000e+00> : vector<8x8xf32>
    %159 = tpu.matmul %154, %156, %cst_61 {dimension_numbers = #tpu.dot_dimension_numbers<[1], [1], [0], [0], [0, 0, 1, 0], [], []>} : vector<8x8xbf16>, vector<8x8xbf16>, vector<8x8xf32> -> vector<8x8xf32>
    %cst_62 = arith.constant 0.000000e+00 : f32
    %160 = vector.broadcast %cst_62 : f32 to vector<8x8xf32>
    %161 = arith.cmpf oeq, %142, %160 : vector<8x8xf32>
    %cst_63 = arith.constant -1.000000e+20 : f32
    %162 = vector.broadcast %cst_63 : f32 to vector<8x8xf32>
    %163 = arith.select %161, %162, %159 : vector<8x8xi1>, vector<8x8xf32>
    %cst_64 = arith.constant dense<0xFF800000> : vector<8xf32>
    %164 = vector.multi_reduction <maximumf>, %163, %cst_64 [1] : vector<8x8xf32> to vector<8xf32>
    %165 = vector.shape_cast %164 : vector<8xf32> to vector<8x1xf32>
    %166 = vector.broadcast %165 : vector<8x1xf32> to vector<8x8xf32>
    %167 = arith.subf %163, %166 : vector<8x8xf32>
    %168 = math.exp %167 : vector<8x8xf32>
    %cst_65 = arith.constant dense<0.000000e+00> : vector<8xf32>
    %169 = vector.multi_reduction <add>, %168, %cst_65 [1] : vector<8x8xf32> to vector<8xf32>
    %170 = vector.shape_cast %169 : vector<8xf32> to vector<8x1xf32>
    %171 = tpu.reciprocal %170 {approx = true} : vector<8x1xf32> -> vector<8x1xf32>
    %172 = vector.broadcast %171 : vector<8x1xf32> to vector<8x8xf32>
    %173 = arith.mulf %168, %172 : vector<8x8xf32>
    %174 = arith.truncf %173 : vector<8x8xf32> to vector<8x8xbf16>
    %cst_66 = arith.constant dense<0.000000e+00> : vector<8x8xf32>
    %175 = tpu.matmul %174, %158, %cst_66 {dimension_numbers = #tpu.dot_dimension_numbers<[1], [0], [0], [1], [0, 0, 1, 1], [], []>} : vector<8x8xbf16>, vector<8x8xbf16>, vector<8x8xf32> -> vector<8x8xf32>
    %176 = vector.extract_strided_slice %152 {offsets = [0, 8], sizes = [8, 8], strides = [1, 1]} : vector<8x32xf32> to vector<8x8xf32>
    %177 = arith.truncf %176 : vector<8x8xf32> to vector<8x8xbf16>
    %178 = vector.extract_strided_slice %149 {offsets = [0, 8], sizes = [8, 8], strides = [1, 1]} : vector<8x32xf32> to vector<8x8xf32>
    %179 = arith.truncf %178 : vector<8x8xf32> to vector<8x8xbf16>
    %180 = vector.extract_strided_slice %150 {offsets = [0, 8], sizes = [8, 8], strides = [1, 1]} : vector<8x32xf32> to vector<8x8xf32>
    %181 = arith.truncf %180 : vector<8x8xf32> to vector<8x8xbf16>
    %cst_67 = arith.constant dense<0.000000e+00> : vector<8x8xf32>
    %182 = tpu.matmul %177, %179, %cst_67 {dimension_numbers = #tpu.dot_dimension_numbers<[1], [1], [0], [0], [0, 0, 1, 0], [], []>} : vector<8x8xbf16>, vector<8x8xbf16>, vector<8x8xf32> -> vector<8x8xf32>
    %cst_68 = arith.constant 0.000000e+00 : f32
    %183 = vector.broadcast %cst_68 : f32 to vector<8x8xf32>
    %184 = arith.cmpf oeq, %142, %183 : vector<8x8xf32>
    %cst_69 = arith.constant -1.000000e+20 : f32
    %185 = vector.broadcast %cst_69 : f32 to vector<8x8xf32>
    %186 = arith.select %184, %185, %182 : vector<8x8xi1>, vector<8x8xf32>
    %cst_70 = arith.constant dense<0xFF800000> : vector<8xf32>
    %187 = vector.multi_reduction <maximumf>, %186, %cst_70 [1] : vector<8x8xf32> to vector<8xf32>
    %188 = vector.shape_cast %187 : vector<8xf32> to vector<8x1xf32>
    %189 = vector.broadcast %188 : vector<8x1xf32> to vector<8x8xf32>
    %190 = arith.subf %186, %189 : vector<8x8xf32>
    %191 = math.exp %190 : vector<8x8xf32>
    %cst_71 = arith.constant dense<0.000000e+00> : vector<8xf32>
    %192 = vector.multi_reduction <add>, %191, %cst_71 [1] : vector<8x8xf32> to vector<8xf32>
    %193 = vector.shape_cast %192 : vector<8xf32> to vector<8x1xf32>
    %194 = tpu.reciprocal %193 {approx = true} : vector<8x1xf32> -> vector<8x1xf32>
    %195 = vector.broadcast %194 : vector<8x1xf32> to vector<8x8xf32>
    %196 = arith.mulf %191, %195 : vector<8x8xf32>
    %197 = arith.truncf %196 : vector<8x8xf32> to vector<8x8xbf16>
    %cst_72 = arith.constant dense<0.000000e+00> : vector<8x8xf32>
    %198 = tpu.matmul %197, %181, %cst_72 {dimension_numbers = #tpu.dot_dimension_numbers<[1], [0], [0], [1], [0, 0, 1, 1], [], []>} : vector<8x8xbf16>, vector<8x8xbf16>, vector<8x8xf32> -> vector<8x8xf32>
    %199 = vector.extract_strided_slice %152 {offsets = [0, 16], sizes = [8, 8], strides = [1, 1]} : vector<8x32xf32> to vector<8x8xf32>
    %200 = arith.truncf %199 : vector<8x8xf32> to vector<8x8xbf16>
    %201 = vector.extract_strided_slice %149 {offsets = [0, 16], sizes = [8, 8], strides = [1, 1]} : vector<8x32xf32> to vector<8x8xf32>
    %202 = arith.truncf %201 : vector<8x8xf32> to vector<8x8xbf16>
    %203 = vector.extract_strided_slice %150 {offsets = [0, 16], sizes = [8, 8], strides = [1, 1]} : vector<8x32xf32> to vector<8x8xf32>
    %204 = arith.truncf %203 : vector<8x8xf32> to vector<8x8xbf16>
    %cst_73 = arith.constant dense<0.000000e+00> : vector<8x8xf32>
    %205 = tpu.matmul %200, %202, %cst_73 {dimension_numbers = #tpu.dot_dimension_numbers<[1], [1], [0], [0], [0, 0, 1, 0], [], []>} : vector<8x8xbf16>, vector<8x8xbf16>, vector<8x8xf32> -> vector<8x8xf32>
    %cst_74 = arith.constant 0.000000e+00 : f32
    %206 = vector.broadcast %cst_74 : f32 to vector<8x8xf32>
    %207 = arith.cmpf oeq, %142, %206 : vector<8x8xf32>
    %cst_75 = arith.constant -1.000000e+20 : f32
    %208 = vector.broadcast %cst_75 : f32 to vector<8x8xf32>
    %209 = arith.select %207, %208, %205 : vector<8x8xi1>, vector<8x8xf32>
    %cst_76 = arith.constant dense<0xFF800000> : vector<8xf32>
    %210 = vector.multi_reduction <maximumf>, %209, %cst_76 [1] : vector<8x8xf32> to vector<8xf32>
    %211 = vector.shape_cast %210 : vector<8xf32> to vector<8x1xf32>
    %212 = vector.broadcast %211 : vector<8x1xf32> to vector<8x8xf32>
    %213 = arith.subf %209, %212 : vector<8x8xf32>
    %214 = math.exp %213 : vector<8x8xf32>
    %cst_77 = arith.constant dense<0.000000e+00> : vector<8xf32>
    %215 = vector.multi_reduction <add>, %214, %cst_77 [1] : vector<8x8xf32> to vector<8xf32>
    %216 = vector.shape_cast %215 : vector<8xf32> to vector<8x1xf32>
    %217 = tpu.reciprocal %216 {approx = true} : vector<8x1xf32> -> vector<8x1xf32>
    %218 = vector.broadcast %217 : vector<8x1xf32> to vector<8x8xf32>
    %219 = arith.mulf %214, %218 : vector<8x8xf32>
    %220 = arith.truncf %219 : vector<8x8xf32> to vector<8x8xbf16>
    %cst_78 = arith.constant dense<0.000000e+00> : vector<8x8xf32>
    %221 = tpu.matmul %220, %204, %cst_78 {dimension_numbers = #tpu.dot_dimension_numbers<[1], [0], [0], [1], [0, 0, 1, 1], [], []>} : vector<8x8xbf16>, vector<8x8xbf16>, vector<8x8xf32> -> vector<8x8xf32>
    %222 = vector.extract_strided_slice %152 {offsets = [0, 24], sizes = [8, 8], strides = [1, 1]} : vector<8x32xf32> to vector<8x8xf32>
    %223 = arith.truncf %222 : vector<8x8xf32> to vector<8x8xbf16>
    %224 = vector.extract_strided_slice %149 {offsets = [0, 24], sizes = [8, 8], strides = [1, 1]} : vector<8x32xf32> to vector<8x8xf32>
    %225 = arith.truncf %224 : vector<8x8xf32> to vector<8x8xbf16>
    %226 = vector.extract_strided_slice %150 {offsets = [0, 24], sizes = [8, 8], strides = [1, 1]} : vector<8x32xf32> to vector<8x8xf32>
    %227 = arith.truncf %226 : vector<8x8xf32> to vector<8x8xbf16>
    %cst_79 = arith.constant dense<0.000000e+00> : vector<8x8xf32>
    %228 = tpu.matmul %223, %225, %cst_79 {dimension_numbers = #tpu.dot_dimension_numbers<[1], [1], [0], [0], [0, 0, 1, 0], [], []>} : vector<8x8xbf16>, vector<8x8xbf16>, vector<8x8xf32> -> vector<8x8xf32>
    %cst_80 = arith.constant 0.000000e+00 : f32
    %229 = vector.broadcast %cst_80 : f32 to vector<8x8xf32>
    %230 = arith.cmpf oeq, %142, %229 : vector<8x8xf32>
    %cst_81 = arith.constant -1.000000e+20 : f32
    %231 = vector.broadcast %cst_81 : f32 to vector<8x8xf32>
    %232 = arith.select %230, %231, %228 : vector<8x8xi1>, vector<8x8xf32>
    %cst_82 = arith.constant dense<0xFF800000> : vector<8xf32>
    %233 = vector.multi_reduction <maximumf>, %232, %cst_82 [1] : vector<8x8xf32> to vector<8xf32>
    %234 = vector.shape_cast %233 : vector<8xf32> to vector<8x1xf32>
    %235 = vector.broadcast %234 : vector<8x1xf32> to vector<8x8xf32>
    %236 = arith.subf %232, %235 : vector<8x8xf32>
    %237 = math.exp %236 : vector<8x8xf32>
    %cst_83 = arith.constant dense<0.000000e+00> : vector<8xf32>
    %238 = vector.multi_reduction <add>, %237, %cst_83 [1] : vector<8x8xf32> to vector<8xf32>
    %239 = vector.shape_cast %238 : vector<8xf32> to vector<8x1xf32>
    %240 = tpu.reciprocal %239 {approx = true} : vector<8x1xf32> -> vector<8x1xf32>
    %241 = vector.broadcast %240 : vector<8x1xf32> to vector<8x8xf32>
    %242 = arith.mulf %237, %241 : vector<8x8xf32>
    %243 = arith.truncf %242 : vector<8x8xf32> to vector<8x8xbf16>
    %cst_84 = arith.constant dense<0.000000e+00> : vector<8x8xf32>
    %244 = tpu.matmul %243, %227, %cst_84 {dimension_numbers = #tpu.dot_dimension_numbers<[1], [0], [0], [1], [0, 0, 1, 1], [], []>} : vector<8x8xbf16>, vector<8x8xbf16>, vector<8x8xf32> -> vector<8x8xf32>
    %245 = tpu.concatenate %175, %198, %221, %244 in 1 : vector<8x8xf32>, vector<8x8xf32>, vector<8x8xf32>, vector<8x8xf32> -> vector<8x32xf32>
    %246 = arith.truncf %245 : vector<8x32xf32> to vector<8x32xbf16>
    %cst_85 = arith.constant dense<0.000000e+00> : vector<8x32xf32>
    %247 = tpu.matmul %246, %139, %cst_85 {dimension_numbers = #tpu.dot_dimension_numbers<[1], [0], [0], [1], [0, 0, 1, 1], [], []>} : vector<8x32xbf16>, vector<32x32xbf16>, vector<8x32xf32> -> vector<8x32xf32>
    %248 = vector.broadcast %140 : vector<1x32xf32> to vector<8x32xf32>
    %249 = arith.addf %247, %248 : vector<8x32xf32>
    %250 = arith.addf %249, %137 : vector<8x32xf32>
    %c0_86 = arith.constant 0 : index
    %c0_87 = arith.constant 0 : index
    %251 = vector.load %arg13[%c0_86, %c0_87] : memref<1x32xf32, #tpu.memory_space<vmem>>, vector<1x32xf32>
    %c0_88 = arith.constant 0 : index
    %c0_89 = arith.constant 0 : index
    %252 = vector.load %arg14[%c0_88, %c0_89] : memref<1x32xf32, #tpu.memory_space<vmem>>, vector<1x32xf32>
    %cst_90 = arith.constant dense<0.000000e+00> : vector<8xf32>
    %253 = vector.multi_reduction <add>, %250, %cst_90 [1] : vector<8x32xf32> to vector<8xf32>
    %254 = vector.shape_cast %253 : vector<8xf32> to vector<8x1xf32>
    %cst_91 = arith.constant 3.200000e+01 : f32
    %255 = vector.broadcast %cst_91 : f32 to vector<8x1xf32>
    %256 = arith.divf %254, %255 : vector<8x1xf32>
    %257 = vector.broadcast %256 : vector<8x1xf32> to vector<8x32xf32>
    %258 = arith.subf %250, %257 : vector<8x32xf32>
    %259 = arith.mulf %258, %258 : vector<8x32xf32>
    %cst_92 = arith.constant dense<0.000000e+00> : vector<8xf32>
    %260 = vector.multi_reduction <add>, %259, %cst_92 [1] : vector<8x32xf32> to vector<8xf32>
    %261 = vector.shape_cast %260 : vector<8xf32> to vector<8x1xf32>
    %cst_93 = arith.constant 3.200000e+01 : f32
    %262 = vector.broadcast %cst_93 : f32 to vector<8x1xf32>
    %263 = arith.divf %261, %262 : vector<8x1xf32>
    %264 = vector.broadcast %256 : vector<8x1xf32> to vector<8x32xf32>
    %265 = arith.subf %250, %264 : vector<8x32xf32>
    %cst_94 = arith.constant 9.99999974E-6 : f32
    %266 = vector.broadcast %cst_94 : f32 to vector<8x1xf32>
    %267 = arith.addf %263, %266 : vector<8x1xf32>
    %268 = math.rsqrt %267 : vector<8x1xf32>
    %269 = vector.broadcast %268 : vector<8x1xf32> to vector<8x32xf32>
    %270 = arith.mulf %265, %269 : vector<8x32xf32>
    %271 = vector.broadcast %251 : vector<1x32xf32> to vector<8x32xf32>
    %272 = arith.mulf %270, %271 : vector<8x32xf32>
    %273 = vector.broadcast %252 : vector<1x32xf32> to vector<8x32xf32>
    %274 = arith.addf %272, %273 : vector<8x32xf32>
    %c0_95 = arith.constant 0 : index
    %c0_96 = arith.constant 0 : index
    %275 = vector.load %arg15[%c0_95, %c0_96] : memref<32x64xbf16, #tpu.memory_space<vmem>>, vector<32x64xbf16>
    %c0_97 = arith.constant 0 : index
    %c0_98 = arith.constant 0 : index
    %276 = vector.load %arg16[%c0_97, %c0_98] : memref<1x64xf32, #tpu.memory_space<vmem>>, vector<1x64xf32>
    %c0_99 = arith.constant 0 : index
    %c0_100 = arith.constant 0 : index
    %277 = vector.load %arg17[%c0_99, %c0_100] : memref<64x32xbf16, #tpu.memory_space<vmem>>, vector<64x32xbf16>
    %c0_101 = arith.constant 0 : index
    %c0_102 = arith.constant 0 : index
    %278 = vector.load %arg18[%c0_101, %c0_102] : memref<1x32xf32, #tpu.memory_space<vmem>>, vector<1x32xf32>
    %279 = arith.truncf %274 : vector<8x32xf32> to vector<8x32xbf16>
    %cst_103 = arith.constant dense<0.000000e+00> : vector<8x64xf32>
    %280 = tpu.matmul %279, %275, %cst_103 {dimension_numbers = #tpu.dot_dimension_numbers<[1], [0], [0], [1], [0, 0, 1, 1], [], []>} : vector<8x32xbf16>, vector<32x64xbf16>, vector<8x64xf32> -> vector<8x64xf32>
    %281 = vector.broadcast %276 : vector<1x64xf32> to vector<8x64xf32>
    %282 = arith.addf %280, %281 : vector<8x64xf32>
    %cst_104 = arith.constant 0.000000e+00 : f32
    %283 = vector.broadcast %cst_104 : f32 to vector<8x64xf32>
    %284 = arith.maximumf %282, %283 : vector<8x64xf32>
    %285 = arith.truncf %284 : vector<8x64xf32> to vector<8x64xbf16>
    %cst_105 = arith.constant dense<0.000000e+00> : vector<8x32xf32>
    %286 = tpu.matmul %285, %277, %cst_105 {dimension_numbers = #tpu.dot_dimension_numbers<[1], [0], [0], [1], [0, 0, 1, 1], [], []>} : vector<8x64xbf16>, vector<64x32xbf16>, vector<8x32xf32> -> vector<8x32xf32>
    %287 = vector.broadcast %278 : vector<1x32xf32> to vector<8x32xf32>
    %288 = arith.addf %286, %287 : vector<8x32xf32>
    %289 = arith.addf %288, %274 : vector<8x32xf32>
    %c0_106 = arith.constant 0 : index
    %c0_107 = arith.constant 0 : index
    %290 = vector.load %arg19[%c0_106, %c0_107] : memref<1x32xf32, #tpu.memory_space<vmem>>, vector<1x32xf32>
    %c0_108 = arith.constant 0 : index
    %c0_109 = arith.constant 0 : index
    %291 = vector.load %arg20[%c0_108, %c0_109] : memref<1x32xf32, #tpu.memory_space<vmem>>, vector<1x32xf32>
    %cst_110 = arith.constant dense<0.000000e+00> : vector<8xf32>
    %292 = vector.multi_reduction <add>, %289, %cst_110 [1] : vector<8x32xf32> to vector<8xf32>
    %293 = vector.shape_cast %292 : vector<8xf32> to vector<8x1xf32>
    %cst_111 = arith.constant 3.200000e+01 : f32
    %294 = vector.broadcast %cst_111 : f32 to vector<8x1xf32>
    %295 = arith.divf %293, %294 : vector<8x1xf32>
    %296 = vector.broadcast %295 : vector<8x1xf32> to vector<8x32xf32>
    %297 = arith.subf %289, %296 : vector<8x32xf32>
    %298 = arith.mulf %297, %297 : vector<8x32xf32>
    %cst_112 = arith.constant dense<0.000000e+00> : vector<8xf32>
    %299 = vector.multi_reduction <add>, %298, %cst_112 [1] : vector<8x32xf32> to vector<8xf32>
    %300 = vector.shape_cast %299 : vector<8xf32> to vector<8x1xf32>
    %cst_113 = arith.constant 3.200000e+01 : f32
    %301 = vector.broadcast %cst_113 : f32 to vector<8x1xf32>
    %302 = arith.divf %300, %301 : vector<8x1xf32>
    %303 = vector.broadcast %295 : vector<8x1xf32> to vector<8x32xf32>
    %304 = arith.subf %289, %303 : vector<8x32xf32>
    %cst_114 = arith.constant 9.99999974E-6 : f32
    %305 = vector.broadcast %cst_114 : f32 to vector<8x1xf32>
    %306 = arith.addf %302, %305 : vector<8x1xf32>
    %307 = math.rsqrt %306 : vector<8x1xf32>
    %308 = vector.broadcast %307 : vector<8x1xf32> to vector<8x32xf32>
    %309 = arith.mulf %304, %308 : vector<8x32xf32>
    %310 = vector.broadcast %290 : vector<1x32xf32> to vector<8x32xf32>
    %311 = arith.mulf %309, %310 : vector<8x32xf32>
    %312 = vector.broadcast %291 : vector<1x32xf32> to vector<8x32xf32>
    %313 = arith.addf %311, %312 : vector<8x32xf32>
    %c0_115 = arith.constant 0 : index
    %c0_116 = arith.constant 0 : index
    %c0_117 = arith.constant 0 : index
    %314 = vector.load %arg21[%c0_115, %c0_116, %c0_117] : memref<1x8x32xf32, #tpu.memory_space<vmem>>, vector<1x8x32xf32>
    %315 = vector.shape_cast %314 : vector<1x8x32xf32> to vector<8x32xf32>
    %316 = vector.shape_cast %313 : vector<8x32xf32> to vector<1x8x32xf32>
    tpu.vector_store %arg21[%c0_115, %c0_116, %c0_117], %316 {strides = array<i32>} : memref<1x8x32xf32, #tpu.memory_space<vmem>>, vector<1x8x32xf32>,
    return
  }
  func.func @transform_0(%arg0: i32) -> (i32, i32, i32) {
    %c0_i32 = arith.constant 0 : i32
    %c0_i32_0 = arith.constant 0 : i32
    %c0_i32_1 = arith.constant 0 : i32
    return %arg0, %c0_i32, %c0_i32_0 : i32, i32, i32
  }
  func.func @transform_1(%arg0: i32) -> (i32, i32, i32) {
    %c0_i32 = arith.constant 0 : i32
    %c0_i32_0 = arith.constant 0 : i32
    %c0_i32_1 = arith.constant 0 : i32
    return %arg0, %c0_i32, %c0_i32_0 : i32, i32, i32
  }
  func.func @transform_2(%arg0: i32) -> (i32, i32, i32) {
    %c0_i32 = arith.constant 0 : i32
    %c0_i32_0 = arith.constant 0 : i32
    %c0_i32_1 = arith.constant 0 : i32
    return %arg0, %c0_i32, %c0_i32_0 : i32, i32, i32
  }
  func.func @transform_3(%arg0: i32) -> (i32, i32, i32) {
    %c0_i32 = arith.constant 0 : i32
    %c0_i32_0 = arith.constant 0 : i32
    %c0_i32_1 = arith.constant 0 : i32
    return %arg0, %c0_i32, %c0_i32_0 : i32, i32, i32
  }
  func.func @transform_4(%arg0: i32) -> (i32, i32) {
    %c0_i32 = arith.constant 0 : i32
    %c0_i32_0 = arith.constant 0 : i32
    %c0_i32_1 = arith.constant 0 : i32
    return %c0_i32, %c0_i32_0 : i32, i32
  }
  func.func @transform_5(%arg0: i32) -> (i32, i32) {
    %c0_i32 = arith.constant 0 : i32
    %c0_i32_0 = arith.constant 0 : i32
    %c0_i32_1 = arith.constant 0 : i32
    return %c0_i32, %c0_i32_0 : i32, i32
  }
  func.func @transform_6(%arg0: i32) -> (i32, i32) {
    %c0_i32 = arith.constant 0 : i32
    %c0_i32_0 = arith.constant 0 : i32
    %c0_i32_1 = arith.constant 0 : i32
    return %c0_i32, %c0_i32_0 : i32, i32
  }
  func.func @transform_7(%arg0: i32) -> (i32, i32) {
    %c0_i32 = arith.constant 0 : i32
    %c0_i32_0 = arith.constant 0 : i32
    %c0_i32_1 = arith.constant 0 : i32
    return %c0_i32, %c0_i32_0 : i32, i32
  }
  func.func @transform_8(%arg0: i32) -> (i32, i32) {
    %c0_i32 = arith.constant 0 : i32
    %c0_i32_0 = arith.constant 0 : i32
    %c0_i32_1 = arith.constant 0 : i32
    return %c0_i32, %c0_i32_0 : i32, i32
  }
  func.func @transform_9(%arg0: i32) -> (i32, i32) {
    %c0_i32 = arith.constant 0 : i32
    %c0_i32_0 = arith.constant 0 : i32
    %c0_i32_1 = arith.constant 0 : i32
    return %c0_i32, %c0_i32_0 : i32, i32
  }
  func.func @transform_10(%arg0: i32) -> (i32, i32) {
    %c0_i32 = arith.constant 0 : i32
    %c0_i32_0 = arith.constant 0 : i32
    %c0_i32_1 = arith.constant 0 : i32
    return %c0_i32, %c0_i32_0 : i32, i32
  }
  func.func @transform_11(%arg0: i32) -> (i32, i32) {
    %c0_i32 = arith.constant 0 : i32
    %c0_i32_0 = arith.constant 0 : i32
    %c0_i32_1 = arith.constant 0 : i32
    return %c0_i32, %c0_i32_0 : i32, i32
  }
  func.func @transform_12(%arg0: i32) -> (i32, i32) {
    %c0_i32 = arith.constant 0 : i32
    %c0_i32_0 = arith.constant 0 : i32
    %c0_i32_1 = arith.constant 0 : i32
    return %c0_i32, %c0_i32_0 : i32, i32
  }
  func.func @transform_13(%arg0: i32) -> (i32, i32) {
    %c0_i32 = arith.constant 0 : i32
    %c0_i32_0 = arith.constant 0 : i32
    %c0_i32_1 = arith.constant 0 : i32
    return %c0_i32, %c0_i32_0 : i32, i32
  }
  func.func @transform_14(%arg0: i32) -> (i32, i32) {
    %c0_i32 = arith.constant 0 : i32
    %c0_i32_0 = arith.constant 0 : i32
    %c0_i32_1 = arith.constant 0 : i32
    return %c0_i32, %c0_i32_0 : i32, i32
  }
  func.func @transform_15(%arg0: i32) -> (i32, i32) {
    %c0_i32 = arith.constant 0 : i32
    %c0_i32_0 = arith.constant 0 : i32
    %c0_i32_1 = arith.constant 0 : i32
    return %c0_i32, %c0_i32_0 : i32, i32
  }
  func.func @transform_16(%arg0: i32) -> (i32, i32) {
    %c0_i32 = arith.constant 0 : i32
    %c0_i32_0 = arith.constant 0 : i32
    %c0_i32_1 = arith.constant 0 : i32
    return %c0_i32, %c0_i32_0 : i32, i32
  }
  func.func @transform_17(%arg0: i32) -> (i32, i32) {
    %c0_i32 = arith.constant 0 : i32
    %c0_i32_0 = arith.constant 0 : i32
    %c0_i32_1 = arith.constant 0 : i32
    return %c0_i32, %c0_i32_0 : i32, i32
  }
  func.func @transform_18(%arg0: i32) -> (i32, i32) {
    %c0_i32 = arith.constant 0 : i32
    %c0_i32_0 = arith.constant 0 : i32
    %c0_i32_1 = arith.constant 0 : i32
    return %c0_i32, %c0_i32_0 : i32, i32
  }
  func.func @transform_19(%arg0: i32) -> (i32, i32) {
    %c0_i32 = arith.constant 0 : i32
    %c0_i32_0 = arith.constant 0 : i32
    %c0_i32_1 = arith.constant 0 : i32
    return %c0_i32, %c0_i32_0 : i32, i32
  }
  func.func @transform_20(%arg0: i32) -> (i32, i32, i32) {
    %c0_i32 = arith.constant 0 : i32
    %c0_i32_0 = arith.constant 0 : i32
    %c0_i32_1 = arith.constant 0 : i32
    return %arg0, %c0_i32, %c0_i32_0 : i32, i32, i32
  }
}

</mosaic_0001>

<llo_original>
// kernel: transformer_fwd.9
$region0: #{transformer_fwd.9}
  #allocation0 [shape = 'u32[]', space=smem, size = 0x4, offset = 0x4, fixed_abs, tag = 'smem constant byte address 0x4 - core index']
  #allocation1 [shape = 'u32[144,128]{1,0:T(1,128)}', space=vmem, size = 0x12000, scoped, tag = 'internal scratch']
  %s0 = inlined_call_operand.vmem [shape: f32[16,32], index: 0, kind: input, shape index: {}]
  %s1 = inlined_call_operand.vmem [shape: bf16[32,60], index: 1, kind: input, shape index: {}]
  %s2 = inlined_call_operand.vmem [shape: f32[1,60], index: 2, kind: input, shape index: {}]
  %s3 = inlined_call_operand.hbm [shape: f32[16,60], index: 3, kind: output, shape index: {}]
  %s4 = sld [smem:[#allocation0]]
  $region22: #{transformer_fwd.9} parent=0
    _
  %s6 = ssub.s32 1, %s4
  %s7 = scalar_select 0, %s6, %s4
  $region1: #{transformer_fwd.9} parent=0
    #allocation2 [shape = 'u8[8192]{0}', space=vmem, size = 0x2000, scoped, tag = 'output window, operand 0, single buffered']
    #allocation3 [shape = 's32[1]{0}', space=sflag, size = 0x4, scoped, tag = 'scoped memory for transformer_fwd.9']
    %8 = vsyncpa [#allocation3], 0
    // Predicated region
    $region2: #{transformer_fwd.9} parent=1 // pred_check
      _
    $region3: #{transformer_fwd.9} parent=1 // pred_check_branch
      %10 = sbr.rel (0) target = $region5
    $region4: #{transformer_fwd.9} parent=1 // pred_region
      _
    $region5: #{transformer_fwd.9} parent=1 // pred_fallthru
      _
    // Predicated region
    $region6: #{transformer_fwd.9} parent=1 // pred_check
      _
    $region7: #{transformer_fwd.9} parent=1 // pred_check_branch
      %12 = sbr.rel (0) target = $region9
    $region8: #{transformer_fwd.9} parent=1 // pred_region
      _
    $region9: #{transformer_fwd.9} parent=1 // pred_fallthru
      _
    // Predicated region
    $region10: #{transformer_fwd.9} parent=1 // pred_check
      _
    $region11: #{transformer_fwd.9} parent=1 // pred_check_branch
      %14 = sbr.rel (0) target = $region13
    $region12: #{transformer_fwd.9} parent=1 // pred_region
      _
    $region13: #{transformer_fwd.9} parent=1 // pred_fallthru
      _
    %v16 = vld [vmem:[%s0] sm:$0xff]
    %v17 = vld [vmem:[%s0 + $0x8] sm:$0xff]
    %v18 = vpack.c.bf16 %v17, %v16
    %v19 = vld [vmem:[%s1] sm:$0xf]
    %v20 = vld [vmem:[%s1 + $0x4] sm:$0xf]
    %v21 = vld [vmem:[%s1 + $0x8] sm:$0xf]
    %v22 = vld [vmem:[%s1 + $0xc] sm:$0xf]
    %v23 = vld [vmem:[%s2] sm:$0x1]
    %v25 = vlaneseq
    %v26 = vshrl.u32 %v25, 7
    %v27 = vsub.s32 0, %v26
    %v28 = vrot.slane %v23, %v27
    %v34 = vunpack.c.l.b16 %v19
    %v35 = vunpack.c.l.b16 %v20
    %v36 = vunpack.c.l.b16 %v21
    %v37 = vunpack.c.l.b16 %v22
    %v38 = vpack.c.b16 %v35, %v34
    %v39 = vpack.c.b16 %v37, %v36
    %vm42 = vcmask 261120
    %v44 = vsel %vm42, %v18, 0
    %46 = vmatprep.subr.bf16.mxu0 0
    %47 = vmatpush1.bf16.msra.mxu0 %v38
    %48 = vmatprep.subr.bf16.mxu0 0
    %49 = vmatpush1.bf16.msra.mxu0 %v39
    %50 = vmatprep.subr.bf16.mxu0 0
    %51 = vmatpush1.bf16.msra.mxu0 0
    %52 = vmatprep.subr.bf16.mxu0 0
    %53 = vmatpush1.bf16.msra.mxu0 0
    %54 = vmatprep.subr.bf16.mxu0 0
    %55 = vmatpush1.bf16.msra.mxu0 0
    %56 = vmatprep.subr.bf16.mxu0 0
    %57 = vmatpush1.bf16.msra.mxu0 0
    %58 = vmatprep.subr.bf16.mxu0 0
    %59 = vmatpush1.bf16.msra.mxu0 0
    %60 = vmatprep.subr.bf16.mxu0 0
    %61 = vmatpush1.bf16.msra.mxu0 0
    %62 = vmatprep.subr.bf16.mxu0 0
    %63 = vmatpush1.bf16.msra.mxu0 0
    %64 = vmatprep.subr.bf16.mxu0 0
    %65 = vmatpush1.bf16.msra.mxu0 0
    %66 = vmatprep.subr.bf16.mxu0 0
    %67 = vmatpush1.bf16.msra.mxu0 0
    %68 = vmatprep.subr.bf16.mxu0 0
    %69 = vmatpush1.bf16.msra.mxu0 0
    %70 = vmatprep.subr.bf16.mxu0 0
    %71 = vmatpush1.bf16.msra.mxu0 0
    %72 = vmatprep.subr.bf16.mxu0 0
    %73 = vmatpush1.bf16.msra.mxu0 0
    %74 = vmatprep.subr.bf16.mxu0 0
    %75 = vmatpush1.bf16.msra.mxu0 0
    %76 = vmatprep.subr.bf16.mxu0 0
    %77 = vmatpush1.bf16.msra.mxu0 0
    %78 = vmatprep.mubr.bf16.mxu0 0
    %79 = vmatmul.mubr.bf16.gmra.mrb[0].mxu0 %v44
    %v80 = vpop.f32.mrb[0].mxu0
    %v81 = vadd.f32 %v28, %v80
    %v82 = vpop.f32.mrb[0].mxu0
    %v83 = vpop.f32.mrb[0].mxu0
    %v84 = vadd.f32 %v28, %v83
    %v85 = vpop.f32.mrb[0].mxu0
    %86 = vdwg.mxu0
    %vm87 = vcmask 490496
    %88 = vst.msk [vmem:[#allocation2] sm:$0xff] %vm87, %v81
    %89 = vst.msk [vmem:[#allocation2 + $0x8] sm:$0xff] %vm87, %v84
    // Predicated region
    $region14: #{transformer_fwd.9} parent=1 // pred_check
      _
    $region15: #{transformer_fwd.9} parent=1 // pred_check_branch
      %91 = sbr.rel (0) target = $region17
    $region16: #{transformer_fwd.9} parent=1 // pred_region
      %s93 = ssub.s32 256, 256
      %94 = vsyncadd [#allocation3], %s93
      %s95 = sshll.u32 [#allocation2], 4
      %s96 = int_to_ptr.vmem [resolvable:$true] %s95
      %101 = dma.vmem_to_hbm [thread:$0]  %s96, 256, %s3, [#allocation3], 128, 128, 8
    $region17: #{transformer_fwd.9} parent=1 // pred_fallthru
      _
    // Predicated region
    $region18: #{transformer_fwd.9} parent=1 // pred_check
      _
    $region19: #{transformer_fwd.9} parent=1 // pred_check_branch
      %103 = sbr.rel (0) target = $region21
    $region20: #{transformer_fwd.9} parent=1 // pred_region
      %104 = dma.done [#allocation3], 256
    $region21: #{transformer_fwd.9} parent=1 // pred_fallthru
      _
    %105 = vsyncpa [#allocation3], 1

// kernel: transformer_fwd.5
$region0: #{transformer_fwd.5}
  #allocation0 [shape = 'u32[]', space=smem, size = 0x4, offset = 0x4, fixed_abs, tag = 'smem constant byte address 0x4 - core index']
  #allocation1 [shape = 'u32[144,128]{1,0:T(1,128)}', space=vmem, size = 0x12000, scoped, tag = 'internal scratch']
  %s0 = inlined_call_operand.vmem [shape: f32[2,8,32], index: 0, kind: input, shape index: {}]
  %s1 = inlined_call_operand.vmem [shape: f32[2,8,8], index: 1, kind: input, shape index: {}]
  %s2 = inlined_call_operand.vmem [shape: bf16[32,96], index: 2, kind: input, shape index: {}]
  %s3 = inlined_call_operand.vmem [shape: bf16[32,32], index: 3, kind: input, shape index: {}]
  %s4 = inlined_call_operand.vmem [shape: f32[1,32], index: 4, kind: input, shape index: {}]
  %s5 = inlined_call_operand.vmem [shape: f32[1,32], index: 5, kind: input, shape index: {}]
  %s6 = inlined_call_operand.vmem [shape: f32[1,32], index: 6, kind: input, shape index: {}]
  %s7 = inlined_call_operand.vmem [shape: bf16[32,64], index: 7, kind: input, shape index: {}]
  %s8 = inlined_call_operand.vmem [shape: f32[1,64], index: 8, kind: input, shape index: {}]
  %s9 = inlined_call_operand.vmem [shape: bf16[64,32], index: 9, kind: input, shape index: {}]
  %s10 = inlined_call_operand.vmem [shape: f32[1,32], index: 10, kind: input, shape index: {}]
  %s11 = inlined_call_operand.vmem [shape: f32[1,32], index: 11, kind: input, shape index: {}]
  %s12 = inlined_call_operand.vmem [shape: f32[1,32], index: 12, kind: input, shape index: {}]
  %s13 = inlined_call_operand.vmem [shape: f32[2,8,32], index: 13, kind: output, shape index: {}]
  %s14 = sld [smem:[#allocation0]]
  $region85: #{transformer_fwd.5} parent=0
    _
  %s16 = ssub.s32 1, %s14
  %s17 = scalar_select 0, %s16, %s14
  loop: start=0, step=1, limit=4
  $region2: #{transformer_fwd.5} parent=0 // loop_pre_header
    _
  $region3: #{transformer_fwd.5} parent=0 // loop_header
    %s19 = sphi 0, %s23
    %p20 = scmp.ge.s32.totalorder %s19, 4
    %s29 = sphi 0, %s31
    %s32 = sphi 0, %s29
    %s33 = sphi 0, %s32
    %s49 = sphi 0, %s33
    %s55 = sphi 0, %s57
    %s58 = sphi 0, %s55
    %s59 = sphi 0, %s58
    %s75 = sphi 0, %s59
    %s79 = sphi 0, %s79
    %s81 = sphi 0, %s79
    %s82 = sphi 0, %s81
    %s96 = sphi 0, %s82
    %s100 = sphi 0, %s100
    %s102 = sphi 0, %s100
    %s103 = sphi 0, %s102
    %s117 = sphi 0, %s103
    %s121 = sphi 0, %s121
    %s123 = sphi 0, %s121
    %s124 = sphi 0, %s123
    %s138 = sphi 0, %s124
    %s142 = sphi 0, %s142
    %s144 = sphi 0, %s142
    %s145 = sphi 0, %s144
    %s159 = sphi 0, %s145
    %s163 = sphi 0, %s163
    %s165 = sphi 0, %s163
    %s166 = sphi 0, %s165
    %s180 = sphi 0, %s166
    %s184 = sphi 0, %s184
    %s186 = sphi 0, %s184
    %s187 = sphi 0, %s186
    %s201 = sphi 0, %s187
    %s205 = sphi 0, %s205
    %s207 = sphi 0, %s205
    %s208 = sphi 0, %s207
    %s222 = sphi 0, %s208
    %s226 = sphi 0, %s226
    %s228 = sphi 0, %s226
    %s229 = sphi 0, %s228
    %s243 = sphi 0, %s229
    %s247 = sphi 0, %s247
    %s249 = sphi 0, %s247
    %s250 = sphi 0, %s249
    %s264 = sphi 0, %s250
    %s268 = sphi 0, %s268
    %s270 = sphi 0, %s268
    %s271 = sphi 0, %s270
    %s285 = sphi 0, %s271
    %s289 = sphi 0, %s289
    %s291 = sphi 0, %s289
    %s292 = sphi 0, %s291
    %s306 = sphi 0, %s292
    %s312 = sphi 0, %s314
    %s315 = sphi 0, %s312
    %s316 = sphi 0, %s315
    %s332 = sphi 0, %s316
  $region4: #{transformer_fwd.5} parent=0 // loop_header_branch
    %22 = sbr.rel (%p20) target = $region8
  $region5: #{transformer_fwd.5} parent=0 // loop_body
    %s24 = ssub.s32 %s19, 1
    %s25 = ssub.s32 %s19, 2
    %s26 = sadd.s32 %s19, 1
    %s27 = ssub.s32 %s19, %s26
    %p28 = scmp.eq.s32.totalorder %s27, 0
    %s30 = sadd.s32 %s29, 1
    %s31 = scalar_select %p28, %s29, %s30
    %p34 = pneg %p28
    %p35 = scmp.eq.s32.totalorder %s19, 1
    %p36 = por %p34, %p35
    %p37 = scmp.ne.s32.totalorder %s29, %s32
    %p38 = scmp.eq.s32.totalorder %s19, 0
    %p39 = por %p37, %p38
    %p40 = scmp.ne.s32.totalorder %s29, %s32
    %p41 = scmp.eq.s32.totalorder %s24, 1
    %p42 = por %p40, %p41
    %p43 = scmp.ne.s32.totalorder %s32, %s33
    %p44 = scmp.eq.s32.totalorder %s24, 0
    %p45 = por %p43, %p44
    %p46 = scmp.ne.s32.totalorder %s32, %s33
    %p47 = scmp.eq.s32.totalorder %s25, 1
    %p48 = por %p46, %p47
    %p50 = scmp.ne.s32.totalorder %s33, %s49
    %p51 = scmp.eq.s32.totalorder %s25, 0
    %p52 = por %p50, %p51
    %s53 = ssub.s32 %s19, %s26
    %p54 = scmp.eq.s32.totalorder %s53, 0
    %s56 = sadd.s32 %s55, 1
    %s57 = scalar_select %p54, %s55, %s56
    %p60 = pneg %p54
    %p61 = scmp.eq.s32.totalorder %s19, 1
    %p62 = por %p60, %p61
    %p63 = scmp.ne.s32.totalorder %s55, %s58
    %p64 = scmp.eq.s32.totalorder %s19, 0
    %p65 = por %p63, %p64
    %p66 = scmp.ne.s32.totalorder %s55, %s58
    %p67 = scmp.eq.s32.totalorder %s24, 1
    %p68 = por %p66, %p67
    %p69 = scmp.ne.s32.totalorder %s58, %s59
    %p70 = scmp.eq.s32.totalorder %s24, 0
    %p71 = por %p69, %p70
    %p72 = scmp.ne.s32.totalorder %s58, %s59
    %p73 = scmp.eq.s32.totalorder %s25, 1
    %p74 = por %p72, %p73
    %p76 = scmp.ne.s32.totalorder %s59, %s75
    %p77 = scmp.eq.s32.totalorder %s25, 0
    %p78 = por %p76, %p77
    %s80 = sadd.s32 %s79, 1
    %p83 = scmp.eq.s32.totalorder %s19, 1
    %p84 = scmp.ne.s32.totalorder %s79, %s81
    %p85 = scmp.eq.s32.totalorder %s19, 0
    %p86 = por %p84, %p85
    %p87 = scmp.ne.s32.totalorder %s79, %s81
    %p88 = scmp.eq.s32.totalorder %s24, 1
    %p89 = por %p87, %p88
    %p90 = scmp.ne.s32.totalorder %s81, %s82
    %p91 = scmp.eq.s32.totalorder %s24, 0
    %p92 = por %p90, %p91
    %p93 = scmp.ne.s32.totalorder %s81, %s82
    %p94 = scmp.eq.s32.totalorder %s25, 1
    %p95 = por %p93, %p94
    %p97 = scmp.ne.s32.totalorder %s82, %s96
    %p98 = scmp.eq.s32.totalorder %s25, 0
    %p99 = por %p97, %p98
    %s101 = sadd.s32 %s100, 1
    %p104 = scmp.eq.s32.totalorder %s19, 1
    %p105 = scmp.ne.s32.totalorder %s100, %s102
    %p106 = scmp.eq.s32.totalorder %s19, 0
    %p107 = por %p105, %p106
    %p108 = scmp.ne.s32.totalorder %s100, %s102
    %p109 = scmp.eq.s32.totalorder %s24, 1
    %p110 = por %p108, %p109
    %p111 = scmp.ne.s32.totalorder %s102, %s103
    %p112 = scmp.eq.s32.totalorder %s24, 0
    %p113 = por %p111, %p112
    %p114 = scmp.ne.s32.totalorder %s102, %s103
    %p115 = scmp.eq.s32.totalorder %s25, 1
    %p116 = por %p114, %p115
    %p118 = scmp.ne.s32.totalorder %s103, %s117
    %p119 = scmp.eq.s32.totalorder %s25, 0
    %p120 = por %p118, %p119
    %s122 = sadd.s32 %s121, 1
    %p125 = scmp.eq.s32.totalorder %s19, 1
    %p126 = scmp.ne.s32.totalorder %s121, %s123
    %p127 = scmp.eq.s32.totalorder %s19, 0
    %p128 = por %p126, %p127
    %p129 = scmp.ne.s32.totalorder %s121, %s123
    %p130 = scmp.eq.s32.totalorder %s24, 1
    %p131 = por %p129, %p130
    %p132 = scmp.ne.s32.totalorder %s123, %s124
    %p133 = scmp.eq.s32.totalorder %s24, 0
    %p134 = por %p132, %p133
    %p135 = scmp.ne.s32.totalorder %s123, %s124
    %p136 = scmp.eq.s32.totalorder %s25, 1
    %p137 = por %p135, %p136
    %p139 = scmp.ne.s32.totalorder %s124, %s138
    %p140 = scmp.eq.s32.totalorder %s25, 0
    %p141 = por %p139, %p140
    %s143 = sadd.s32 %s142, 1
    %p146 = scmp.eq.s32.totalorder %s19, 1
    %p147 = scmp.ne.s32.totalorder %s142, %s144
    %p148 = scmp.eq.s32.totalorder %s19, 0
    %p149 = por %p147, %p148
    %p150 = scmp.ne.s32.totalorder %s142, %s144
    %p151 = scmp.eq.s32.totalorder %s24, 1
    %p152 = por %p150, %p151
    %p153 = scmp.ne.s32.totalorder %s144, %s145
    %p154 = scmp.eq.s32.totalorder %s24, 0
    %p155 = por %p153, %p154
    %p156 = scmp.ne.s32.totalorder %s144, %s145
    %p157 = scmp.eq.s32.totalorder %s25, 1
    %p158 = por %p156, %p157
    %p160 = scmp.ne.s32.totalorder %s145, %s159
    %p161 = scmp.eq.s32.totalorder %s25, 0
    %p162 = por %p160, %p161
    %s164 = sadd.s32 %s163, 1
    %p167 = scmp.eq.s32.totalorder %s19, 1
    %p168 = scmp.ne.s32.totalorder %s163, %s165
    %p169 = scmp.eq.s32.totalorder %s19, 0
    %p170 = por %p168, %p169
    %p171 = scmp.ne.s32.totalorder %s163, %s165
    %p172 = scmp.eq.s32.totalorder %s24, 1
    %p173 = por %p171, %p172
    %p174 = scmp.ne.s32.totalorder %s165, %s166
    %p175 = scmp.eq.s32.totalorder %s24, 0
    %p176 = por %p174, %p175
    %p177 = scmp.ne.s32.totalorder %s165, %s166
    %p178 = scmp.eq.s32.totalorder %s25, 1
    %p179 = por %p177, %p178
    %p181 = scmp.ne.s32.totalorder %s166, %s180
    %p182 = scmp.eq.s32.totalorder %s25, 0
    %p183 = por %p181, %p182
    %s185 = sadd.s32 %s184, 1
    %p188 = scmp.eq.s32.totalorder %s19, 1
    %p189 = scmp.ne.s32.totalorder %s184, %s186
    %p190 = scmp.eq.s32.totalorder %s19, 0
    %p191 = por %p189, %p190
    %p192 = scmp.ne.s32.totalorder %s184, %s186
    %p193 = scmp.eq.s32.totalorder %s24, 1
    %p194 = por %p192, %p193
    %p195 = scmp.ne.s32.totalorder %s186, %s187
    %p196 = scmp.eq.s32.totalorder %s24, 0
    %p197 = por %p195, %p196
    %p198 = scmp.ne.s32.totalorder %s186, %s187
    %p199 = scmp.eq.s32.totalorder %s25, 1
    %p200 = por %p198, %p199
    %p202 = scmp.ne.s32.totalorder %s187, %s201
    %p203 = scmp.eq.s32.totalorder %s25, 0
    %p204 = por %p202, %p203
    %s206 = sadd.s32 %s205, 1
    %p209 = scmp.eq.s32.totalorder %s19, 1
    %p210 = scmp.ne.s32.totalorder %s205, %s207
    %p211 = scmp.eq.s32.totalorder %s19, 0
    %p212 = por %p210, %p211
    %p213 = scmp.ne.s32.totalorder %s205, %s207
    %p214 = scmp.eq.s32.totalorder %s24, 1
    %p215 = por %p213, %p214
    %p216 = scmp.ne.s32.totalorder %s207, %s208
    %p217 = scmp.eq.s32.totalorder %s24, 0
    %p218 = por %p216, %p217
    %p219 = scmp.ne.s32.totalorder %s207, %s208
    %p220 = scmp.eq.s32.totalorder %s25, 1
    %p221 = por %p219, %p220
    %p223 = scmp.ne.s32.totalorder %s208, %s222
    %p224 = scmp.eq.s32.totalorder %s25, 0
    %p225 = por %p223, %p224
    %s227 = sadd.s32 %s226, 1
    %p230 = scmp.eq.s32.totalorder %s19, 1
    %p231 = scmp.ne.s32.totalorder %s226, %s228
    %p232 = scmp.eq.s32.totalorder %s19, 0
    %p233 = por %p231, %p232
    %p234 = scmp.ne.s32.totalorder %s226, %s228
    %p235 = scmp.eq.s32.totalorder %s24, 1
    %p236 = por %p234, %p235
    %p237 = scmp.ne.s32.totalorder %s228, %s229
    %p238 = scmp.eq.s32.totalorder %s24, 0
    %p239 = por %p237, %p238
    %p240 = scmp.ne.s32.totalorder %s228, %s229
    %p241 = scmp.eq.s32.totalorder %s25, 1
    %p242 = por %p240, %p241
    %p244 = scmp.ne.s32.totalorder %s229, %s243
    %p245 = scmp.eq.s32.totalorder %s25, 0
    %p246 = por %p244, %p245
    %s248 = sadd.s32 %s247, 1
    %p251 = scmp.eq.s32.totalorder %s19, 1
    %p252 = scmp.ne.s32.totalorder %s247, %s249
    %p253 = scmp.eq.s32.totalorder %s19, 0
    %p254 = por %p252, %p253
    %p255 = scmp.ne.s32.totalorder %s247, %s249
    %p256 = scmp.eq.s32.totalorder %s24, 1
    %p257 = por %p255, %p256
    %p258 = scmp.ne.s32.totalorder %s249, %s250
    %p259 = scmp.eq.s32.totalorder %s24, 0
    %p260 = por %p258, %p259
    %p261 = scmp.ne.s32.totalorder %s249, %s250
    %p262 = scmp.eq.s32.totalorder %s25, 1
    %p263 = por %p261, %p262
    %p265 = scmp.ne.s32.totalorder %s250, %s264
    %p266 = scmp.eq.s32.totalorder %s25, 0
    %p267 = por %p265, %p266
    %s269 = sadd.s32 %s268, 1
    %p272 = scmp.eq.s32.totalorder %s19, 1
    %p273 = scmp.ne.s32.totalorder %s268, %s270
    %p274 = scmp.eq.s32.totalorder %s19, 0
    %p275 = por %p273, %p274
    %p276 = scmp.ne.s32.totalorder %s268, %s270
    %p277 = scmp.eq.s32.totalorder %s24, 1
    %p278 = por %p276, %p277
    %p279 = scmp.ne.s32.totalorder %s270, %s271
    %p280 = scmp.eq.s32.totalorder %s24, 0
    %p281 = por %p279, %p280
    %p282 = scmp.ne.s32.totalorder %s270, %s271
    %p283 = scmp.eq.s32.totalorder %s25, 1
    %p284 = por %p282, %p283
    %p286 = scmp.ne.s32.totalorder %s271, %s285
    %p287 = scmp.eq.s32.totalorder %s25, 0
    %p288 = por %p286, %p287
    %s290 = sadd.s32 %s289, 1
    %p293 = scmp.eq.s32.totalorder %s19, 1
    %p294 = scmp.ne.s32.totalorder %s289, %s291
    %p295 = scmp.eq.s32.totalorder %s19, 0
    %p296 = por %p294, %p295
    %p297 = scmp.ne.s32.totalorder %s289, %s291
    %p298 = scmp.eq.s32.totalorder %s24, 1
    %p299 = por %p297, %p298
    %p300 = scmp.ne.s32.totalorder %s291, %s292
    %p301 = scmp.eq.s32.totalorder %s24, 0
    %p302 = por %p300, %p301
    %p303 = scmp.ne.s32.totalorder %s291, %s292
    %p304 = scmp.eq.s32.totalorder %s25, 1
    %p305 = por %p303, %p304
    %p307 = scmp.ne.s32.totalorder %s292, %s306
    %p308 = scmp.eq.s32.totalorder %s25, 0
    %p309 = por %p307, %p308
    %s310 = ssub.s32 %s19, %s26
    %p311 = scmp.eq.s32.totalorder %s310, 0
    %s313 = sadd.s32 %s312, 1
    %s314 = scalar_select %p311, %s312, %s313
    %p317 = pneg %p311
    %p318 = scmp.eq.s32.totalorder %s19, 1
    %p319 = por %p317, %p318
    %p320 = scmp.ne.s32.totalorder %s312, %s315
    %p321 = scmp.eq.s32.totalorder %s19, 0
    %p322 = por %p320, %p321
    %p323 = scmp.ne.s32.totalorder %s312, %s315
    %p324 = scmp.eq.s32.totalorder %s24, 1
    %p325 = por %p323, %p324
    %p326 = scmp.ne.s32.totalorder %s315, %s316
    %p327 = scmp.eq.s32.totalorder %s24, 0
    %p328 = por %p326, %p327
    %p329 = scmp.ne.s32.totalorder %s315, %s316
    %p330 = scmp.eq.s32.totalorder %s25, 1
    %p331 = por %p329, %p330
    %p333 = scmp.ne.s32.totalorder %s316, %s332
    %p334 = scmp.eq.s32.totalorder %s25, 0
    %p335 = por %p333, %p334
    %p336 = scmp.le.s32.totalorder 1, %s19
    %p337 = scmp.lt.s32.totalorder %s19, 3
    %p338 = pnand %p336, %p337
    %p339 = pneg %p338
    // Predicated region
    $region9: #{transformer_fwd.5} parent=5 // pred_check
      _
    $region10: #{transformer_fwd.5} parent=5 // pred_check_branch
      %341 = sbr.rel (%p338) target = $region12
    $region11: #{transformer_fwd.5} parent=5 // pred_region
      %s342 = ssub.s32 %s19, 1
      // Predicated region
      $region13: #{transformer_fwd.5} parent=11 // pred_check
        %p343 = pneg %p92
      $region14: #{transformer_fwd.5} parent=11 // pred_check_branch
        %345 = sbr.rel (%p343) target = $region16
      $region15: #{transformer_fwd.5} parent=11 // pred_region
        _
      $region16: #{transformer_fwd.5} parent=11 // pred_fallthru
        _
      // Predicated region
      $region17: #{transformer_fwd.5} parent=11 // pred_check
        %p346 = pneg %p113
      $region18: #{transformer_fwd.5} parent=11 // pred_check_branch
        %348 = sbr.rel (%p346) target = $region20
      $region19: #{transformer_fwd.5} parent=11 // pred_region
        _
      $region20: #{transformer_fwd.5} parent=11 // pred_fallthru
        _
      // Predicated region
      $region21: #{transformer_fwd.5} parent=11 // pred_check
        %p349 = pneg %p134
      $region22: #{transformer_fwd.5} parent=11 // pred_check_branch
        %351 = sbr.rel (%p349) target = $region24
      $region23: #{transformer_fwd.5} parent=11 // pred_region
        _
      $region24: #{transformer_fwd.5} parent=11 // pred_fallthru
        _
      // Predicated region
      $region25: #{transformer_fwd.5} parent=11 // pred_check
        %p352 = pneg %p155
      $region26: #{transformer_fwd.5} parent=11 // pred_check_branch
        %354 = sbr.rel (%p352) target = $region28
      $region27: #{transformer_fwd.5} parent=11 // pred_region
        _
      $region28: #{transformer_fwd.5} parent=11 // pred_fallthru
        _
      // Predicated region
      $region29: #{transformer_fwd.5} parent=11 // pred_check
        %p355 = pneg %p176
      $region30: #{transformer_fwd.5} parent=11 // pred_check_branch
        %357 = sbr.rel (%p355) target = $region32
      $region31: #{transformer_fwd.5} parent=11 // pred_region
        _
      $region32: #{transformer_fwd.5} parent=11 // pred_fallthru
        _
      // Predicated region
      $region33: #{transformer_fwd.5} parent=11 // pred_check
        %p358 = pneg %p197
      $region34: #{transformer_fwd.5} parent=11 // pred_check_branch
        %360 = sbr.rel (%p358) target = $region36
      $region35: #{transformer_fwd.5} parent=11 // pred_region
        _
      $region36: #{transformer_fwd.5} parent=11 // pred_fallthru
        _
      // Predicated region
      $region37: #{transformer_fwd.5} parent=11 // pred_check
        %p361 = pneg %p218
      $region38: #{transformer_fwd.5} parent=11 // pred_check_branch
        %363 = sbr.rel (%p361) target = $region40
      $region39: #{transformer_fwd.5} parent=11 // pred_region
        _
      $region40: #{transformer_fwd.5} parent=11 // pred_fallthru
        _
      // Predicated region
      $region41: #{transformer_fwd.5} parent=11 // pred_check
        %p364 = pneg %p239
      $region42: #{transformer_fwd.5} parent=11 // pred_check_branch
        %366 = sbr.rel (%p364) target = $region44
      $region43: #{transformer_fwd.5} parent=11 // pred_region
        _
      $region44: #{transformer_fwd.5} parent=11 // pred_fallthru
        _
      // Predicated region
      $region45: #{transformer_fwd.5} parent=11 // pred_check
        %p367 = pneg %p260
      $region46: #{transformer_fwd.5} parent=11 // pred_check_branch
        %369 = sbr.rel (%p367) target = $region48
      $region47: #{transformer_fwd.5} parent=11 // pred_region
        _
      $region48: #{transformer_fwd.5} parent=11 // pred_fallthru
        _
      // Predicated region
      $region49: #{transformer_fwd.5} parent=11 // pred_check
        %p370 = pneg %p281
      $region50: #{transformer_fwd.5} parent=11 // pred_check_branch
        %372 = sbr.rel (%p370) target = $region52
      $region51: #{transformer_fwd.5} parent=11 // pred_region
        _
      $region52: #{transformer_fwd.5} parent=11 // pred_fallthru
        _
      // Predicated region
      $region53: #{transformer_fwd.5} parent=11 // pred_check
        %p373 = pneg %p302
      $region54: #{transformer_fwd.5} parent=11 // pred_check_branch
        %375 = sbr.rel (%p373) target = $region56
      $region55: #{transformer_fwd.5} parent=11 // pred_region
        _
      $region56: #{transformer_fwd.5} parent=11 // pred_fallthru
        _
    $region12: #{transformer_fwd.5} parent=5 // pred_fallthru
      _
    %p376 = scmp.lt.s32.totalorder %s19, 2
    // Predicated region
    $region57: #{transformer_fwd.5} parent=5 // pred_check
      %p377 = pneg %p376
    $region58: #{transformer_fwd.5} parent=5 // pred_check_branch
      %379 = sbr.rel (%p377) target = $region60
    $region59: #{transformer_fwd.5} parent=5 // pred_region
      // Predicated region
      $region61: #{transformer_fwd.5} parent=59 // pred_check
        %p380 = pneg %p39
      $region62: #{transformer_fwd.5} parent=59 // pred_check_branch
        %382 = sbr.rel (%p380) target = $region64
      $region63: #{transformer_fwd.5} parent=59 // pred_region
        %p383 = scmp.lt.s32.totalorder %s19, 1
        %s384 = scalar_select %p383, %s19, 1
        %s385 = smul.addr %s384, 8
        %s386 = scalar_lea.vmem %s0, %s385
      $region64: #{transformer_fwd.5} parent=59 // pred_fallthru
        _
      // Predicated region
      $region65: #{transformer_fwd.5} parent=59 // pred_check
        %p387 = pneg %p65
      $region66: #{transformer_fwd.5} parent=59 // pred_check_branch
        %389 = sbr.rel (%p387) target = $region68
      $region67: #{transformer_fwd.5} parent=59 // pred_region
        %p390 = scmp.lt.s32.totalorder %s19, 1
        %s391 = scalar_select %p390, %s19, 1
        %s392 = smul.addr %s391, 8
        %s393 = scalar_lea.vmem %s1, %s392
      $region68: #{transformer_fwd.5} parent=59 // pred_fallthru
        _
    $region60: #{transformer_fwd.5} parent=5 // pred_fallthru
      _
    %p394 = scmp.le.s32.totalorder 1, %s19
    %p395 = scmp.lt.s32.totalorder %s19, 3
    %p396 = pnand %p394, %p395
    %p397 = pneg %p396
    // Predicated region
    $region69: #{transformer_fwd.5} parent=5 // pred_check
      _
    $region70: #{transformer_fwd.5} parent=5 // pred_check_branch
      %399 = sbr.rel (%p396) target = $region72
    $region71: #{transformer_fwd.5} parent=5 // pred_region
      %s400 = ssub.s32 %s19, 1
      %p401 = scmp.lt.s32.totalorder %s24, 1
      %s402 = scalar_select %p401, %s24, 1
      %s403 = smul.addr %s402, 8
      %s404 = scalar_lea.vmem %s0, %s403
      %p405 = pneg %p45
      %p406 = pneg %p42
      %p407 = scmp.lt.s32.totalorder %s24, 1
      %s408 = scalar_select %p407, %s24, 1
      %s409 = smul.addr %s408, 8
      %s410 = scalar_lea.vmem %s1, %s409
      %p411 = pneg %p71
      %p412 = pneg %p68
      %p413 = pneg %p92
      %p414 = pneg %p89
      %p415 = pneg %p113
      %p416 = pneg %p110
      %p417 = pneg %p134
      %p418 = pneg %p131
      %p419 = pneg %p155
      %p420 = pneg %p152
      %p421 = pneg %p176
      %p422 = pneg %p173
      %p423 = pneg %p197
      %p424 = pneg %p194
      %p425 = pneg %p218
      %p426 = pneg %p215
      %p427 = pneg %p239
      %p428 = pneg %p236
      %p429 = pneg %p260
      %p430 = pneg %p257
      %p431 = pneg %p281
      %p432 = pneg %p278
      %p433 = pneg %p302
      %p434 = pneg %p299
      %p435 = pneg %p328
      %p436 = pneg %p325
      %p437 = scmp.lt.s32.totalorder %s24, 1
      %s438 = scalar_select %p437, %s24, 1
      %s439 = smul.addr %s438, 8
      %s440 = scalar_lea.vmem %s13, %s439
      %p441 = scmp.lt.s32.totalorder %s24, 1
      %s442 = scalar_select %p441, %s24, 1
      %s443 = smul.addr %s442, 8
      %s444 = scalar_lea.vmem %s0, %s443
      %p445 = scmp.lt.s32.totalorder %s24, 1
      %s446 = scalar_select %p445, %s24, 1
      %s447 = smul.addr %s446, 8
      %s448 = scalar_lea.vmem %s1, %s447
      %p449 = scmp.lt.s32.totalorder %s24, 1
      %s450 = scalar_select %p449, %s24, 1
      %s451 = smul.addr %s450, 8
      %s452 = scalar_lea.vmem %s13, %s451
      %v454 = vld [vmem:[%s444] sm:$0xff]
      %v455 = vld [vmem:[%s2] sm:$0xf]
      %v456 = vld [vmem:[%s2 + $0x4] sm:$0xf]
      %v457 = vld [vmem:[%s2 + $0x8] sm:$0xf]
      %v458 = vld [vmem:[%s2 + $0xc] sm:$0xf]
      %v459 = vld [vmem:[%s3] sm:$0xf]
      %v460 = vld [vmem:[%s3 + $0x4] sm:$0xf]
      %v461 = vld [vmem:[%s3 + $0x8] sm:$0xf]
      %v462 = vld [vmem:[%s3 + $0xc] sm:$0xf]
      %v463 = vld [vmem:[%s4] sm:$0x1]
      %v464 = vld [vmem:[%s448] sm:$0xff]
      %v465 = vpack.c.bf16 %v454, %v454
      %v470 = vunpack.c.l.b16 %v455
      %v471 = vunpack.c.l.b16 %v456
      %v472 = vunpack.c.l.b16 %v457
      %v473 = vunpack.c.l.b16 %v458
      %v474 = vpack.c.b16 %v471, %v470
      %v475 = vpack.c.b16 %v473, %v472
      %vm478 = vcmask 261120
      %v480 = vsel %vm478, %v465, 0
      %482 = vmatprep.subr.bf16.mxu0 0
      %483 = vmatpush1.bf16.msra.mxu0 %v474
      %484 = vmatprep.subr.bf16.mxu0 0
      %485 = vmatpush1.bf16.msra.mxu0 %v475
      %486 = vmatprep.subr.bf16.mxu0 0
      %487 = vmatpush1.bf16.msra.mxu0 0
      %488 = vmatprep.subr.bf16.mxu0 0
      %489 = vmatpush1.bf16.msra.mxu0 0
      %490 = vmatprep.subr.bf16.mxu0 0
      %491 = vmatpush1.bf16.msra.mxu0 0
      %492 = vmatprep.subr.bf16.mxu0 0
      %493 = vmatpush1.bf16.msra.mxu0 0
      %494 = vmatprep.subr.bf16.mxu0 0
      %495 = vmatpush1.bf16.msra.mxu0 0
      %496 = vmatprep.subr.bf16.mxu0 0
      %497 = vmatpush1.bf16.msra.mxu0 0
      %498 = vmatprep.subr.bf16.mxu0 0
      %499 = vmatpush1.bf16.msra.mxu0 0
      %500 = vmatprep.subr.bf16.mxu0 0
      %501 = vmatpush1.bf16.msra.mxu0 0
      %502 = vmatprep.subr.bf16.mxu0 0
      %503 = vmatpush1.bf16.msra.mxu0 0
      %504 = vmatprep.subr.bf16.mxu0 0
      %505 = vmatpush1.bf16.msra.mxu0 0
      %506 = vmatprep.subr.bf16.mxu0 0
      %507 = vmatpush1.bf16.msra.mxu0 0
      %508 = vmatprep.subr.bf16.mxu0 0
      %509 = vmatpush1.bf16.msra.mxu0 0
      %510 = vmatprep.subr.bf16.mxu0 0
      %511 = vmatpush1.bf16.msra.mxu0 0
      %512 = vmatprep.subr.bf16.mxu0 0
      %513 = vmatpush1.bf16.msra.mxu0 0
      %514 = vmatprep.mubr.bf16.mxu0 0
      %515 = vmatmul.mubr.bf16.gmra.mrb[0].mxu0 %v480
      %v516 = vpop.f32.mrb[0].mxu0
      %v517 = vadd.f32 0.0, %v516
      %v518 = vpop.f32.mrb[0].mxu0
      %v519 = vpop.f32.mrb[0].mxu0
      %v520 = vpop.f32.mrb[0].mxu0
      %521 = vdwg.mxu0
      %v522 = vmul.f32 %v517, 0.35355338
      %v523 = vpack.c.bf16 %v522, %v522
      %v524 = vpack.c.bf16 %v517, %v517
      %526 = vrot.lane.b32.xlu0 %v524, 96
      %v527 = vpop.permute.xlu0 %526
      %vm528 = vcmask 64512
      %v530 = vsel %vm528, %v523, 0
      %v533 = vsel %vm528, %v527, 0
      %535 = vmatprep.subr.bf16.mxu0 0
      %536 = vmatpush1.bf16.xpose.msra.mxu0 %v533
      %537 = vmatprep.subr.bf16.mxu0 0
      %538 = vmatpush1.bf16.xpose.msra.mxu0 0
      %539 = vmatprep.subr.bf16.mxu0 0
      %540 = vmatpush1.bf16.xpose.msra.mxu0 0
      %541 = vmatprep.subr.bf16.mxu0 0
      %542 = vmatpush1.bf16.xpose.msra.mxu0 0
      %543 = vmatprep.subr.bf16.mxu0 0
      %544 = vmatpush1.bf16.xpose.msra.mxu0 0
      %545 = vmatprep.subr.bf16.mxu0 0
      %546 = vmatpush1.bf16.xpose.msra.mxu0 0
      %547 = vmatprep.subr.bf16.mxu0 0
      %548 = vmatpush1.bf16.xpose.msra.mxu0 0
      %549 = vmatprep.subr.bf16.mxu0 0
      %550 = vmatpush1.bf16.xpose.msra.mxu0 0
      %551 = vmatprep.subr.bf16.mxu0 0
      %552 = vmatpush1.bf16.xpose.msra.mxu0 0
      %553 = vmatprep.subr.bf16.mxu0 0
      %554 = vmatpush1.bf16.xpose.msra.mxu0 0
      %555 = vmatprep.subr.bf16.mxu0 0
      %556 = vmatpush1.bf16.xpose.msra.mxu0 0
      %557 = vmatprep.subr.bf16.mxu0 0
      %558 = vmatpush1.bf16.xpose.msra.mxu0 0
      %559 = vmatprep.subr.bf16.mxu0 0
      %560 = vmatpush1.bf16.xpose.msra.mxu0 0
      %561 = vmatprep.subr.bf16.mxu0 0
      %562 = vmatpush1.bf16.xpose.msra.mxu0 0
      %563 = vmatprep.subr.bf16.mxu0 0
      %564 = vmatpush1.bf16.xpose.msra.mxu0 0
      %565 = vmatprep.subr.bf16.mxu0 0
      %566 = vmatpush1.bf16.xpose.msra.mxu0 0
      %567 = vmatprep.mubr.bf16.mxu0 0
      %568 = vmatmul.mubr.bf16.gmra.mrb[0].mxu0 %v530
      %v569 = vpop.f32.mrb[0].mxu0
      %v570 = vadd.f32 0.0, %v569
      %v571 = vpop.f32.mrb[0].mxu0
      %v572 = vpop.f32.mrb[0].mxu0
      %v573 = vpop.f32.mrb[0].mxu0
      %574 = vdwg.mxu0
      %vm575 = vcmp.eq.f32.partialorder %v464, 0.0
      %v576 = vsel %vm575, -1e+20, %v570
      %v577 = vsel %vm528, %v576, -inf
      %578 = vmax.xlane.f32.xlu0 %v577
      %v579 = vpop.xlane.xlu0 %578
      %v580 = vsub.f32 %v576, %v579
      %v581 = vmul.f32 %v580, 1.442695
      %v582 = vpow.pop %v581
      %v583 = vsel %vm528, %v582, 0.0
      %584 = vadd.xlane.f32.xlu0 %v583
      %v585 = vpop.xlane.xlu0 %584
      %v586 = vrcp.pop %v585
      %v587 = vmul.f32 %v582, %v586
      %v588 = vpack.c.bf16 %v587, %v587
      %589 = vrot.lane.b32.xlu0 %v524, 64
      %v590 = vpop.permute.xlu0 %589
      %v592 = vsel %vm528, %v588, 0
      %vm594 = vcmask 1043456
      %v596 = vsel %vm594, %v590, 0
      %598 = vmatprep.subr.bf16.mxu0 0
      %599 = vmatpush1.bf16.msra.mxu0 %v596
      %600 = vmatprep.subr.bf16.mxu0 0
      %601 = vmatpush1.bf16.msra.mxu0 0
      %602 = vmatprep.subr.bf16.mxu0 0
      %603 = vmatpush1.bf16.msra.mxu0 0
      %604 = vmatprep.subr.bf16.mxu0 0
      %605 = vmatpush1.bf16.msra.mxu0 0
      %606 = vmatprep.subr.bf16.mxu0 0
      %607 = vmatpush1.bf16.msra.mxu0 0
      %608 = vmatprep.subr.bf16.mxu0 0
      %609 = vmatpush1.bf16.msra.mxu0 0
      %610 = vmatprep.subr.bf16.mxu0 0
      %611 = vmatpush1.bf16.msra.mxu0 0
      %612 = vmatprep.subr.bf16.mxu0 0
      %613 = vmatpush1.bf16.msra.mxu0 0
      %614 = vmatprep.subr.bf16.mxu0 0
      %615 = vmatpush1.bf16.msra.mxu0 0
      %616 = vmatprep.subr.bf16.mxu0 0
      %617 = vmatpush1.bf16.msra.mxu0 0
      %618 = vmatprep.subr.bf16.mxu0 0
      %619 = vmatpush1.bf16.msra.mxu0 0
      %620 = vmatprep.subr.bf16.mxu0 0
      %621 = vmatpush1.bf16.msra.mxu0 0
      %622 = vmatprep.subr.bf16.mxu0 0
      %623 = vmatpush1.bf16.msra.mxu0 0
      %624 = vmatprep.subr.bf16.mxu0 0
      %625 = vmatpush1.bf16.msra.mxu0 0
      %626 = vmatprep.subr.bf16.mxu0 0
      %627 = vmatpush1.bf16.msra.mxu0 0
      %628 = vmatprep.subr.bf16.mxu0 0
      %629 = vmatpush1.bf16.msra.mxu0 0
      %630 = vmatprep.mubr.bf16.mxu0 0
      %631 = vmatmul.mubr.bf16.gmra.mrb[0].mxu0 %v592
      %v632 = vpop.f32.mrb[0].mxu0
      %v633 = vadd.f32 0.0, %v632
      %v634 = vpop.f32.mrb[0].mxu0
      %v635 = vpop.f32.mrb[0].mxu0
      %v636 = vpop.f32.mrb[0].mxu0
      %637 = vdwg.mxu0
      %639 = vrot.lane.b32.xlu0 %v523, 120
      %v640 = vpop.permute.xlu0 %639
      %641 = vrot.lane.b32.xlu0 %v524, 88
      %v642 = vpop.permute.xlu0 %641
      %v644 = vsel %vm528, %v640, 0
      %v647 = vsel %vm528, %v642, 0
      %649 = vmatprep.subr.bf16.mxu0 0
      %650 = vmatpush1.bf16.xpose.msra.mxu0 %v647
      %651 = vmatprep.subr.bf16.mxu0 0
      %652 = vmatpush1.bf16.xpose.msra.mxu0 0
      %653 = vmatprep.subr.bf16.mxu0 0
      %654 = vmatpush1.bf16.xpose.msra.mxu0 0
      %655 = vmatprep.subr.bf16.mxu0 0
      %656 = vmatpush1.bf16.xpose.msra.mxu0 0
      %657 = vmatprep.subr.bf16.mxu0 0
      %658 = vmatpush1.bf16.xpose.msra.mxu0 0
      %659 = vmatprep.subr.bf16.mxu0 0
      %660 = vmatpush1.bf16.xpose.msra.mxu0 0
      %661 = vmatprep.subr.bf16.mxu0 0
      %662 = vmatpush1.bf16.xpose.msra.mxu0 0
      %663 = vmatprep.subr.bf16.mxu0 0
      %664 = vmatpush1.bf16.xpose.msra.mxu0 0
      %665 = vmatprep.subr.bf16.mxu0 0
      %666 = vmatpush1.bf16.xpose.msra.mxu0 0
      %667 = vmatprep.subr.bf16.mxu0 0
      %668 = vmatpush1.bf16.xpose.msra.mxu0 0
      %669 = vmatprep.subr.bf16.mxu0 0
      %670 = vmatpush1.bf16.xpose.msra.mxu0 0
      %671 = vmatprep.subr.bf16.mxu0 0
      %672 = vmatpush1.bf16.xpose.msra.mxu0 0
      %673 = vmatprep.subr.bf16.mxu0 0
      %674 = vmatpush1.bf16.xpose.msra.mxu0 0
      %675 = vmatprep.subr.bf16.mxu0 0
      %676 = vmatpush1.bf16.xpose.msra.mxu0 0
      %677 = vmatprep.subr.bf16.mxu0 0
      %678 = vmatpush1.bf16.xpose.msra.mxu0 0
      %679 = vmatprep.subr.bf16.mxu0 0
      %680 = vmatpush1.bf16.xpose.msra.mxu0 0
      %681 = vmatprep.mubr.bf16.mxu0 0
      %682 = vmatmul.mubr.bf16.gmra.mrb[0].mxu0 %v644
      %v683 = vpop.f32.mrb[0].mxu0
      %v684 = vadd.f32 0.0, %v683
      %v685 = vpop.f32.mrb[0].mxu0
      %v686 = vpop.f32.mrb[0].mxu0
      %v687 = vpop.f32.mrb[0].mxu0
      %688 = vdwg.mxu0
      %v689 = vsel %vm575, -1e+20, %v684
      %v690 = vsel %vm528, %v689, -inf
      %691 = vmax.xlane.f32.xlu0 %v690
      %v692 = vpop.xlane.xlu0 %691
      %v693 = vsub.f32 %v689, %v692
      %v694 = vmul.f32 %v693, 1.442695
      %v695 = vpow.pop %v694
      %v696 = vsel %vm528, %v695, 0.0
      %697 = vadd.xlane.f32.xlu0 %v696
      %v698 = vpop.xlane.xlu0 %697
      %v699 = vrcp.pop %v698
      %v700 = vmul.f32 %v695, %v699
      %v701 = vpack.c.bf16 %v700, %v700
      %702 = vrot.lane.b32.xlu0 %v524, 56
      %v703 = vpop.permute.xlu0 %702
      %v705 = vsel %vm528, %v701, 0
      %v708 = vsel %vm594, %v703, 0
      %710 = vmatprep.subr.bf16.mxu0 0
      %711 = vmatpush1.bf16.msra.mxu0 %v708
      %712 = vmatprep.subr.bf16.mxu0 0
      %713 = vmatpush1.bf16.msra.mxu0 0
      %714 = vmatprep.subr.bf16.mxu0 0
      %715 = vmatpush1.bf16.msra.mxu0 0
      %716 = vmatprep.subr.bf16.mxu0 0
      %717 = vmatpush1.bf16.msra.mxu0 0
      %718 = vmatprep.subr.bf16.mxu0 0
      %719 = vmatpush1.bf16.msra.mxu0 0
      %720 = vmatprep.subr.bf16.mxu0 0
      %721 = vmatpush1.bf16.msra.mxu0 0
      %722 = vmatprep.subr.bf16.mxu0 0
      %723 = vmatpush1.bf16.msra.mxu0 0
      %724 = vmatprep.subr.bf16.mxu0 0
      %725 = vmatpush1.bf16.msra.mxu0 0
      %726 = vmatprep.subr.bf16.mxu0 0
      %727 = vmatpush1.bf16.msra.mxu0 0
      %728 = vmatprep.subr.bf16.mxu0 0
      %729 = vmatpush1.bf16.msra.mxu0 0
      %730 = vmatprep.subr.bf16.mxu0 0
      %731 = vmatpush1.bf16.msra.mxu0 0
      %732 = vmatprep.subr.bf16.mxu0 0
      %733 = vmatpush1.bf16.msra.mxu0 0
      %734 = vmatprep.subr.bf16.mxu0 0
      %735 = vmatpush1.bf16.msra.mxu0 0
      %736 = vmatprep.subr.bf16.mxu0 0
      %737 = vmatpush1.bf16.msra.mxu0 0
      %738 = vmatprep.subr.bf16.mxu0 0
      %739 = vmatpush1.bf16.msra.mxu0 0
      %740 = vmatprep.subr.bf16.mxu0 0
      %741 = vmatpush1.bf16.msra.mxu0 0
      %742 = vmatprep.mubr.bf16.mxu0 0
      %743 = vmatmul.mubr.bf16.gmra.mrb[0].mxu0 %v705
      %v744 = vpop.f32.mrb[0].mxu0
      %v745 = vadd.f32 0.0, %v744
      %v746 = vpop.f32.mrb[0].mxu0
      %v747 = vpop.f32.mrb[0].mxu0
      %v748 = vpop.f32.mrb[0].mxu0
      %749 = vdwg.mxu0
      %750 = vrot.lane.b32.xlu0 %v523, 112
      %v751 = vpop.permute.xlu0 %750
      %752 = vrot.lane.b32.xlu0 %v524, 80
      %v753 = vpop.permute.xlu0 %752
      %v755 = vsel %vm528, %v751, 0
      %v758 = vsel %vm528, %v753, 0
      %760 = vmatprep.subr.bf16.mxu0 0
      %761 = vmatpush1.bf16.xpose.msra.mxu0 %v758
      %762 = vmatprep.subr.bf16.mxu0 0
      %763 = vmatpush1.bf16.xpose.msra.mxu0 0
      %764 = vmatprep.subr.bf16.mxu0 0
      %765 = vmatpush1.bf16.xpose.msra.mxu0 0
      %766 = vmatprep.subr.bf16.mxu0 0
      %767 = vmatpush1.bf16.xpose.msra.mxu0 0
      %768 = vmatprep.subr.bf16.mxu0 0
      %769 = vmatpush1.bf16.xpose.msra.mxu0 0
      %770 = vmatprep.subr.bf16.mxu0 0
      %771 = vmatpush1.bf16.xpose.msra.mxu0 0
      %772 = vmatprep.subr.bf16.mxu0 0
      %773 = vmatpush1.bf16.xpose.msra.mxu0 0
      %774 = vmatprep.subr.bf16.mxu0 0
      %775 = vmatpush1.bf16.xpose.msra.mxu0 0
      %776 = vmatprep.subr.bf16.mxu0 0
      %777 = vmatpush1.bf16.xpose.msra.mxu0 0
      %778 = vmatprep.subr.bf16.mxu0 0
      %779 = vmatpush1.bf16.xpose.msra.mxu0 0
      %780 = vmatprep.subr.bf16.mxu0 0
      %781 = vmatpush1.bf16.xpose.msra.mxu0 0
      %782 = vmatprep.subr.bf16.mxu0 0
      %783 = vmatpush1.bf16.xpose.msra.mxu0 0
      %784 = vmatprep.subr.bf16.mxu0 0
      %785 = vmatpush1.bf16.xpose.msra.mxu0 0
      %786 = vmatprep.subr.bf16.mxu0 0
      %787 = vmatpush1.bf16.xpose.msra.mxu0 0
      %788 = vmatprep.subr.bf16.mxu0 0
      %789 = vmatpush1.bf16.xpose.msra.mxu0 0
      %790 = vmatprep.subr.bf16.mxu0 0
      %791 = vmatpush1.bf16.xpose.msra.mxu0 0
      %792 = vmatprep.mubr.bf16.mxu0 0
      %793 = vmatmul.mubr.bf16.gmra.mrb[0].mxu0 %v755
      %v794 = vpop.f32.mrb[0].mxu0
      %v795 = vadd.f32 0.0, %v794
      %v796 = vpop.f32.mrb[0].mxu0
      %v797 = vpop.f32.mrb[0].mxu0
      %v798 = vpop.f32.mrb[0].mxu0
      %799 = vdwg.mxu0
      %v800 = vsel %vm575, -1e+20, %v795
      %v801 = vsel %vm528, %v800, -inf
      %802 = vmax.xlane.f32.xlu0 %v801
      %v803 = vpop.xlane.xlu0 %802
      %v804 = vsub.f32 %v800, %v803
      %v805 = vmul.f32 %v804, 1.442695
      %v806 = vpow.pop %v805
      %v807 = vsel %vm528, %v806, 0.0
      %808 = vadd.xlane.f32.xlu0 %v807
      %v809 = vpop.xlane.xlu0 %808
      %v810 = vrcp.pop %v809
      %v811 = vmul.f32 %v806, %v810
      %v812 = vpack.c.bf16 %v811, %v811
      %813 = vrot.lane.b32.xlu0 %v524, 48
      %v814 = vpop.permute.xlu0 %813
      %v816 = vsel %vm528, %v812, 0
      %v819 = vsel %vm594, %v814, 0
      %821 = vmatprep.subr.bf16.mxu0 0
      %822 = vmatpush1.bf16.msra.mxu0 %v819
      %823 = vmatprep.subr.bf16.mxu0 0
      %824 = vmatpush1.bf16.msra.mxu0 0
      %825 = vmatprep.subr.bf16.mxu0 0
      %826 = vmatpush1.bf16.msra.mxu0 0
      %827 = vmatprep.subr.bf16.mxu0 0
      %828 = vmatpush1.bf16.msra.mxu0 0
      %829 = vmatprep.subr.bf16.mxu0 0
      %830 = vmatpush1.bf16.msra.mxu0 0
      %831 = vmatprep.subr.bf16.mxu0 0
      %832 = vmatpush1.bf16.msra.mxu0 0
      %833 = vmatprep.subr.bf16.mxu0 0
      %834 = vmatpush1.bf16.msra.mxu0 0
      %835 = vmatprep.subr.bf16.mxu0 0
      %836 = vmatpush1.bf16.msra.mxu0 0
      %837 = vmatprep.subr.bf16.mxu0 0
      %838 = vmatpush1.bf16.msra.mxu0 0
      %839 = vmatprep.subr.bf16.mxu0 0
      %840 = vmatpush1.bf16.msra.mxu0 0
      %841 = vmatprep.subr.bf16.mxu0 0
      %842 = vmatpush1.bf16.msra.mxu0 0
      %843 = vmatprep.subr.bf16.mxu0 0
      %844 = vmatpush1.bf16.msra.mxu0 0
      %845 = vmatprep.subr.bf16.mxu0 0
      %846 = vmatpush1.bf16.msra.mxu0 0
      %847 = vmatprep.subr.bf16.mxu0 0
      %848 = vmatpush1.bf16.msra.mxu0 0
      %849 = vmatprep.subr.bf16.mxu0 0
      %850 = vmatpush1.bf16.msra.mxu0 0
      %851 = vmatprep.subr.bf16.mxu0 0
      %852 = vmatpush1.bf16.msra.mxu0 0
      %853 = vmatprep.mubr.bf16.mxu0 0
      %854 = vmatmul.mubr.bf16.gmra.mrb[0].mxu0 %v816
      %v855 = vpop.f32.mrb[0].mxu0
      %v856 = vadd.f32 0.0, %v855
      %v857 = vpop.f32.mrb[0].mxu0
      %v858 = vpop.f32.mrb[0].mxu0
      %v859 = vpop.f32.mrb[0].mxu0
      %860 = vdwg.mxu0
      %861 = vrot.lane.b32.xlu0 %v523, 104
      %v862 = vpop.permute.xlu0 %861
      %863 = vrot.lane.b32.xlu0 %v524, 72
      %v864 = vpop.permute.xlu0 %863
      %v866 = vsel %vm528, %v862, 0
      %v869 = vsel %vm528, %v864, 0
      %871 = vmatprep.subr.bf16.mxu0 0
      %872 = vmatpush1.bf16.xpose.msra.mxu0 %v869
      %873 = vmatprep.subr.bf16.mxu0 0
      %874 = vmatpush1.bf16.xpose.msra.mxu0 0
      %875 = vmatprep.subr.bf16.mxu0 0
      %876 = vmatpush1.bf16.xpose.msra.mxu0 0
      %877 = vmatprep.subr.bf16.mxu0 0
      %878 = vmatpush1.bf16.xpose.msra.mxu0 0
      %879 = vmatprep.subr.bf16.mxu0 0
      %880 = vmatpush1.bf16.xpose.msra.mxu0 0
      %881 = vmatprep.subr.bf16.mxu0 0
      %882 = vmatpush1.bf16.xpose.msra.mxu0 0
      %883 = vmatprep.subr.bf16.mxu0 0
      %884 = vmatpush1.bf16.xpose.msra.mxu0 0
      %885 = vmatprep.subr.bf16.mxu0 0
      %886 = vmatpush1.bf16.xpose.msra.mxu0 0
      %887 = vmatprep.subr.bf16.mxu0 0
      %888 = vmatpush1.bf16.xpose.msra.mxu0 0
      %889 = vmatprep.subr.bf16.mxu0 0
      %890 = vmatpush1.bf16.xpose.msra.mxu0 0
      %891 = vmatprep.subr.bf16.mxu0 0
      %892 = vmatpush1.bf16.xpose.msra.mxu0 0
      %893 = vmatprep.subr.bf16.mxu0 0
      %894 = vmatpush1.bf16.xpose.msra.mxu0 0
      %895 = vmatprep.subr.bf16.mxu0 0
      %896 = vmatpush1.bf16.xpose.msra.mxu0 0
      %897 = vmatprep.subr.bf16.mxu0 0
      %898 = vmatpush1.bf16.xpose.msra.mxu0 0
      %899 = vmatprep.subr.bf16.mxu0 0
      %900 = vmatpush1.bf16.xpose.msra.mxu0 0
      %901 = vmatprep.subr.bf16.mxu0 0
      %902 = vmatpush1.bf16.xpose.msra.mxu0 0
      %903 = vmatprep.mubr.bf16.mxu0 0
      %904 = vmatmul.mubr.bf16.gmra.mrb[0].mxu0 %v866
      %v905 = vpop.f32.mrb[0].mxu0
      %v906 = vadd.f32 0.0, %v905
      %v907 = vpop.f32.mrb[0].mxu0
      %v908 = vpop.f32.mrb[0].mxu0
      %v909 = vpop.f32.mrb[0].mxu0
      %910 = vdwg.mxu0
      %v911 = vsel %vm575, -1e+20, %v906
      %v912 = vsel %vm528, %v911, -inf
      %913 = vmax.xlane.f32.xlu0 %v912
      %v914 = vpop.xlane.xlu0 %913
      %v915 = vsub.f32 %v911, %v914
      %v916 = vmul.f32 %v915, 1.442695
      %v917 = vpow.pop %v916
      %v918 = vsel %vm528, %v917, 0.0
      %919 = vadd.xlane.f32.xlu0 %v918
      %v920 = vpop.xlane.xlu0 %919
      %v921 = vrcp.pop %v920
      %v922 = vmul.f32 %v917, %v921
      %v923 = vpack.c.bf16 %v922, %v922
      %924 = vrot.lane.b32.xlu0 %v524, 40
      %v925 = vpop.permute.xlu0 %924
      %v927 = vsel %vm528, %v923, 0
      %v930 = vsel %vm594, %v925, 0
      %932 = vmatprep.subr.bf16.mxu0 0
      %933 = vmatpush1.bf16.msra.mxu0 %v930
      %934 = vmatprep.subr.bf16.mxu0 0
      %935 = vmatpush1.bf16.msra.mxu0 0
      %936 = vmatprep.subr.bf16.mxu0 0
      %937 = vmatpush1.bf16.msra.mxu0 0
      %938 = vmatprep.subr.bf16.mxu0 0
      %939 = vmatpush1.bf16.msra.mxu0 0
      %940 = vmatprep.subr.bf16.mxu0 0
      %941 = vmatpush1.bf16.msra.mxu0 0
      %942 = vmatprep.subr.bf16.mxu0 0
      %943 = vmatpush1.bf16.msra.mxu0 0
      %944 = vmatprep.subr.bf16.mxu0 0
      %945 = vmatpush1.bf16.msra.mxu0 0
      %946 = vmatprep.subr.bf16.mxu0 0
      %947 = vmatpush1.bf16.msra.mxu0 0
      %948 = vmatprep.subr.bf16.mxu0 0
      %949 = vmatpush1.bf16.msra.mxu0 0
      %950 = vmatprep.subr.bf16.mxu0 0
      %951 = vmatpush1.bf16.msra.mxu0 0
      %952 = vmatprep.subr.bf16.mxu0 0
      %953 = vmatpush1.bf16.msra.mxu0 0
      %954 = vmatprep.subr.bf16.mxu0 0
      %955 = vmatpush1.bf16.msra.mxu0 0
      %956 = vmatprep.subr.bf16.mxu0 0
      %957 = vmatpush1.bf16.msra.mxu0 0
      %958 = vmatprep.subr.bf16.mxu0 0
      %959 = vmatpush1.bf16.msra.mxu0 0
      %960 = vmatprep.subr.bf16.mxu0 0
      %961 = vmatpush1.bf16.msra.mxu0 0
      %962 = vmatprep.subr.bf16.mxu0 0
      %963 = vmatpush1.bf16.msra.mxu0 0
      %964 = vmatprep.mubr.bf16.mxu0 0
      %965 = vmatmul.mubr.bf16.gmra.mrb[0].mxu0 %v927
      %v966 = vpop.f32.mrb[0].mxu0
      %v967 = vadd.f32 0.0, %v966
      %v968 = vpop.f32.mrb[0].mxu0
      %v969 = vpop.f32.mrb[0].mxu0
      %v970 = vpop.f32.mrb[0].mxu0
      %971 = vdwg.mxu0
      %973 = vrot.lane.b32.xlu0 %v745, 8
      %v974 = vpop.permute.xlu0 %973
      %977 = vrot.lane.b32.xlu0 %v856, 16
      %v978 = vpop.permute.xlu0 %977
      %981 = vrot.lane.b32.xlu0 %v967, 24
      %v982 = vpop.permute.xlu0 %981
      %v984 = vsel %vm528, %v633, %v974
      %vm985 = vcmask 130048
      %v986 = vsel %vm985, %v984, %v978
      %vm987 = vcmask 195584
      %v988 = vsel %vm987, %v986, %v982
      %v989 = vpack.c.bf16 %v988, %v988
      %v991 = vlaneseq
      %v992 = vshrl.u32 %v991, 7
      %v993 = vsub.s32 0, %v992
      %v994 = vrot.slane %v463, %v993
      %v1000 = vunpack.c.l.b16 %v459
      %v1001 = vunpack.c.l.b16 %v460
      %v1002 = vunpack.c.l.b16 %v461
      %v1003 = vunpack.c.l.b16 %v462
      %v1004 = vpack.c.b16 %v1001, %v1000
      %v1005 = vpack.c.b16 %v1003, %v1002
      %v1009 = vsel %vm478, %v989, 0
      %1011 = vmatprep.subr.bf16.mxu0 0
      %1012 = vmatpush1.bf16.msra.mxu0 %v1004
      %1013 = vmatprep.subr.bf16.mxu0 0
      %1014 = vmatpush1.bf16.msra.mxu0 %v1005
      %1015 = vmatprep.subr.bf16.mxu0 0
      %1016 = vmatpush1.bf16.msra.mxu0 0
      %1017 = vmatprep.subr.bf16.mxu0 0
      %1018 = vmatpush1.bf16.msra.mxu0 0
      %1019 = vmatprep.subr.bf16.mxu0 0
      %1020 = vmatpush1.bf16.msra.mxu0 0
      %1021 = vmatprep.subr.bf16.mxu0 0
      %1022 = vmatpush1.bf16.msra.mxu0 0
      %1023 = vmatprep.subr.bf16.mxu0 0
      %1024 = vmatpush1.bf16.msra.mxu0 0
      %1025 = vmatprep.subr.bf16.mxu0 0
      %1026 = vmatpush1.bf16.msra.mxu0 0
      %1027 = vmatprep.subr.bf16.mxu0 0
      %1028 = vmatpush1.bf16.msra.mxu0 0
      %1029 = vmatprep.subr.bf16.mxu0 0
      %1030 = vmatpush1.bf16.msra.mxu0 0
      %1031 = vmatprep.subr.bf16.mxu0 0
      %1032 = vmatpush1.bf16.msra.mxu0 0
      %1033 = vmatprep.subr.bf16.mxu0 0
      %1034 = vmatpush1.bf16.msra.mxu0 0
      %1035 = vmatprep.subr.bf16.mxu0 0
      %1036 = vmatpush1.bf16.msra.mxu0 0
      %1037 = vmatprep.subr.bf16.mxu0 0
      %1038 = vmatpush1.bf16.msra.mxu0 0
      %1039 = vmatprep.subr.bf16.mxu0 0
      %1040 = vmatpush1.bf16.msra.mxu0 0
      %1041 = vmatprep.subr.bf16.mxu0 0
      %1042 = vmatpush1.bf16.msra.mxu0 0
      %1043 = vmatprep.mubr.bf16.mxu0 0
      %1044 = vmatmul.mubr.bf16.gmra.mrb[0].mxu0 %v1009
      %v1045 = vpop.f32.mrb[0].mxu0
      %v1046 = vadd.f32 %v994, %v1045
      %v1047 = vpop.f32.mrb[0].mxu0
      %v1048 = vpop.f32.mrb[0].mxu0
      %v1049 = vpop.f32.mrb[0].mxu0
      %1050 = vdwg.mxu0
      %v1051 = vadd.f32 %v1046, %v454
      %v1052 = vld [vmem:[%s5] sm:$0x1]
      %v1053 = vld [vmem:[%s6] sm:$0x1]
      %v1054 = vsel %vm478, %v1051, 0.0
      %1055 = vadd.xlane.f32.xlu0 %v1054
      %v1056 = vpop.xlane.xlu0 %1055
      %v1057 = vrcp.pop 32.0
      %v1058 = vmul.f32 %v1056, %v1057
      %v1059 = vsub.f32 %v1051, %v1058
      %v1060 = vmul.f32 %v1059, %v1059
      %v1061 = vsel %vm478, %v1060, 0.0
      %1062 = vadd.xlane.f32.xlu0 %v1061
      %v1063 = vpop.xlane.xlu0 %1062
      %v1064 = vmul.f32 %v1063, %v1057
      %v1065 = vadd.f32 %v1064, 1e-05
      %v1066 = vrsqrt.pop %v1065
      %v1067 = vmul.f32 %v1059, %v1066
      %v1069 = vlaneseq
      %v1070 = vshrl.u32 %v1069, 7
      %v1071 = vsub.s32 0, %v1070
      %v1072 = vrot.slane %v1052, %v1071
      %v1074 = vmul.f32 %v1067, %v1072
      %v1076 = vlaneseq
      %v1077 = vshrl.u32 %v1076, 7
      %v1078 = vsub.s32 0, %v1077
      %v1079 = vrot.slane %v1053, %v1078
      %v1081 = vadd.f32 %v1074, %v1079
      %v1082 = vld [vmem:[%s7] sm:$0xf]
      %v1083 = vld [vmem:[%s7 + $0x4] sm:$0xf]
      %v1084 = vld [vmem:[%s7 + $0x8] sm:$0xf]
      %v1085 = vld [vmem:[%s7 + $0xc] sm:$0xf]
      %v1086 = vld [vmem:[%s8] sm:$0x1]
      %v1087 = vld [vmem:[%s9] sm:$0xf]
      %v1088 = vld [vmem:[%s9 + $0x4] sm:$0xf]
      %v1089 = vld [vmem:[%s9 + $0x8] sm:$0xf]
      %v1090 = vld [vmem:[%s9 + $0xc] sm:$0xf]
      %v1091 = vld [vmem:[%s9 + $0x10] sm:$0xf]
      %v1092 = vld [vmem:[%s9 + $0x14] sm:$0xf]
      %v1093 = vld [vmem:[%s9 + $0x18] sm:$0xf]
      %v1094 = vld [vmem:[%s9 + $0x1c] sm:$0xf]
      %v1095 = vld [vmem:[%s10] sm:$0x1]
      %v1096 = vpack.c.bf16 %v1081, %v1081
      %v1098 = vlaneseq
      %v1099 = vshrl.u32 %v1098, 7
      %v1100 = vsub.s32 0, %v1099
      %v1101 = vrot.slane %v1086, %v1100
      %v1107 = vunpack.c.l.b16 %v1082
      %v1108 = vunpack.c.l.b16 %v1083
      %v1109 = vunpack.c.l.b16 %v1084
      %v1110 = vunpack.c.l.b16 %v1085
      %v1111 = vpack.c.b16 %v1108, %v1107
      %v1112 = vpack.c.b16 %v1110, %v1109
      %v1116 = vsel %vm478, %v1096, 0
      %1118 = vmatprep.subr.bf16.mxu0 0
      %1119 = vmatpush1.bf16.msra.mxu0 %v1111
      %1120 = vmatprep.subr.bf16.mxu0 0
      %1121 = vmatpush1.bf16.msra.mxu0 %v1112
      %1122 = vmatprep.subr.bf16.mxu0 0
      %1123 = vmatpush1.bf16.msra.mxu0 0
      %1124 = vmatprep.subr.bf16.mxu0 0
      %1125 = vmatpush1.bf16.msra.mxu0 0
      %1126 = vmatprep.subr.bf16.mxu0 0
      %1127 = vmatpush1.bf16.msra.mxu0 0
      %1128 = vmatprep.subr.bf16.mxu0 0
      %1129 = vmatpush1.bf16.msra.mxu0 0
      %1130 = vmatprep.subr.bf16.mxu0 0
      %1131 = vmatpush1.bf16.msra.mxu0 0
      %1132 = vmatprep.subr.bf16.mxu0 0
      %1133 = vmatpush1.bf16.msra.mxu0 0
      %1134 = vmatprep.subr.bf16.mxu0 0
      %1135 = vmatpush1.bf16.msra.mxu0 0
      %1136 = vmatprep.subr.bf16.mxu0 0
      %1137 = vmatpush1.bf16.msra.mxu0 0
      %1138 = vmatprep.subr.bf16.mxu0 0
      %1139 = vmatpush1.bf16.msra.mxu0 0
      %1140 = vmatprep.subr.bf16.mxu0 0
      %1141 = vmatpush1.bf16.msra.mxu0 0
      %1142 = vmatprep.subr.bf16.mxu0 0
      %1143 = vmatpush1.bf16.msra.mxu0 0
      %1144 = vmatprep.subr.bf16.mxu0 0
      %1145 = vmatpush1.bf16.msra.mxu0 0
      %1146 = vmatprep.subr.bf16.mxu0 0
      %1147 = vmatpush1.bf16.msra.mxu0 0
      %1148 = vmatprep.subr.bf16.mxu0 0
      %1149 = vmatpush1.bf16.msra.mxu0 0
      %1150 = vmatprep.mubr.bf16.mxu0 0
      %1151 = vmatmul.mubr.bf16.gmra.mrb[0].mxu0 %v1116
      %v1152 = vpop.f32.mrb[0].mxu0
      %v1153 = vadd.f32 %v1101, %v1152
      %v1154 = vpop.f32.mrb[0].mxu0
      %v1155 = vpop.f32.mrb[0].mxu0
      %v1156 = vpop.f32.mrb[0].mxu0
      %1157 = vdwg.mxu0
      %v1158 = vmax.f32 %v1153, 0.0
      %v1159 = vpack.c.bf16 %v1158, %v1158
      %v1161 = vlaneseq
      %v1162 = vshrl.u32 %v1161, 7
      %v1163 = vsub.s32 0, %v1162
      %v1164 = vrot.slane %v1095, %v1163
      %v1174 = vunpack.c.l.b16 %v1087
      %v1175 = vunpack.c.l.b16 %v1088
      %v1176 = vunpack.c.l.b16 %v1089
      %v1177 = vunpack.c.l.b16 %v1090
      %v1178 = vunpack.c.l.b16 %v1091
      %v1179 = vunpack.c.l.b16 %v1092
      %v1180 = vunpack.c.l.b16 %v1093
      %v1181 = vunpack.c.l.b16 %v1094
      %v1182 = vpack.c.b16 %v1175, %v1174
      %v1183 = vpack.c.b16 %v1177, %v1176
      %v1184 = vpack.c.b16 %v1179, %v1178
      %v1185 = vpack.c.b16 %v1181, %v1180
      %vm1190 = vcmask 523264
      %v1192 = vsel %vm1190, %v1159, 0
      %1194 = vmatprep.subr.bf16.mxu0 0
      %1195 = vmatpush1.bf16.msra.mxu0 %v1182
      %1196 = vmatprep.subr.bf16.mxu0 0
      %1197 = vmatpush1.bf16.msra.mxu0 %v1183
      %1198 = vmatprep.subr.bf16.mxu0 0
      %1199 = vmatpush1.bf16.msra.mxu0 %v1184
      %1200 = vmatprep.subr.bf16.mxu0 0
      %1201 = vmatpush1.bf16.msra.mxu0 %v1185
      %1202 = vmatprep.subr.bf16.mxu0 0
      %1203 = vmatpush1.bf16.msra.mxu0 0
      %1204 = vmatprep.subr.bf16.mxu0 0
      %1205 = vmatpush1.bf16.msra.mxu0 0
      %1206 = vmatprep.subr.bf16.mxu0 0
      %1207 = vmatpush1.bf16.msra.mxu0 0
      %1208 = vmatprep.subr.bf16.mxu0 0
      %1209 = vmatpush1.bf16.msra.mxu0 0
      %1210 = vmatprep.subr.bf16.mxu0 0
      %1211 = vmatpush1.bf16.msra.mxu0 0
      %1212 = vmatprep.subr.bf16.mxu0 0
      %1213 = vmatpush1.bf16.msra.mxu0 0
      %1214 = vmatprep.subr.bf16.mxu0 0
      %1215 = vmatpush1.bf16.msra.mxu0 0
      %1216 = vmatprep.subr.bf16.mxu0 0
      %1217 = vmatpush1.bf16.msra.mxu0 0
      %1218 = vmatprep.subr.bf16.mxu0 0
      %1219 = vmatpush1.bf16.msra.mxu0 0
      %1220 = vmatprep.subr.bf16.mxu0 0
      %1221 = vmatpush1.bf16.msra.mxu0 0
      %1222 = vmatprep.subr.bf16.mxu0 0
      %1223 = vmatpush1.bf16.msra.mxu0 0
      %1224 = vmatprep.subr.bf16.mxu0 0
      %1225 = vmatpush1.bf16.msra.mxu0 0
      %1226 = vmatprep.mubr.bf16.mxu0 0
      %1227 = vmatmul.mubr.bf16.gmra.mrb[0].mxu0 %v1192
      %v1228 = vpop.f32.mrb[0].mxu0
      %v1229 = vadd.f32 %v1164, %v1228
      %v1230 = vpop.f32.mrb[0].mxu0
      %v1231 = vpop.f32.mrb[0].mxu0
      %v1232 = vpop.f32.mrb[0].mxu0
      %1233 = vdwg.mxu0
      %v1234 = vadd.f32 %v1229, %v1081
      %v1235 = vld [vmem:[%s11] sm:$0x1]
      %v1236 = vld [vmem:[%s12] sm:$0x1]
      %v1237 = vsel %vm478, %v1234, 0.0
      %1238 = vadd.xlane.f32.xlu0 %v1237
      %v1239 = vpop.xlane.xlu0 %1238
      %v1240 = vmul.f32 %v1239, %v1057
      %v1241 = vsub.f32 %v1234, %v1240
      %v1242 = vmul.f32 %v1241, %v1241
      %v1243 = vsel %vm478, %v1242, 0.0
      %1244 = vadd.xlane.f32.xlu0 %v1243
      %v1245 = vpop.xlane.xlu0 %1244
      %v1246 = vmul.f32 %v1245, %v1057
      %v1247 = vadd.f32 %v1246, 1e-05
      %v1248 = vrsqrt.pop %v1247
      %v1249 = vmul.f32 %v1241, %v1248
      %v1251 = vlaneseq
      %v1252 = vshrl.u32 %v1251, 7
      %v1253 = vsub.s32 0, %v1252
      %v1254 = vrot.slane %v1235, %v1253
      %v1256 = vmul.f32 %v1249, %v1254
      %v1258 = vlaneseq
      %v1259 = vshrl.u32 %v1258, 7
      %v1260 = vsub.s32 0, %v1259
      %v1261 = vrot.slane %v1236, %v1260
      %v1263 = vadd.f32 %v1256, %v1261
      %1264 = vst.msk [vmem:[%s452] sm:$0xff] %vm478, %v1263
      %p1265 = scmp.lt.s32.totalorder %s24, 1
      %s1266 = scalar_select %p1265, %s24, 1
      %s1267 = smul.addr %s1266, 8
      %s1268 = scalar_lea.vmem %s13, %s1267
      // Predicated region
      $region73: #{transformer_fwd.5} parent=71 // pred_check
        %p1269 = pneg %p325
      $region74: #{transformer_fwd.5} parent=71 // pred_check_branch
        %1271 = sbr.rel (%p1269) target = $region76
      $region75: #{transformer_fwd.5} parent=71 // pred_region
        _
      $region76: #{transformer_fwd.5} parent=71 // pred_fallthru
        _
    $region72: #{transformer_fwd.5} parent=5 // pred_fallthru
      _
    %p1272 = scmp.le.s32.totalorder 2, %s19
    // Predicated region
    $region77: #{transformer_fwd.5} parent=5 // pred_check
      %p1273 = pneg %p1272
    $region78: #{transformer_fwd.5} parent=5 // pred_check_branch
      %1275 = sbr.rel (%p1273) target = $region80
    $region79: #{transformer_fwd.5} parent=5 // pred_region
      %s1276 = ssub.s32 %s19, 2
      // Predicated region
      $region81: #{transformer_fwd.5} parent=79 // pred_check
        %p1277 = pneg %p331
      $region82: #{transformer_fwd.5} parent=79 // pred_check_branch
        %1279 = sbr.rel (%p1277) target = $region84
      $region83: #{transformer_fwd.5} parent=79 // pred_region
        %p1280 = scmp.lt.s32.totalorder %s25, 1
        %s1281 = scalar_select %p1280, %s25, 1
        %s1282 = smul.addr %s1281, 8
        %s1283 = scalar_lea.vmem %s13, %s1282
      $region84: #{transformer_fwd.5} parent=79 // pred_fallthru
        _
    $region80: #{transformer_fwd.5} parent=5 // pred_fallthru
      _
  $region6: #{transformer_fwd.5} parent=0 // loop_footer
    %s23 = sadd.s32 1, %s19
  $region7: #{transformer_fwd.5} parent=0 // loop_footer_branch
    %18 = sbr.rel target = $region3
  $region8: #{transformer_fwd.5} parent=0 // loop_exit
    _

// kernel: transformer_fwd.7
$region0: #{transformer_fwd.7}
  #allocation0 [shape = 'u32[]', space=smem, size = 0x4, offset = 0x4, fixed_abs, tag = 'smem constant byte address 0x4 - core index']
  #allocation1 [shape = 'u32[144,128]{1,0:T(1,128)}', space=vmem, size = 0x12000, scoped, tag = 'internal scratch']
  %s0 = inlined_call_operand.vmem [shape: f32[2,8,32], index: 0, kind: input, shape index: {}]
  %s1 = inlined_call_operand.vmem [shape: f32[2,8,32], index: 1, kind: input, shape index: {}]
  %s2 = inlined_call_operand.vmem [shape: f32[2,8,8], index: 2, kind: input, shape index: {}]
  %s3 = inlined_call_operand.vmem [shape: f32[2,8,8], index: 3, kind: input, shape index: {}]
  %s4 = inlined_call_operand.vmem [shape: bf16[32,96], index: 4, kind: input, shape index: {}]
  %s5 = inlined_call_operand.vmem [shape: bf16[32,32], index: 5, kind: input, shape index: {}]
  %s6 = inlined_call_operand.vmem [shape: f32[1,32], index: 6, kind: input, shape index: {}]
  %s7 = inlined_call_operand.vmem [shape: f32[1,32], index: 7, kind: input, shape index: {}]
  %s8 = inlined_call_operand.vmem [shape: f32[1,32], index: 8, kind: input, shape index: {}]
  %s9 = inlined_call_operand.vmem [shape: bf16[32,96], index: 9, kind: input, shape index: {}]
  %s10 = inlined_call_operand.vmem [shape: bf16[32,32], index: 10, kind: input, shape index: {}]
  %s11 = inlined_call_operand.vmem [shape: f32[1,32], index: 11, kind: input, shape index: {}]
  %s12 = inlined_call_operand.vmem [shape: f32[1,32], index: 12, kind: input, shape index: {}]
  %s13 = inlined_call_operand.vmem [shape: f32[1,32], index: 13, kind: input, shape index: {}]
  %s14 = inlined_call_operand.vmem [shape: bf16[32,64], index: 14, kind: input, shape index: {}]
  %s15 = inlined_call_operand.vmem [shape: f32[1,64], index: 15, kind: input, shape index: {}]
  %s16 = inlined_call_operand.vmem [shape: bf16[64,32], index: 16, kind: input, shape index: {}]
  %s17 = inlined_call_operand.vmem [shape: f32[1,32], index: 17, kind: input, shape index: {}]
  %s18 = inlined_call_operand.vmem [shape: f32[1,32], index: 18, kind: input, shape index: {}]
  %s19 = inlined_call_operand.vmem [shape: f32[1,32], index: 19, kind: input, shape index: {}]
  %s20 = inlined_call_operand.vmem [shape: f32[2,8,32], index: 20, kind: output, shape index: {}]
  %s21 = sld [smem:[#allocation0]]
  $region113: #{transformer_fwd.7} parent=0
    _
  %s23 = ssub.s32 1, %s21
  %s24 = scalar_select 0, %s23, %s21
  loop: start=0, step=1, limit=4
  $region2: #{transformer_fwd.7} parent=0 // loop_pre_header
    _
  $region3: #{transformer_fwd.7} parent=0 // loop_header
    %s26 = sphi 0, %s30
    %p27 = scmp.ge.s32.totalorder %s26, 4
    %s36 = sphi 0, %s38
    %s39 = sphi 0, %s36
    %s40 = sphi 0, %s39
    %s56 = sphi 0, %s40
    %s62 = sphi 0, %s64
    %s65 = sphi 0, %s62
    %s66 = sphi 0, %s65
    %s82 = sphi 0, %s66
    %s88 = sphi 0, %s90
    %s91 = sphi 0, %s88
    %s92 = sphi 0, %s91
    %s108 = sphi 0, %s92
    %s114 = sphi 0, %s116
    %s117 = sphi 0, %s114
    %s118 = sphi 0, %s117
    %s134 = sphi 0, %s118
    %s138 = sphi 0, %s138
    %s140 = sphi 0, %s138
    %s141 = sphi 0, %s140
    %s155 = sphi 0, %s141
    %s159 = sphi 0, %s159
    %s161 = sphi 0, %s159
    %s162 = sphi 0, %s161
    %s176 = sphi 0, %s162
    %s180 = sphi 0, %s180
    %s182 = sphi 0, %s180
    %s183 = sphi 0, %s182
    %s197 = sphi 0, %s183
    %s201 = sphi 0, %s201
    %s203 = sphi 0, %s201
    %s204 = sphi 0, %s203
    %s218 = sphi 0, %s204
    %s222 = sphi 0, %s222
    %s224 = sphi 0, %s222
    %s225 = sphi 0, %s224
    %s239 = sphi 0, %s225
    %s243 = sphi 0, %s243
    %s245 = sphi 0, %s243
    %s246 = sphi 0, %s245
    %s260 = sphi 0, %s246
    %s264 = sphi 0, %s264
    %s266 = sphi 0, %s264
    %s267 = sphi 0, %s266
    %s281 = sphi 0, %s267
    %s285 = sphi 0, %s285
    %s287 = sphi 0, %s285
    %s288 = sphi 0, %s287
    %s302 = sphi 0, %s288
    %s306 = sphi 0, %s306
    %s308 = sphi 0, %s306
    %s309 = sphi 0, %s308
    %s323 = sphi 0, %s309
    %s327 = sphi 0, %s327
    %s329 = sphi 0, %s327
    %s330 = sphi 0, %s329
    %s344 = sphi 0, %s330
    %s348 = sphi 0, %s348
    %s350 = sphi 0, %s348
    %s351 = sphi 0, %s350
    %s365 = sphi 0, %s351
    %s369 = sphi 0, %s369
    %s371 = sphi 0, %s369
    %s372 = sphi 0, %s371
    %s386 = sphi 0, %s372
    %s390 = sphi 0, %s390
    %s392 = sphi 0, %s390
    %s393 = sphi 0, %s392
    %s407 = sphi 0, %s393
    %s411 = sphi 0, %s411
    %s413 = sphi 0, %s411
    %s414 = sphi 0, %s413
    %s428 = sphi 0, %s414
    %s432 = sphi 0, %s432
    %s434 = sphi 0, %s432
    %s435 = sphi 0, %s434
    %s449 = sphi 0, %s435
    %s453 = sphi 0, %s453
    %s455 = sphi 0, %s453
    %s456 = sphi 0, %s455
    %s470 = sphi 0, %s456
    %s476 = sphi 0, %s478
    %s479 = sphi 0, %s476
    %s480 = sphi 0, %s479
    %s496 = sphi 0, %s480
  $region4: #{transformer_fwd.7} parent=0 // loop_header_branch
    %29 = sbr.rel (%p27) target = $region8
  $region5: #{transformer_fwd.7} parent=0 // loop_body
    %s31 = ssub.s32 %s26, 1
    %s32 = ssub.s32 %s26, 2
    %s33 = sadd.s32 %s26, 1
    %s34 = ssub.s32 %s26, %s33
    %p35 = scmp.eq.s32.totalorder %s34, 0
    %s37 = sadd.s32 %s36, 1
    %s38 = scalar_select %p35, %s36, %s37
    %p41 = pneg %p35
    %p42 = scmp.eq.s32.totalorder %s26, 1
    %p43 = por %p41, %p42
    %p44 = scmp.ne.s32.totalorder %s36, %s39
    %p45 = scmp.eq.s32.totalorder %s26, 0
    %p46 = por %p44, %p45
    %p47 = scmp.ne.s32.totalorder %s36, %s39
    %p48 = scmp.eq.s32.totalorder %s31, 1
    %p49 = por %p47, %p48
    %p50 = scmp.ne.s32.totalorder %s39, %s40
    %p51 = scmp.eq.s32.totalorder %s31, 0
    %p52 = por %p50, %p51
    %p53 = scmp.ne.s32.totalorder %s39, %s40
    %p54 = scmp.eq.s32.totalorder %s32, 1
    %p55 = por %p53, %p54
    %p57 = scmp.ne.s32.totalorder %s40, %s56
    %p58 = scmp.eq.s32.totalorder %s32, 0
    %p59 = por %p57, %p58
    %s60 = ssub.s32 %s26, %s33
    %p61 = scmp.eq.s32.totalorder %s60, 0
    %s63 = sadd.s32 %s62, 1
    %s64 = scalar_select %p61, %s62, %s63
    %p67 = pneg %p61
    %p68 = scmp.eq.s32.totalorder %s26, 1
    %p69 = por %p67, %p68
    %p70 = scmp.ne.s32.totalorder %s62, %s65
    %p71 = scmp.eq.s32.totalorder %s26, 0
    %p72 = por %p70, %p71
    %p73 = scmp.ne.s32.totalorder %s62, %s65
    %p74 = scmp.eq.s32.totalorder %s31, 1
    %p75 = por %p73, %p74
    %p76 = scmp.ne.s32.totalorder %s65, %s66
    %p77 = scmp.eq.s32.totalorder %s31, 0
    %p78 = por %p76, %p77
    %p79 = scmp.ne.s32.totalorder %s65, %s66
    %p80 = scmp.eq.s32.totalorder %s32, 1
    %p81 = por %p79, %p80
    %p83 = scmp.ne.s32.totalorder %s66, %s82
    %p84 = scmp.eq.s32.totalorder %s32, 0
    %p85 = por %p83, %p84
    %s86 = ssub.s32 %s26, %s33
    %p87 = scmp.eq.s32.totalorder %s86, 0
    %s89 = sadd.s32 %s88, 1
    %s90 = scalar_select %p87, %s88, %s89
    %p93 = pneg %p87
    %p94 = scmp.eq.s32.totalorder %s26, 1
    %p95 = por %p93, %p94
    %p96 = scmp.ne.s32.totalorder %s88, %s91
    %p97 = scmp.eq.s32.totalorder %s26, 0
    %p98 = por %p96, %p97
    %p99 = scmp.ne.s32.totalorder %s88, %s91
    %p100 = scmp.eq.s32.totalorder %s31, 1
    %p101 = por %p99, %p100
    %p102 = scmp.ne.s32.totalorder %s91, %s92
    %p103 = scmp.eq.s32.totalorder %s31, 0
    %p104 = por %p102, %p103
    %p105 = scmp.ne.s32.totalorder %s91, %s92
    %p106 = scmp.eq.s32.totalorder %s32, 1
    %p107 = por %p105, %p106
    %p109 = scmp.ne.s32.totalorder %s92, %s108
    %p110 = scmp.eq.s32.totalorder %s32, 0
    %p111 = por %p109, %p110
    %s112 = ssub.s32 %s26, %s33
    %p113 = scmp.eq.s32.totalorder %s112, 0
    %s115 = sadd.s32 %s114, 1
    %s116 = scalar_select %p113, %s114, %s115
    %p119 = pneg %p113
    %p120 = scmp.eq.s32.totalorder %s26, 1
    %p121 = por %p119, %p120
    %p122 = scmp.ne.s32.totalorder %s114, %s117
    %p123 = scmp.eq.s32.totalorder %s26, 0
    %p124 = por %p122, %p123
    %p125 = scmp.ne.s32.totalorder %s114, %s117
    %p126 = scmp.eq.s32.totalorder %s31, 1
    %p127 = por %p125, %p126
    %p128 = scmp.ne.s32.totalorder %s117, %s118
    %p129 = scmp.eq.s32.totalorder %s31, 0
    %p130 = por %p128, %p129
    %p131 = scmp.ne.s32.totalorder %s117, %s118
    %p132 = scmp.eq.s32.totalorder %s32, 1
    %p133 = por %p131, %p132
    %p135 = scmp.ne.s32.totalorder %s118, %s134
    %p136 = scmp.eq.s32.totalorder %s32, 0
    %p137 = por %p135, %p136
    %s139 = sadd.s32 %s138, 1
    %p142 = scmp.eq.s32.totalorder %s26, 1
    %p143 = scmp.ne.s32.totalorder %s138, %s140
    %p144 = scmp.eq.s32.totalorder %s26, 0
    %p145 = por %p143, %p144
    %p146 = scmp.ne.s32.totalorder %s138, %s140
    %p147 = scmp.eq.s32.totalorder %s31, 1
    %p148 = por %p146, %p147
    %p149 = scmp.ne.s32.totalorder %s140, %s141
    %p150 = scmp.eq.s32.totalorder %s31, 0
    %p151 = por %p149, %p150
    %p152 = scmp.ne.s32.totalorder %s140, %s141
    %p153 = scmp.eq.s32.totalorder %s32, 1
    %p154 = por %p152, %p153
    %p156 = scmp.ne.s32.totalorder %s141, %s155
    %p157 = scmp.eq.s32.totalorder %s32, 0
    %p158 = por %p156, %p157
    %s160 = sadd.s32 %s159, 1
    %p163 = scmp.eq.s32.totalorder %s26, 1
    %p164 = scmp.ne.s32.totalorder %s159, %s161
    %p165 = scmp.eq.s32.totalorder %s26, 0
    %p166 = por %p164, %p165
    %p167 = scmp.ne.s32.totalorder %s159, %s161
    %p168 = scmp.eq.s32.totalorder %s31, 1
    %p169 = por %p167, %p168
    %p170 = scmp.ne.s32.totalorder %s161, %s162
    %p171 = scmp.eq.s32.totalorder %s31, 0
    %p172 = por %p170, %p171
    %p173 = scmp.ne.s32.totalorder %s161, %s162
    %p174 = scmp.eq.s32.totalorder %s32, 1
    %p175 = por %p173, %p174
    %p177 = scmp.ne.s32.totalorder %s162, %s176
    %p178 = scmp.eq.s32.totalorder %s32, 0
    %p179 = por %p177, %p178
    %s181 = sadd.s32 %s180, 1
    %p184 = scmp.eq.s32.totalorder %s26, 1
    %p185 = scmp.ne.s32.totalorder %s180, %s182
    %p186 = scmp.eq.s32.totalorder %s26, 0
    %p187 = por %p185, %p186
    %p188 = scmp.ne.s32.totalorder %s180, %s182
    %p189 = scmp.eq.s32.totalorder %s31, 1
    %p190 = por %p188, %p189
    %p191 = scmp.ne.s32.totalorder %s182, %s183
    %p192 = scmp.eq.s32.totalorder %s31, 0
    %p193 = por %p191, %p192
    %p194 = scmp.ne.s32.totalorder %s182, %s183
    %p195 = scmp.eq.s32.totalorder %s32, 1
    %p196 = por %p194, %p195
    %p198 = scmp.ne.s32.totalorder %s183, %s197
    %p199 = scmp.eq.s32.totalorder %s32, 0
    %p200 = por %p198, %p199
    %s202 = sadd.s32 %s201, 1
    %p205 = scmp.eq.s32.totalorder %s26, 1
    %p206 = scmp.ne.s32.totalorder %s201, %s203
    %p207 = scmp.eq.s32.totalorder %s26, 0
    %p208 = por %p206, %p207
    %p209 = scmp.ne.s32.totalorder %s201, %s203
    %p210 = scmp.eq.s32.totalorder %s31, 1
    %p211 = por %p209, %p210
    %p212 = scmp.ne.s32.totalorder %s203, %s204
    %p213 = scmp.eq.s32.totalorder %s31, 0
    %p214 = por %p212, %p213
    %p215 = scmp.ne.s32.totalorder %s203, %s204
    %p216 = scmp.eq.s32.totalorder %s32, 1
    %p217 = por %p215, %p216
    %p219 = scmp.ne.s32.totalorder %s204, %s218
    %p220 = scmp.eq.s32.totalorder %s32, 0
    %p221 = por %p219, %p220
    %s223 = sadd.s32 %s222, 1
    %p226 = scmp.eq.s32.totalorder %s26, 1
    %p227 = scmp.ne.s32.totalorder %s222, %s224
    %p228 = scmp.eq.s32.totalorder %s26, 0
    %p229 = por %p227, %p228
    %p230 = scmp.ne.s32.totalorder %s222, %s224
    %p231 = scmp.eq.s32.totalorder %s31, 1
    %p232 = por %p230, %p231
    %p233 = scmp.ne.s32.totalorder %s224, %s225
    %p234 = scmp.eq.s32.totalorder %s31, 0
    %p235 = por %p233, %p234
    %p236 = scmp.ne.s32.totalorder %s224, %s225
    %p237 = scmp.eq.s32.totalorder %s32, 1
    %p238 = por %p236, %p237
    %p240 = scmp.ne.s32.totalorder %s225, %s239
    %p241 = scmp.eq.s32.totalorder %s32, 0
    %p242 = por %p240, %p241
    %s244 = sadd.s32 %s243, 1
    %p247 = scmp.eq.s32.totalorder %s26, 1
    %p248 = scmp.ne.s32.totalorder %s243, %s245
    %p249 = scmp.eq.s32.totalorder %s26, 0
    %p250 = por %p248, %p249
    %p251 = scmp.ne.s32.totalorder %s243, %s245
    %p252 = scmp.eq.s32.totalorder %s31, 1
    %p253 = por %p251, %p252
    %p254 = scmp.ne.s32.totalorder %s245, %s246
    %p255 = scmp.eq.s32.totalorder %s31, 0
    %p256 = por %p254, %p255
    %p257 = scmp.ne.s32.totalorder %s245, %s246
    %p258 = scmp.eq.s32.totalorder %s32, 1
    %p259 = por %p257, %p258
    %p261 = scmp.ne.s32.totalorder %s246, %s260
    %p262 = scmp.eq.s32.totalorder %s32, 0
    %p263 = por %p261, %p262
    %s265 = sadd.s32 %s264, 1
    %p268 = scmp.eq.s32.totalorder %s26, 1
    %p269 = scmp.ne.s32.totalorder %s264, %s266
    %p270 = scmp.eq.s32.totalorder %s26, 0
    %p271 = por %p269, %p270
    %p272 = scmp.ne.s32.totalorder %s264, %s266
    %p273 = scmp.eq.s32.totalorder %s31, 1
    %p274 = por %p272, %p273
    %p275 = scmp.ne.s32.totalorder %s266, %s267
    %p276 = scmp.eq.s32.totalorder %s31, 0
    %p277 = por %p275, %p276
    %p278 = scmp.ne.s32.totalorder %s266, %s267
    %p279 = scmp.eq.s32.totalorder %s32, 1
    %p280 = por %p278, %p279
    %p282 = scmp.ne.s32.totalorder %s267, %s281
    %p283 = scmp.eq.s32.totalorder %s32, 0
    %p284 = por %p282, %p283
    %s286 = sadd.s32 %s285, 1
    %p289 = scmp.eq.s32.totalorder %s26, 1
    %p290 = scmp.ne.s32.totalorder %s285, %s287
    %p291 = scmp.eq.s32.totalorder %s26, 0
    %p292 = por %p290, %p291
    %p293 = scmp.ne.s32.totalorder %s285, %s287
    %p294 = scmp.eq.s32.totalorder %s31, 1
    %p295 = por %p293, %p294
    %p296 = scmp.ne.s32.totalorder %s287, %s288
    %p297 = scmp.eq.s32.totalorder %s31, 0
    %p298 = por %p296, %p297
    %p299 = scmp.ne.s32.totalorder %s287, %s288
    %p300 = scmp.eq.s32.totalorder %s32, 1
    %p301 = por %p299, %p300
    %p303 = scmp.ne.s32.totalorder %s288, %s302
    %p304 = scmp.eq.s32.totalorder %s32, 0
    %p305 = por %p303, %p304
    %s307 = sadd.s32 %s306, 1
    %p310 = scmp.eq.s32.totalorder %s26, 1
    %p311 = scmp.ne.s32.totalorder %s306, %s308
    %p312 = scmp.eq.s32.totalorder %s26, 0
    %p313 = por %p311, %p312
    %p314 = scmp.ne.s32.totalorder %s306, %s308
    %p315 = scmp.eq.s32.totalorder %s31, 1
    %p316 = por %p314, %p315
    %p317 = scmp.ne.s32.totalorder %s308, %s309
    %p318 = scmp.eq.s32.totalorder %s31, 0
    %p319 = por %p317, %p318
    %p320 = scmp.ne.s32.totalorder %s308, %s309
    %p321 = scmp.eq.s32.totalorder %s32, 1
    %p322 = por %p320, %p321
    %p324 = scmp.ne.s32.totalorder %s309, %s323
    %p325 = scmp.eq.s32.totalorder %s32, 0
    %p326 = por %p324, %p325
    %s328 = sadd.s32 %s327, 1
    %p331 = scmp.eq.s32.totalorder %s26, 1
    %p332 = scmp.ne.s32.totalorder %s327, %s329
    %p333 = scmp.eq.s32.totalorder %s26, 0
    %p334 = por %p332, %p333
    %p335 = scmp.ne.s32.totalorder %s327, %s329
    %p336 = scmp.eq.s32.totalorder %s31, 1
    %p337 = por %p335, %p336
    %p338 = scmp.ne.s32.totalorder %s329, %s330
    %p339 = scmp.eq.s32.totalorder %s31, 0
    %p340 = por %p338, %p339
    %p341 = scmp.ne.s32.totalorder %s329, %s330
    %p342 = scmp.eq.s32.totalorder %s32, 1
    %p343 = por %p341, %p342
    %p345 = scmp.ne.s32.totalorder %s330, %s344
    %p346 = scmp.eq.s32.totalorder %s32, 0
    %p347 = por %p345, %p346
    %s349 = sadd.s32 %s348, 1
    %p352 = scmp.eq.s32.totalorder %s26, 1
    %p353 = scmp.ne.s32.totalorder %s348, %s350
    %p354 = scmp.eq.s32.totalorder %s26, 0
    %p355 = por %p353, %p354
    %p356 = scmp.ne.s32.totalorder %s348, %s350
    %p357 = scmp.eq.s32.totalorder %s31, 1
    %p358 = por %p356, %p357
    %p359 = scmp.ne.s32.totalorder %s350, %s351
    %p360 = scmp.eq.s32.totalorder %s31, 0
    %p361 = por %p359, %p360
    %p362 = scmp.ne.s32.totalorder %s350, %s351
    %p363 = scmp.eq.s32.totalorder %s32, 1
    %p364 = por %p362, %p363
    %p366 = scmp.ne.s32.totalorder %s351, %s365
    %p367 = scmp.eq.s32.totalorder %s32, 0
    %p368 = por %p366, %p367
    %s370 = sadd.s32 %s369, 1
    %p373 = scmp.eq.s32.totalorder %s26, 1
    %p374 = scmp.ne.s32.totalorder %s369, %s371
    %p375 = scmp.eq.s32.totalorder %s26, 0
    %p376 = por %p374, %p375
    %p377 = scmp.ne.s32.totalorder %s369, %s371
    %p378 = scmp.eq.s32.totalorder %s31, 1
    %p379 = por %p377, %p378
    %p380 = scmp.ne.s32.totalorder %s371, %s372
    %p381 = scmp.eq.s32.totalorder %s31, 0
    %p382 = por %p380, %p381
    %p383 = scmp.ne.s32.totalorder %s371, %s372
    %p384 = scmp.eq.s32.totalorder %s32, 1
    %p385 = por %p383, %p384
    %p387 = scmp.ne.s32.totalorder %s372, %s386
    %p388 = scmp.eq.s32.totalorder %s32, 0
    %p389 = por %p387, %p388
    %s391 = sadd.s32 %s390, 1
    %p394 = scmp.eq.s32.totalorder %s26, 1
    %p395 = scmp.ne.s32.totalorder %s390, %s392
    %p396 = scmp.eq.s32.totalorder %s26, 0
    %p397 = por %p395, %p396
    %p398 = scmp.ne.s32.totalorder %s390, %s392
    %p399 = scmp.eq.s32.totalorder %s31, 1
    %p400 = por %p398, %p399
    %p401 = scmp.ne.s32.totalorder %s392, %s393
    %p402 = scmp.eq.s32.totalorder %s31, 0
    %p403 = por %p401, %p402
    %p404 = scmp.ne.s32.totalorder %s392, %s393
    %p405 = scmp.eq.s32.totalorder %s32, 1
    %p406 = por %p404, %p405
    %p408 = scmp.ne.s32.totalorder %s393, %s407
    %p409 = scmp.eq.s32.totalorder %s32, 0
    %p410 = por %p408, %p409
    %s412 = sadd.s32 %s411, 1
    %p415 = scmp.eq.s32.totalorder %s26, 1
    %p416 = scmp.ne.s32.totalorder %s411, %s413
    %p417 = scmp.eq.s32.totalorder %s26, 0
    %p418 = por %p416, %p417
    %p419 = scmp.ne.s32.totalorder %s411, %s413
    %p420 = scmp.eq.s32.totalorder %s31, 1
    %p421 = por %p419, %p420
    %p422 = scmp.ne.s32.totalorder %s413, %s414
    %p423 = scmp.eq.s32.totalorder %s31, 0
    %p424 = por %p422, %p423
    %p425 = scmp.ne.s32.totalorder %s413, %s414
    %p426 = scmp.eq.s32.totalorder %s32, 1
    %p427 = por %p425, %p426
    %p429 = scmp.ne.s32.totalorder %s414, %s428
    %p430 = scmp.eq.s32.totalorder %s32, 0
    %p431 = por %p429, %p430
    %s433 = sadd.s32 %s432, 1
    %p436 = scmp.eq.s32.totalorder %s26, 1
    %p437 = scmp.ne.s32.totalorder %s432, %s434
    %p438 = scmp.eq.s32.totalorder %s26, 0
    %p439 = por %p437, %p438
    %p440 = scmp.ne.s32.totalorder %s432, %s434
    %p441 = scmp.eq.s32.totalorder %s31, 1
    %p442 = por %p440, %p441
    %p443 = scmp.ne.s32.totalorder %s434, %s435
    %p444 = scmp.eq.s32.totalorder %s31, 0
    %p445 = por %p443, %p444
    %p446 = scmp.ne.s32.totalorder %s434, %s435
    %p447 = scmp.eq.s32.totalorder %s32, 1
    %p448 = por %p446, %p447
    %p450 = scmp.ne.s32.totalorder %s435, %s449
    %p451 = scmp.eq.s32.totalorder %s32, 0
    %p452 = por %p450, %p451
    %s454 = sadd.s32 %s453, 1
    %p457 = scmp.eq.s32.totalorder %s26, 1
    %p458 = scmp.ne.s32.totalorder %s453, %s455
    %p459 = scmp.eq.s32.totalorder %s26, 0
    %p460 = por %p458, %p459
    %p461 = scmp.ne.s32.totalorder %s453, %s455
    %p462 = scmp.eq.s32.totalorder %s31, 1
    %p463 = por %p461, %p462
    %p464 = scmp.ne.s32.totalorder %s455, %s456
    %p465 = scmp.eq.s32.totalorder %s31, 0
    %p466 = por %p464, %p465
    %p467 = scmp.ne.s32.totalorder %s455, %s456
    %p468 = scmp.eq.s32.totalorder %s32, 1
    %p469 = por %p467, %p468
    %p471 = scmp.ne.s32.totalorder %s456, %s470
    %p472 = scmp.eq.s32.totalorder %s32, 0
    %p473 = por %p471, %p472
    %s474 = ssub.s32 %s26, %s33
    %p475 = scmp.eq.s32.totalorder %s474, 0
    %s477 = sadd.s32 %s476, 1
    %s478 = scalar_select %p475, %s476, %s477
    %p481 = pneg %p475
    %p482 = scmp.eq.s32.totalorder %s26, 1
    %p483 = por %p481, %p482
    %p484 = scmp.ne.s32.totalorder %s476, %s479
    %p485 = scmp.eq.s32.totalorder %s26, 0
    %p486 = por %p484, %p485
    %p487 = scmp.ne.s32.totalorder %s476, %s479
    %p488 = scmp.eq.s32.totalorder %s31, 1
    %p489 = por %p487, %p488
    %p490 = scmp.ne.s32.totalorder %s479, %s480
    %p491 = scmp.eq.s32.totalorder %s31, 0
    %p492 = por %p490, %p491
    %p493 = scmp.ne.s32.totalorder %s479, %s480
    %p494 = scmp.eq.s32.totalorder %s32, 1
    %p495 = por %p493, %p494
    %p497 = scmp.ne.s32.totalorder %s480, %s496
    %p498 = scmp.eq.s32.totalorder %s32, 0
    %p499 = por %p497, %p498
    %p500 = scmp.le.s32.totalorder 1, %s26
    %p501 = scmp.lt.s32.totalorder %s26, 3
    %p502 = pnand %p500, %p501
    %p503 = pneg %p502
    // Predicated region
    $region9: #{transformer_fwd.7} parent=5 // pred_check
      _
    $region10: #{transformer_fwd.7} parent=5 // pred_check_branch
      %505 = sbr.rel (%p502) target = $region12
    $region11: #{transformer_fwd.7} parent=5 // pred_region
      %s506 = ssub.s32 %s26, 1
      // Predicated region
      $region13: #{transformer_fwd.7} parent=11 // pred_check
        %p507 = pneg %p151
      $region14: #{transformer_fwd.7} parent=11 // pred_check_branch
        %509 = sbr.rel (%p507) target = $region16
      $region15: #{transformer_fwd.7} parent=11 // pred_region
        _
      $region16: #{transformer_fwd.7} parent=11 // pred_fallthru
        _
      // Predicated region
      $region17: #{transformer_fwd.7} parent=11 // pred_check
        %p510 = pneg %p172
      $region18: #{transformer_fwd.7} parent=11 // pred_check_branch
        %512 = sbr.rel (%p510) target = $region20
      $region19: #{transformer_fwd.7} parent=11 // pred_region
        _
      $region20: #{transformer_fwd.7} parent=11 // pred_fallthru
        _
      // Predicated region
      $region21: #{transformer_fwd.7} parent=11 // pred_check
        %p513 = pneg %p193
      $region22: #{transformer_fwd.7} parent=11 // pred_check_branch
        %515 = sbr.rel (%p513) target = $region24
      $region23: #{transformer_fwd.7} parent=11 // pred_region
        _
      $region24: #{transformer_fwd.7} parent=11 // pred_fallthru
        _
      // Predicated region
      $region25: #{transformer_fwd.7} parent=11 // pred_check
        %p516 = pneg %p214
      $region26: #{transformer_fwd.7} parent=11 // pred_check_branch
        %518 = sbr.rel (%p516) target = $region28
      $region27: #{transformer_fwd.7} parent=11 // pred_region
        _
      $region28: #{transformer_fwd.7} parent=11 // pred_fallthru
        _
      // Predicated region
      $region29: #{transformer_fwd.7} parent=11 // pred_check
        %p519 = pneg %p235
      $region30: #{transformer_fwd.7} parent=11 // pred_check_branch
        %521 = sbr.rel (%p519) target = $region32
      $region31: #{transformer_fwd.7} parent=11 // pred_region
        _
      $region32: #{transformer_fwd.7} parent=11 // pred_fallthru
        _
      // Predicated region
      $region33: #{transformer_fwd.7} parent=11 // pred_check
        %p522 = pneg %p256
      $region34: #{transformer_fwd.7} parent=11 // pred_check_branch
        %524 = sbr.rel (%p522) target = $region36
      $region35: #{transformer_fwd.7} parent=11 // pred_region
        _
      $region36: #{transformer_fwd.7} parent=11 // pred_fallthru
        _
      // Predicated region
      $region37: #{transformer_fwd.7} parent=11 // pred_check
        %p525 = pneg %p277
      $region38: #{transformer_fwd.7} parent=11 // pred_check_branch
        %527 = sbr.rel (%p525) target = $region40
      $region39: #{transformer_fwd.7} parent=11 // pred_region
        _
      $region40: #{transformer_fwd.7} parent=11 // pred_fallthru
        _
      // Predicated region
      $region41: #{transformer_fwd.7} parent=11 // pred_check
        %p528 = pneg %p298
      $region42: #{transformer_fwd.7} parent=11 // pred_check_branch
        %530 = sbr.rel (%p528) target = $region44
      $region43: #{transformer_fwd.7} parent=11 // pred_region
        _
      $region44: #{transformer_fwd.7} parent=11 // pred_fallthru
        _
      // Predicated region
      $region45: #{transformer_fwd.7} parent=11 // pred_check
        %p531 = pneg %p319
      $region46: #{transformer_fwd.7} parent=11 // pred_check_branch
        %533 = sbr.rel (%p531) target = $region48
      $region47: #{transformer_fwd.7} parent=11 // pred_region
        _
      $region48: #{transformer_fwd.7} parent=11 // pred_fallthru
        _
      // Predicated region
      $region49: #{transformer_fwd.7} parent=11 // pred_check
        %p534 = pneg %p340
      $region50: #{transformer_fwd.7} parent=11 // pred_check_branch
        %536 = sbr.rel (%p534) target = $region52
      $region51: #{transformer_fwd.7} parent=11 // pred_region
        _
      $region52: #{transformer_fwd.7} parent=11 // pred_fallthru
        _
      // Predicated region
      $region53: #{transformer_fwd.7} parent=11 // pred_check
        %p537 = pneg %p361
      $region54: #{transformer_fwd.7} parent=11 // pred_check_branch
        %539 = sbr.rel (%p537) target = $region56
      $region55: #{transformer_fwd.7} parent=11 // pred_region
        _
      $region56: #{transformer_fwd.7} parent=11 // pred_fallthru
        _
      // Predicated region
      $region57: #{transformer_fwd.7} parent=11 // pred_check
        %p540 = pneg %p382
      $region58: #{transformer_fwd.7} parent=11 // pred_check_branch
        %542 = sbr.rel (%p540) target = $region60
      $region59: #{transformer_fwd.7} parent=11 // pred_region
        _
      $region60: #{transformer_fwd.7} parent=11 // pred_fallthru
        _
      // Predicated region
      $region61: #{transformer_fwd.7} parent=11 // pred_check
        %p543 = pneg %p403
      $region62: #{transformer_fwd.7} parent=11 // pred_check_branch
        %545 = sbr.rel (%p543) target = $region64
      $region63: #{transformer_fwd.7} parent=11 // pred_region
        _
      $region64: #{transformer_fwd.7} parent=11 // pred_fallthru
        _
      // Predicated region
      $region65: #{transformer_fwd.7} parent=11 // pred_check
        %p546 = pneg %p424
      $region66: #{transformer_fwd.7} parent=11 // pred_check_branch
        %548 = sbr.rel (%p546) target = $region68
      $region67: #{transformer_fwd.7} parent=11 // pred_region
        _
      $region68: #{transformer_fwd.7} parent=11 // pred_fallthru
        _
      // Predicated region
      $region69: #{transformer_fwd.7} parent=11 // pred_check
        %p549 = pneg %p445
      $region70: #{transformer_fwd.7} parent=11 // pred_check_branch
        %551 = sbr.rel (%p549) target = $region72
      $region71: #{transformer_fwd.7} parent=11 // pred_region
        _
      $region72: #{transformer_fwd.7} parent=11 // pred_fallthru
        _
      // Predicated region
      $region73: #{transformer_fwd.7} parent=11 // pred_check
        %p552 = pneg %p466
      $region74: #{transformer_fwd.7} parent=11 // pred_check_branch
        %554 = sbr.rel (%p552) target = $region76
      $region75: #{transformer_fwd.7} parent=11 // pred_region
        _
      $region76: #{transformer_fwd.7} parent=11 // pred_fallthru
        _
    $region12: #{transformer_fwd.7} parent=5 // pred_fallthru
      _
    %p555 = scmp.lt.s32.totalorder %s26, 2
    // Predicated region
    $region77: #{transformer_fwd.7} parent=5 // pred_check
      %p556 = pneg %p555
    $region78: #{transformer_fwd.7} parent=5 // pred_check_branch
      %558 = sbr.rel (%p556) target = $region80
    $region79: #{transformer_fwd.7} parent=5 // pred_region
      // Predicated region
      $region81: #{transformer_fwd.7} parent=79 // pred_check
        %p559 = pneg %p46
      $region82: #{transformer_fwd.7} parent=79 // pred_check_branch
        %561 = sbr.rel (%p559) target = $region84
      $region83: #{transformer_fwd.7} parent=79 // pred_region
        %p562 = scmp.lt.s32.totalorder %s26, 1
        %s563 = scalar_select %p562, %s26, 1
        %s564 = smul.addr %s563, 8
        %s565 = scalar_lea.vmem %s0, %s564
      $region84: #{transformer_fwd.7} parent=79 // pred_fallthru
        _
      // Predicated region
      $region85: #{transformer_fwd.7} parent=79 // pred_check
        %p566 = pneg %p72
      $region86: #{transformer_fwd.7} parent=79 // pred_check_branch
        %568 = sbr.rel (%p566) target = $region88
      $region87: #{transformer_fwd.7} parent=79 // pred_region
        %p569 = scmp.lt.s32.totalorder %s26, 1
        %s570 = scalar_select %p569, %s26, 1
        %s571 = smul.addr %s570, 8
        %s572 = scalar_lea.vmem %s1, %s571
      $region88: #{transformer_fwd.7} parent=79 // pred_fallthru
        _
      // Predicated region
      $region89: #{transformer_fwd.7} parent=79 // pred_check
        %p573 = pneg %p98
      $region90: #{transformer_fwd.7} parent=79 // pred_check_branch
        %575 = sbr.rel (%p573) target = $region92
      $region91: #{transformer_fwd.7} parent=79 // pred_region
        %p576 = scmp.lt.s32.totalorder %s26, 1
        %s577 = scalar_select %p576, %s26, 1
        %s578 = smul.addr %s577, 8
        %s579 = scalar_lea.vmem %s2, %s578
      $region92: #{transformer_fwd.7} parent=79 // pred_fallthru
        _
      // Predicated region
      $region93: #{transformer_fwd.7} parent=79 // pred_check
        %p580 = pneg %p124
      $region94: #{transformer_fwd.7} parent=79 // pred_check_branch
        %582 = sbr.rel (%p580) target = $region96
      $region95: #{transformer_fwd.7} parent=79 // pred_region
        %p583 = scmp.lt.s32.totalorder %s26, 1
        %s584 = scalar_select %p583, %s26, 1
        %s585 = smul.addr %s584, 8
        %s586 = scalar_lea.vmem %s3, %s585
      $region96: #{transformer_fwd.7} parent=79 // pred_fallthru
        _
    $region80: #{transformer_fwd.7} parent=5 // pred_fallthru
      _
    %p587 = scmp.le.s32.totalorder 1, %s26
    %p588 = scmp.lt.s32.totalorder %s26, 3
    %p589 = pnand %p587, %p588
    %p590 = pneg %p589
    // Predicated region
    $region97: #{transformer_fwd.7} parent=5 // pred_check
      _
    $region98: #{transformer_fwd.7} parent=5 // pred_check_branch
      %592 = sbr.rel (%p589) target = $region100
    $region99: #{transformer_fwd.7} parent=5 // pred_region
      %s593 = ssub.s32 %s26, 1
      %p594 = scmp.lt.s32.totalorder %s31, 1
      %s595 = scalar_select %p594, %s31, 1
      %s596 = smul.addr %s595, 8
      %s597 = scalar_lea.vmem %s0, %s596
      %p598 = pneg %p52
      %p599 = pneg %p49
      %p600 = scmp.lt.s32.totalorder %s31, 1
      %s601 = scalar_select %p600, %s31, 1
      %s602 = smul.addr %s601, 8
      %s603 = scalar_lea.vmem %s1, %s602
      %p604 = pneg %p78
      %p605 = pneg %p75
      %p606 = scmp.lt.s32.totalorder %s31, 1
      %s607 = scalar_select %p606, %s31, 1
      %s608 = smul.addr %s607, 8
      %s609 = scalar_lea.vmem %s2, %s608
      %p610 = pneg %p104
      %p611 = pneg %p101
      %p612 = scmp.lt.s32.totalorder %s31, 1
      %s613 = scalar_select %p612, %s31, 1
      %s614 = smul.addr %s613, 8
      %s615 = scalar_lea.vmem %s3, %s614
      %p616 = pneg %p130
      %p617 = pneg %p127
      %p618 = pneg %p151
      %p619 = pneg %p148
      %p620 = pneg %p172
      %p621 = pneg %p169
      %p622 = pneg %p193
      %p623 = pneg %p190
      %p624 = pneg %p214
      %p625 = pneg %p211
      %p626 = pneg %p235
      %p627 = pneg %p232
      %p628 = pneg %p256
      %p629 = pneg %p253
      %p630 = pneg %p277
      %p631 = pneg %p274
      %p632 = pneg %p298
      %p633 = pneg %p295
      %p634 = pneg %p319
      %p635 = pneg %p316
      %p636 = pneg %p340
      %p637 = pneg %p337
      %p638 = pneg %p361
      %p639 = pneg %p358
      %p640 = pneg %p382
      %p641 = pneg %p379
      %p642 = pneg %p403
      %p643 = pneg %p400
      %p644 = pneg %p424
      %p645 = pneg %p421
      %p646 = pneg %p445
      %p647 = pneg %p442
      %p648 = pneg %p466
      %p649 = pneg %p463
      %p650 = pneg %p492
      %p651 = pneg %p489
      %p652 = scmp.lt.s32.totalorder %s31, 1
      %s653 = scalar_select %p652, %s31, 1
      %s654 = smul.addr %s653, 8
      %s655 = scalar_lea.vmem %s20, %s654
      %p656 = scmp.lt.s32.totalorder %s31, 1
      %s657 = scalar_select %p656, %s31, 1
      %s658 = smul.addr %s657, 8
      %s659 = scalar_lea.vmem %s0, %s658
      %p660 = scmp.lt.s32.totalorder %s31, 1
      %s661 = scalar_select %p660, %s31, 1
      %s662 = smul.addr %s661, 8
      %s663 = scalar_lea.vmem %s1, %s662
      %p664 = scmp.lt.s32.totalorder %s31, 1
      %s665 = scalar_select %p664, %s31, 1
      %s666 = smul.addr %s665, 8
      %s667 = scalar_lea.vmem %s2, %s666
      %p668 = scmp.lt.s32.totalorder %s31, 1
      %s669 = scalar_select %p668, %s31, 1
      %s670 = smul.addr %s669, 8
      %s671 = scalar_lea.vmem %s3, %s670
      %p672 = scmp.lt.s32.totalorder %s31, 1
      %s673 = scalar_select %p672, %s31, 1
      %s674 = smul.addr %s673, 8
      %s675 = scalar_lea.vmem %s20, %s674
      %v677 = vld [vmem:[%s659] sm:$0xff]
      %v678 = vld [vmem:[%s663] sm:$0xff]
      %v679 = vld [vmem:[%s4] sm:$0xf]
      %v680 = vld [vmem:[%s4 + $0x4] sm:$0xf]
      %v681 = vld [vmem:[%s4 + $0x8] sm:$0xf]
      %v682 = vld [vmem:[%s4 + $0xc] sm:$0xf]
      %v683 = vld [vmem:[%s5] sm:$0xf]
      %v684 = vld [vmem:[%s5 + $0x4] sm:$0xf]
      %v685 = vld [vmem:[%s5 + $0x8] sm:$0xf]
      %v686 = vld [vmem:[%s5 + $0xc] sm:$0xf]
      %v687 = vld [vmem:[%s6] sm:$0x1]
      %v688 = vld [vmem:[%s667] sm:$0xff]
      %v689 = vpack.c.bf16 %v677, %v677
      %v694 = vunpack.c.l.b16 %v679
      %v695 = vunpack.c.l.b16 %v680
      %v696 = vunpack.c.l.b16 %v681
      %v697 = vunpack.c.l.b16 %v682
      %v698 = vpack.c.b16 %v695, %v694
      %v699 = vpack.c.b16 %v697, %v696
      %vm702 = vcmask 261120
      %v704 = vsel %vm702, %v689, 0
      %706 = vmatprep.subr.bf16.mxu0 0
      %707 = vmatpush1.bf16.msra.mxu0 %v698
      %708 = vmatprep.subr.bf16.mxu0 0
      %709 = vmatpush1.bf16.msra.mxu0 %v699
      %710 = vmatprep.subr.bf16.mxu0 0
      %711 = vmatpush1.bf16.msra.mxu0 0
      %712 = vmatprep.subr.bf16.mxu0 0
      %713 = vmatpush1.bf16.msra.mxu0 0
      %714 = vmatprep.subr.bf16.mxu0 0
      %715 = vmatpush1.bf16.msra.mxu0 0
      %716 = vmatprep.subr.bf16.mxu0 0
      %717 = vmatpush1.bf16.msra.mxu0 0
      %718 = vmatprep.subr.bf16.mxu0 0
      %719 = vmatpush1.bf16.msra.mxu0 0
      %720 = vmatprep.subr.bf16.mxu0 0
      %721 = vmatpush1.bf16.msra.mxu0 0
      %722 = vmatprep.subr.bf16.mxu0 0
      %723 = vmatpush1.bf16.msra.mxu0 0
      %724 = vmatprep.subr.bf16.mxu0 0
      %725 = vmatpush1.bf16.msra.mxu0 0
      %726 = vmatprep.subr.bf16.mxu0 0
      %727 = vmatpush1.bf16.msra.mxu0 0
      %728 = vmatprep.subr.bf16.mxu0 0
      %729 = vmatpush1.bf16.msra.mxu0 0
      %730 = vmatprep.subr.bf16.mxu0 0
      %731 = vmatpush1.bf16.msra.mxu0 0
      %732 = vmatprep.subr.bf16.mxu0 0
      %733 = vmatpush1.bf16.msra.mxu0 0
      %734 = vmatprep.subr.bf16.mxu0 0
      %735 = vmatpush1.bf16.msra.mxu0 0
      %736 = vmatprep.subr.bf16.mxu0 0
      %737 = vmatpush1.bf16.msra.mxu0 0
      %738 = vmatprep.mubr.bf16.mxu0 0
      %739 = vmatmul.mubr.bf16.gmra.mrb[0].mxu0 %v704
      %v740 = vpop.f32.mrb[0].mxu0
      %v741 = vadd.f32 0.0, %v740
      %v742 = vpop.f32.mrb[0].mxu0
      %v743 = vpop.f32.mrb[0].mxu0
      %v744 = vpop.f32.mrb[0].mxu0
      %745 = vdwg.mxu0
      %v746 = vmul.f32 %v741, 0.35355338
      %v747 = vpack.c.bf16 %v746, %v746
      %v748 = vpack.c.bf16 %v741, %v741
      %750 = vrot.lane.b32.xlu0 %v748, 96
      %v751 = vpop.permute.xlu0 %750
      %vm752 = vcmask 64512
      %v754 = vsel %vm752, %v747, 0
      %v757 = vsel %vm752, %v751, 0
      %759 = vmatprep.subr.bf16.mxu0 0
      %760 = vmatpush1.bf16.xpose.msra.mxu0 %v757
      %761 = vmatprep.subr.bf16.mxu0 0
      %762 = vmatpush1.bf16.xpose.msra.mxu0 0
      %763 = vmatprep.subr.bf16.mxu0 0
      %764 = vmatpush1.bf16.xpose.msra.mxu0 0
      %765 = vmatprep.subr.bf16.mxu0 0
      %766 = vmatpush1.bf16.xpose.msra.mxu0 0
      %767 = vmatprep.subr.bf16.mxu0 0
      %768 = vmatpush1.bf16.xpose.msra.mxu0 0
      %769 = vmatprep.subr.bf16.mxu0 0
      %770 = vmatpush1.bf16.xpose.msra.mxu0 0
      %771 = vmatprep.subr.bf16.mxu0 0
      %772 = vmatpush1.bf16.xpose.msra.mxu0 0
      %773 = vmatprep.subr.bf16.mxu0 0
      %774 = vmatpush1.bf16.xpose.msra.mxu0 0
      %775 = vmatprep.subr.bf16.mxu0 0
      %776 = vmatpush1.bf16.xpose.msra.mxu0 0
      %777 = vmatprep.subr.bf16.mxu0 0
      %778 = vmatpush1.bf16.xpose.msra.mxu0 0
      %779 = vmatprep.subr.bf16.mxu0 0
      %780 = vmatpush1.bf16.xpose.msra.mxu0 0
      %781 = vmatprep.subr.bf16.mxu0 0
      %782 = vmatpush1.bf16.xpose.msra.mxu0 0
      %783 = vmatprep.subr.bf16.mxu0 0
      %784 = vmatpush1.bf16.xpose.msra.mxu0 0
      %785 = vmatprep.subr.bf16.mxu0 0
      %786 = vmatpush1.bf16.xpose.msra.mxu0 0
      %787 = vmatprep.subr.bf16.mxu0 0
      %788 = vmatpush1.bf16.xpose.msra.mxu0 0
      %789 = vmatprep.subr.bf16.mxu0 0
      %790 = vmatpush1.bf16.xpose.msra.mxu0 0
      %791 = vmatprep.mubr.bf16.mxu0 0
      %792 = vmatmul.mubr.bf16.gmra.mrb[0].mxu0 %v754
      %v793 = vpop.f32.mrb[0].mxu0
      %v794 = vadd.f32 0.0, %v793
      %v795 = vpop.f32.mrb[0].mxu0
      %v796 = vpop.f32.mrb[0].mxu0
      %v797 = vpop.f32.mrb[0].mxu0
      %798 = vdwg.mxu0
      %vm799 = vcmp.eq.f32.partialorder %v688, 0.0
      %v800 = vsel %vm799, -1e+20, %v794
      %v801 = vsel %vm752, %v800, -inf
      %802 = vmax.xlane.f32.xlu0 %v801
      %v803 = vpop.xlane.xlu0 %802
      %v804 = vsub.f32 %v800, %v803
      %v805 = vmul.f32 %v804, 1.442695
      %v806 = vpow.pop %v805
      %v807 = vsel %vm752, %v806, 0.0
      %808 = vadd.xlane.f32.xlu0 %v807
      %v809 = vpop.xlane.xlu0 %808
      %v810 = vrcp.pop %v809
      %v811 = vmul.f32 %v806, %v810
      %v812 = vpack.c.bf16 %v811, %v811
      %813 = vrot.lane.b32.xlu0 %v748, 64
      %v814 = vpop.permute.xlu0 %813
      %v816 = vsel %vm752, %v812, 0
      %vm818 = vcmask 1043456
      %v820 = vsel %vm818, %v814, 0
      %822 = vmatprep.subr.bf16.mxu0 0
      %823 = vmatpush1.bf16.msra.mxu0 %v820
      %824 = vmatprep.subr.bf16.mxu0 0
      %825 = vmatpush1.bf16.msra.mxu0 0
      %826 = vmatprep.subr.bf16.mxu0 0
      %827 = vmatpush1.bf16.msra.mxu0 0
      %828 = vmatprep.subr.bf16.mxu0 0
      %829 = vmatpush1.bf16.msra.mxu0 0
      %830 = vmatprep.subr.bf16.mxu0 0
      %831 = vmatpush1.bf16.msra.mxu0 0
      %832 = vmatprep.subr.bf16.mxu0 0
      %833 = vmatpush1.bf16.msra.mxu0 0
      %834 = vmatprep.subr.bf16.mxu0 0
      %835 = vmatpush1.bf16.msra.mxu0 0
      %836 = vmatprep.subr.bf16.mxu0 0
      %837 = vmatpush1.bf16.msra.mxu0 0
      %838 = vmatprep.subr.bf16.mxu0 0
      %839 = vmatpush1.bf16.msra.mxu0 0
      %840 = vmatprep.subr.bf16.mxu0 0
      %841 = vmatpush1.bf16.msra.mxu0 0
      %842 = vmatprep.subr.bf16.mxu0 0
      %843 = vmatpush1.bf16.msra.mxu0 0
      %844 = vmatprep.subr.bf16.mxu0 0
      %845 = vmatpush1.bf16.msra.mxu0 0
      %846 = vmatprep.subr.bf16.mxu0 0
      %847 = vmatpush1.bf16.msra.mxu0 0
      %848 = vmatprep.subr.bf16.mxu0 0
      %849 = vmatpush1.bf16.msra.mxu0 0
      %850 = vmatprep.subr.bf16.mxu0 0
      %851 = vmatpush1.bf16.msra.mxu0 0
      %852 = vmatprep.subr.bf16.mxu0 0
      %853 = vmatpush1.bf16.msra.mxu0 0
      %854 = vmatprep.mubr.bf16.mxu0 0
      %855 = vmatmul.mubr.bf16.gmra.mrb[0].mxu0 %v816
      %v856 = vpop.f32.mrb[0].mxu0
      %v857 = vadd.f32 0.0, %v856
      %v858 = vpop.f32.mrb[0].mxu0
      %v859 = vpop.f32.mrb[0].mxu0
      %v860 = vpop.f32.mrb[0].mxu0
      %861 = vdwg.mxu0
      %863 = vrot.lane.b32.xlu0 %v747, 120
      %v864 = vpop.permute.xlu0 %863
      %865 = vrot.lane.b32.xlu0 %v748, 88
      %v866 = vpop.permute.xlu0 %865
      %v868 = vsel %vm752, %v864, 0
      %v871 = vsel %vm752, %v866, 0
      %873 = vmatprep.subr.bf16.mxu0 0
      %874 = vmatpush1.bf16.xpose.msra.mxu0 %v871
      %875 = vmatprep.subr.bf16.mxu0 0
      %876 = vmatpush1.bf16.xpose.msra.mxu0 0
      %877 = vmatprep.subr.bf16.mxu0 0
      %878 = vmatpush1.bf16.xpose.msra.mxu0 0
      %879 = vmatprep.subr.bf16.mxu0 0
      %880 = vmatpush1.bf16.xpose.msra.mxu0 0
      %881 = vmatprep.subr.bf16.mxu0 0
      %882 = vmatpush1.bf16.xpose.msra.mxu0 0
      %883 = vmatprep.subr.bf16.mxu0 0
      %884 = vmatpush1.bf16.xpose.msra.mxu0 0
      %885 = vmatprep.subr.bf16.mxu0 0
      %886 = vmatpush1.bf16.xpose.msra.mxu0 0
      %887 = vmatprep.subr.bf16.mxu0 0
      %888 = vmatpush1.bf16.xpose.msra.mxu0 0
      %889 = vmatprep.subr.bf16.mxu0 0
      %890 = vmatpush1.bf16.xpose.msra.mxu0 0
      %891 = vmatprep.subr.bf16.mxu0 0
      %892 = vmatpush1.bf16.xpose.msra.mxu0 0
      %893 = vmatprep.subr.bf16.mxu0 0
      %894 = vmatpush1.bf16.xpose.msra.mxu0 0
      %895 = vmatprep.subr.bf16.mxu0 0
      %896 = vmatpush1.bf16.xpose.msra.mxu0 0
      %897 = vmatprep.subr.bf16.mxu0 0
      %898 = vmatpush1.bf16.xpose.msra.mxu0 0
      %899 = vmatprep.subr.bf16.mxu0 0
      %900 = vmatpush1.bf16.xpose.msra.mxu0 0
      %901 = vmatprep.subr.bf16.mxu0 0
      %902 = vmatpush1.bf16.xpose.msra.mxu0 0
      %903 = vmatprep.subr.bf16.mxu0 0
      %904 = vmatpush1.bf16.xpose.msra.mxu0 0
      %905 = vmatprep.mubr.bf16.mxu0 0
      %906 = vmatmul.mubr.bf16.gmra.mrb[0].mxu0 %v868
      %v907 = vpop.f32.mrb[0].mxu0
      %v908 = vadd.f32 0.0, %v907
      %v909 = vpop.f32.mrb[0].mxu0
      %v910 = vpop.f32.mrb[0].mxu0
      %v911 = vpop.f32.mrb[0].mxu0
      %912 = vdwg.mxu0
      %v913 = vsel %vm799, -1e+20, %v908
      %v914 = vsel %vm752, %v913, -inf
      %915 = vmax.xlane.f32.xlu0 %v914
      %v916 = vpop.xlane.xlu0 %915
      %v917 = vsub.f32 %v913, %v916
      %v918 = vmul.f32 %v917, 1.442695
      %v919 = vpow.pop %v918
      %v920 = vsel %vm752, %v919, 0.0
      %921 = vadd.xlane.f32.xlu0 %v920
      %v922 = vpop.xlane.xlu0 %921
      %v923 = vrcp.pop %v922
      %v924 = vmul.f32 %v919, %v923
      %v925 = vpack.c.bf16 %v924, %v924
      %926 = vrot.lane.b32.xlu0 %v748, 56
      %v927 = vpop.permute.xlu0 %926
      %v929 = vsel %vm752, %v925, 0
      %v932 = vsel %vm818, %v927, 0
      %934 = vmatprep.subr.bf16.mxu0 0
      %935 = vmatpush1.bf16.msra.mxu0 %v932
      %936 = vmatprep.subr.bf16.mxu0 0
      %937 = vmatpush1.bf16.msra.mxu0 0
      %938 = vmatprep.subr.bf16.mxu0 0
      %939 = vmatpush1.bf16.msra.mxu0 0
      %940 = vmatprep.subr.bf16.mxu0 0
      %941 = vmatpush1.bf16.msra.mxu0 0
      %942 = vmatprep.subr.bf16.mxu0 0
      %943 = vmatpush1.bf16.msra.mxu0 0
      %944 = vmatprep.subr.bf16.mxu0 0
      %945 = vmatpush1.bf16.msra.mxu0 0
      %946 = vmatprep.subr.bf16.mxu0 0
      %947 = vmatpush1.bf16.msra.mxu0 0
      %948 = vmatprep.subr.bf16.mxu0 0
      %949 = vmatpush1.bf16.msra.mxu0 0
      %950 = vmatprep.subr.bf16.mxu0 0
      %951 = vmatpush1.bf16.msra.mxu0 0
      %952 = vmatprep.subr.bf16.mxu0 0
      %953 = vmatpush1.bf16.msra.mxu0 0
      %954 = vmatprep.subr.bf16.mxu0 0
      %955 = vmatpush1.bf16.msra.mxu0 0
      %956 = vmatprep.subr.bf16.mxu0 0
      %957 = vmatpush1.bf16.msra.mxu0 0
      %958 = vmatprep.subr.bf16.mxu0 0
      %959 = vmatpush1.bf16.msra.mxu0 0
      %960 = vmatprep.subr.bf16.mxu0 0
      %961 = vmatpush1.bf16.msra.mxu0 0
      %962 = vmatprep.subr.bf16.mxu0 0
      %963 = vmatpush1.bf16.msra.mxu0 0
      %964 = vmatprep.subr.bf16.mxu0 0
      %965 = vmatpush1.bf16.msra.mxu0 0
      %966 = vmatprep.mubr.bf16.mxu0 0
      %967 = vmatmul.mubr.bf16.gmra.mrb[0].mxu0 %v929
      %v968 = vpop.f32.mrb[0].mxu0
      %v969 = vadd.f32 0.0, %v968
      %v970 = vpop.f32.mrb[0].mxu0
      %v971 = vpop.f32.mrb[0].mxu0
      %v972 = vpop.f32.mrb[0].mxu0
      %973 = vdwg.mxu0
      %974 = vrot.lane.b32.xlu0 %v747, 112
      %v975 = vpop.permute.xlu0 %974
      %976 = vrot.lane.b32.xlu0 %v748, 80
      %v977 = vpop.permute.xlu0 %976
      %v979 = vsel %vm752, %v975, 0
      %v982 = vsel %vm752, %v977, 0
      %984 = vmatprep.subr.bf16.mxu0 0
      %985 = vmatpush1.bf16.xpose.msra.mxu0 %v982
      %986 = vmatprep.subr.bf16.mxu0 0
      %987 = vmatpush1.bf16.xpose.msra.mxu0 0
      %988 = vmatprep.subr.bf16.mxu0 0
      %989 = vmatpush1.bf16.xpose.msra.mxu0 0
      %990 = vmatprep.subr.bf16.mxu0 0
      %991 = vmatpush1.bf16.xpose.msra.mxu0 0
      %992 = vmatprep.subr.bf16.mxu0 0
      %993 = vmatpush1.bf16.xpose.msra.mxu0 0
      %994 = vmatprep.subr.bf16.mxu0 0
      %995 = vmatpush1.bf16.xpose.msra.mxu0 0
      %996 = vmatprep.subr.bf16.mxu0 0
      %997 = vmatpush1.bf16.xpose.msra.mxu0 0
      %998 = vmatprep.subr.bf16.mxu0 0
      %999 = vmatpush1.bf16.xpose.msra.mxu0 0
      %1000 = vmatprep.subr.bf16.mxu0 0
      %1001 = vmatpush1.bf16.xpose.msra.mxu0 0
      %1002 = vmatprep.subr.bf16.mxu0 0
      %1003 = vmatpush1.bf16.xpose.msra.mxu0 0
      %1004 = vmatprep.subr.bf16.mxu0 0
      %1005 = vmatpush1.bf16.xpose.msra.mxu0 0
      %1006 = vmatprep.subr.bf16.mxu0 0
      %1007 = vmatpush1.bf16.xpose.msra.mxu0 0
      %1008 = vmatprep.subr.bf16.mxu0 0
      %1009 = vmatpush1.bf16.xpose.msra.mxu0 0
      %1010 = vmatprep.subr.bf16.mxu0 0
      %1011 = vmatpush1.bf16.xpose.msra.mxu0 0
      %1012 = vmatprep.subr.bf16.mxu0 0
      %1013 = vmatpush1.bf16.xpose.msra.mxu0 0
      %1014 = vmatprep.subr.bf16.mxu0 0
      %1015 = vmatpush1.bf16.xpose.msra.mxu0 0
      %1016 = vmatprep.mubr.bf16.mxu0 0
      %1017 = vmatmul.mubr.bf16.gmra.mrb[0].mxu0 %v979
      %v1018 = vpop.f32.mrb[0].mxu0
      %v1019 = vadd.f32 0.0, %v1018
      %v1020 = vpop.f32.mrb[0].mxu0
      %v1021 = vpop.f32.mrb[0].mxu0
      %v1022 = vpop.f32.mrb[0].mxu0
      %1023 = vdwg.mxu0
      %v1024 = vsel %vm799, -1e+20, %v1019
      %v1025 = vsel %vm752, %v1024, -inf
      %1026 = vmax.xlane.f32.xlu0 %v1025
      %v1027 = vpop.xlane.xlu0 %1026
      %v1028 = vsub.f32 %v1024, %v1027
      %v1029 = vmul.f32 %v1028, 1.442695
      %v1030 = vpow.pop %v1029
      %v1031 = vsel %vm752, %v1030, 0.0
      %1032 = vadd.xlane.f32.xlu0 %v1031
      %v1033 = vpop.xlane.xlu0 %1032
      %v1034 = vrcp.pop %v1033
      %v1035 = vmul.f32 %v1030, %v1034
      %v1036 = vpack.c.bf16 %v1035, %v1035
      %1037 = vrot.lane.b32.xlu0 %v748, 48
      %v1038 = vpop.permute.xlu0 %1037
      %v1040 = vsel %vm752, %v1036, 0
      %v1043 = vsel %vm818, %v1038, 0
      %1045 = vmatprep.subr.bf16.mxu0 0
      %1046 = vmatpush1.bf16.msra.mxu0 %v1043
      %1047 = vmatprep.subr.bf16.mxu0 0
      %1048 = vmatpush1.bf16.msra.mxu0 0
      %1049 = vmatprep.subr.bf16.mxu0 0
      %1050 = vmatpush1.bf16.msra.mxu0 0
      %1051 = vmatprep.subr.bf16.mxu0 0
      %1052 = vmatpush1.bf16.msra.mxu0 0
      %1053 = vmatprep.subr.bf16.mxu0 0
      %1054 = vmatpush1.bf16.msra.mxu0 0
      %1055 = vmatprep.subr.bf16.mxu0 0
      %1056 = vmatpush1.bf16.msra.mxu0 0
      %1057 = vmatprep.subr.bf16.mxu0 0
      %1058 = vmatpush1.bf16.msra.mxu0 0
      %1059 = vmatprep.subr.bf16.mxu0 0
      %1060 = vmatpush1.bf16.msra.mxu0 0
      %1061 = vmatprep.subr.bf16.mxu0 0
      %1062 = vmatpush1.bf16.msra.mxu0 0
      %1063 = vmatprep.subr.bf16.mxu0 0
      %1064 = vmatpush1.bf16.msra.mxu0 0
      %1065 = vmatprep.subr.bf16.mxu0 0
      %1066 = vmatpush1.bf16.msra.mxu0 0
      %1067 = vmatprep.subr.bf16.mxu0 0
      %1068 = vmatpush1.bf16.msra.mxu0 0
      %1069 = vmatprep.subr.bf16.mxu0 0
      %1070 = vmatpush1.bf16.msra.mxu0 0
      %1071 = vmatprep.subr.bf16.mxu0 0
      %1072 = vmatpush1.bf16.msra.mxu0 0
      %1073 = vmatprep.subr.bf16.mxu0 0
      %1074 = vmatpush1.bf16.msra.mxu0 0
      %1075 = vmatprep.subr.bf16.mxu0 0
      %1076 = vmatpush1.bf16.msra.mxu0 0
      %1077 = vmatprep.mubr.bf16.mxu0 0
      %1078 = vmatmul.mubr.bf16.gmra.mrb[0].mxu0 %v1040
      %v1079 = vpop.f32.mrb[0].mxu0
      %v1080 = vadd.f32 0.0, %v1079
      %v1081 = vpop.f32.mrb[0].mxu0
      %v1082 = vpop.f32.mrb[0].mxu0
      %v1083 = vpop.f32.mrb[0].mxu0
      %1084 = vdwg.mxu0
      %1085 = vrot.lane.b32.xlu0 %v747, 104
      %v1086 = vpop.permute.xlu0 %1085
      %1087 = vrot.lane.b32.xlu0 %v748, 72
      %v1088 = vpop.permute.xlu0 %1087
      %v1090 = vsel %vm752, %v1086, 0
      %v1093 = vsel %vm752, %v1088, 0
      %1095 = vmatprep.subr.bf16.mxu0 0
      %1096 = vmatpush1.bf16.xpose.msra.mxu0 %v1093
      %1097 = vmatprep.subr.bf16.mxu0 0
      %1098 = vmatpush1.bf16.xpose.msra.mxu0 0
      %1099 = vmatprep.subr.bf16.mxu0 0
      %1100 = vmatpush1.bf16.xpose.msra.mxu0 0
      %1101 = vmatprep.subr.bf16.mxu0 0
      %1102 = vmatpush1.bf16.xpose.msra.mxu0 0
      %1103 = vmatprep.subr.bf16.mxu0 0
      %1104 = vmatpush1.bf16.xpose.msra.mxu0 0
      %1105 = vmatprep.subr.bf16.mxu0 0
      %1106 = vmatpush1.bf16.xpose.msra.mxu0 0
      %1107 = vmatprep.subr.bf16.mxu0 0
      %1108 = vmatpush1.bf16.xpose.msra.mxu0 0
      %1109 = vmatprep.subr.bf16.mxu0 0
      %1110 = vmatpush1.bf16.xpose.msra.mxu0 0
      %1111 = vmatprep.subr.bf16.mxu0 0
      %1112 = vmatpush1.bf16.xpose.msra.mxu0 0
      %1113 = vmatprep.subr.bf16.mxu0 0
      %1114 = vmatpush1.bf16.xpose.msra.mxu0 0
      %1115 = vmatprep.subr.bf16.mxu0 0
      %1116 = vmatpush1.bf16.xpose.msra.mxu0 0
      %1117 = vmatprep.subr.bf16.mxu0 0
      %1118 = vmatpush1.bf16.xpose.msra.mxu0 0
      %1119 = vmatprep.subr.bf16.mxu0 0
      %1120 = vmatpush1.bf16.xpose.msra.mxu0 0
      %1121 = vmatprep.subr.bf16.mxu0 0
      %1122 = vmatpush1.bf16.xpose.msra.mxu0 0
      %1123 = vmatprep.subr.bf16.mxu0 0
      %1124 = vmatpush1.bf16.xpose.msra.mxu0 0
      %1125 = vmatprep.subr.bf16.mxu0 0
      %1126 = vmatpush1.bf16.xpose.msra.mxu0 0
      %1127 = vmatprep.mubr.bf16.mxu0 0
      %1128 = vmatmul.mubr.bf16.gmra.mrb[0].mxu0 %v1090
      %v1129 = vpop.f32.mrb[0].mxu0
      %v1130 = vadd.f32 0.0, %v1129
      %v1131 = vpop.f32.mrb[0].mxu0
      %v1132 = vpop.f32.mrb[0].mxu0
      %v1133 = vpop.f32.mrb[0].mxu0
      %1134 = vdwg.mxu0
      %v1135 = vsel %vm799, -1e+20, %v1130
      %v1136 = vsel %vm752, %v1135, -inf
      %1137 = vmax.xlane.f32.xlu0 %v1136
      %v1138 = vpop.xlane.xlu0 %1137
      %v1139 = vsub.f32 %v1135, %v1138
      %v1140 = vmul.f32 %v1139, 1.442695
      %v1141 = vpow.pop %v1140
      %v1142 = vsel %vm752, %v1141, 0.0
      %1143 = vadd.xlane.f32.xlu0 %v1142
      %v1144 = vpop.xlane.xlu0 %1143
      %v1145 = vrcp.pop %v1144
      %v1146 = vmul.f32 %v1141, %v1145
      %v1147 = vpack.c.bf16 %v1146, %v1146
      %1148 = vrot.lane.b32.xlu0 %v748, 40
      %v1149 = vpop.permute.xlu0 %1148
      %v1151 = vsel %vm752, %v1147, 0
      %v1154 = vsel %vm818, %v1149, 0
      %1156 = vmatprep.subr.bf16.mxu0 0
      %1157 = vmatpush1.bf16.msra.mxu0 %v1154
      %1158 = vmatprep.subr.bf16.mxu0 0
      %1159 = vmatpush1.bf16.msra.mxu0 0
      %1160 = vmatprep.subr.bf16.mxu0 0
      %1161 = vmatpush1.bf16.msra.mxu0 0
      %1162 = vmatprep.subr.bf16.mxu0 0
      %1163 = vmatpush1.bf16.msra.mxu0 0
      %1164 = vmatprep.subr.bf16.mxu0 0
      %1165 = vmatpush1.bf16.msra.mxu0 0
      %1166 = vmatprep.subr.bf16.mxu0 0
      %1167 = vmatpush1.bf16.msra.mxu0 0
      %1168 = vmatprep.subr.bf16.mxu0 0
      %1169 = vmatpush1.bf16.msra.mxu0 0
      %1170 = vmatprep.subr.bf16.mxu0 0
      %1171 = vmatpush1.bf16.msra.mxu0 0
      %1172 = vmatprep.subr.bf16.mxu0 0
      %1173 = vmatpush1.bf16.msra.mxu0 0
      %1174 = vmatprep.subr.bf16.mxu0 0
      %1175 = vmatpush1.bf16.msra.mxu0 0
      %1176 = vmatprep.subr.bf16.mxu0 0
      %1177 = vmatpush1.bf16.msra.mxu0 0
      %1178 = vmatprep.subr.bf16.mxu0 0
      %1179 = vmatpush1.bf16.msra.mxu0 0
      %1180 = vmatprep.subr.bf16.mxu0 0
      %1181 = vmatpush1.bf16.msra.mxu0 0
      %1182 = vmatprep.subr.bf16.mxu0 0
      %1183 = vmatpush1.bf16.msra.mxu0 0
      %1184 = vmatprep.subr.bf16.mxu0 0
      %1185 = vmatpush1.bf16.msra.mxu0 0
      %1186 = vmatprep.subr.bf16.mxu0 0
      %1187 = vmatpush1.bf16.msra.mxu0 0
      %1188 = vmatprep.mubr.bf16.mxu0 0
      %1189 = vmatmul.mubr.bf16.gmra.mrb[0].mxu0 %v1151
      %v1190 = vpop.f32.mrb[0].mxu0
      %v1191 = vadd.f32 0.0, %v1190
      %v1192 = vpop.f32.mrb[0].mxu0
      %v1193 = vpop.f32.mrb[0].mxu0
      %v1194 = vpop.f32.mrb[0].mxu0
      %1195 = vdwg.mxu0
      %1197 = vrot.lane.b32.xlu0 %v969, 8
      %v1198 = vpop.permute.xlu0 %1197
      %1201 = vrot.lane.b32.xlu0 %v1080, 16
      %v1202 = vpop.permute.xlu0 %1201
      %1205 = vrot.lane.b32.xlu0 %v1191, 24
      %v1206 = vpop.permute.xlu0 %1205
      %v1208 = vsel %vm752, %v857, %v1198
      %vm1209 = vcmask 130048
      %v1210 = vsel %vm1209, %v1208, %v1202
      %vm1211 = vcmask 195584
      %v1212 = vsel %vm1211, %v1210, %v1206
      %v1213 = vpack.c.bf16 %v1212, %v1212
      %v1215 = vlaneseq
      %v1216 = vshrl.u32 %v1215, 7
      %v1217 = vsub.s32 0, %v1216
      %v1218 = vrot.slane %v687, %v1217
      %v1224 = vunpack.c.l.b16 %v683
      %v1225 = vunpack.c.l.b16 %v684
      %v1226 = vunpack.c.l.b16 %v685
      %v1227 = vunpack.c.l.b16 %v686
      %v1228 = vpack.c.b16 %v1225, %v1224
      %v1229 = vpack.c.b16 %v1227, %v1226
      %v1233 = vsel %vm702, %v1213, 0
      %1235 = vmatprep.subr.bf16.mxu0 0
      %1236 = vmatpush1.bf16.msra.mxu0 %v1228
      %1237 = vmatprep.subr.bf16.mxu0 0
      %1238 = vmatpush1.bf16.msra.mxu0 %v1229
      %1239 = vmatprep.subr.bf16.mxu0 0
      %1240 = vmatpush1.bf16.msra.mxu0 0
      %1241 = vmatprep.subr.bf16.mxu0 0
      %1242 = vmatpush1.bf16.msra.mxu0 0
      %1243 = vmatprep.subr.bf16.mxu0 0
      %1244 = vmatpush1.bf16.msra.mxu0 0
      %1245 = vmatprep.subr.bf16.mxu0 0
      %1246 = vmatpush1.bf16.msra.mxu0 0
      %1247 = vmatprep.subr.bf16.mxu0 0
      %1248 = vmatpush1.bf16.msra.mxu0 0
      %1249 = vmatprep.subr.bf16.mxu0 0
      %1250 = vmatpush1.bf16.msra.mxu0 0
      %1251 = vmatprep.subr.bf16.mxu0 0
      %1252 = vmatpush1.bf16.msra.mxu0 0
      %1253 = vmatprep.subr.bf16.mxu0 0
      %1254 = vmatpush1.bf16.msra.mxu0 0
      %1255 = vmatprep.subr.bf16.mxu0 0
      %1256 = vmatpush1.bf16.msra.mxu0 0
      %1257 = vmatprep.subr.bf16.mxu0 0
      %1258 = vmatpush1.bf16.msra.mxu0 0
      %1259 = vmatprep.subr.bf16.mxu0 0
      %1260 = vmatpush1.bf16.msra.mxu0 0
      %1261 = vmatprep.subr.bf16.mxu0 0
      %1262 = vmatpush1.bf16.msra.mxu0 0
      %1263 = vmatprep.subr.bf16.mxu0 0
      %1264 = vmatpush1.bf16.msra.mxu0 0
      %1265 = vmatprep.subr.bf16.mxu0 0
      %1266 = vmatpush1.bf16.msra.mxu0 0
      %1267 = vmatprep.mubr.bf16.mxu0 0
      %1268 = vmatmul.mubr.bf16.gmra.mrb[0].mxu0 %v1233
      %v1269 = vpop.f32.mrb[0].mxu0
      %v1270 = vadd.f32 %v1218, %v1269
      %v1271 = vpop.f32.mrb[0].mxu0
      %v1272 = vpop.f32.mrb[0].mxu0
      %v1273 = vpop.f32.mrb[0].mxu0
      %1274 = vdwg.mxu0
      %v1275 = vadd.f32 %v1270, %v677
      %v1276 = vld [vmem:[%s7] sm:$0x1]
      %v1277 = vld [vmem:[%s8] sm:$0x1]
      %v1278 = vsel %vm702, %v1275, 0.0
      %1279 = vadd.xlane.f32.xlu0 %v1278
      %v1280 = vpop.xlane.xlu0 %1279
      %v1281 = vrcp.pop 32.0
      %v1282 = vmul.f32 %v1280, %v1281
      %v1283 = vsub.f32 %v1275, %v1282
      %v1284 = vmul.f32 %v1283, %v1283
      %v1285 = vsel %vm702, %v1284, 0.0
      %1286 = vadd.xlane.f32.xlu0 %v1285
      %v1287 = vpop.xlane.xlu0 %1286
      %v1288 = vmul.f32 %v1287, %v1281
      %v1289 = vadd.f32 %v1288, 1e-05
      %v1290 = vrsqrt.pop %v1289
      %v1291 = vmul.f32 %v1283, %v1290
      %v1293 = vlaneseq
      %v1294 = vshrl.u32 %v1293, 7
      %v1295 = vsub.s32 0, %v1294
      %v1296 = vrot.slane %v1276, %v1295
      %v1298 = vmul.f32 %v1291, %v1296
      %v1300 = vlaneseq
      %v1301 = vshrl.u32 %v1300, 7
      %v1302 = vsub.s32 0, %v1301
      %v1303 = vrot.slane %v1277, %v1302
      %v1305 = vadd.f32 %v1298, %v1303
      %v1306 = vld [vmem:[%s9] sm:$0xf]
      %v1307 = vld [vmem:[%s9 + $0x4] sm:$0xf]
      %v1308 = vld [vmem:[%s9 + $0x8] sm:$0xf]
      %v1309 = vld [vmem:[%s9 + $0xc] sm:$0xf]
      %v1310 = vld [vmem:[%s10] sm:$0xf]
      %v1311 = vld [vmem:[%s10 + $0x4] sm:$0xf]
      %v1312 = vld [vmem:[%s10 + $0x8] sm:$0xf]
      %v1313 = vld [vmem:[%s10 + $0xc] sm:$0xf]
      %v1314 = vld [vmem:[%s11] sm:$0x1]
      %v1315 = vld [vmem:[%s671] sm:$0xff]
      %v1316 = vpack.c.bf16 %v1305, %v1305
      %v1321 = vunpack.c.l.b16 %v1306
      %v1322 = vunpack.c.l.b16 %v1307
      %v1323 = vunpack.c.l.b16 %v1308
      %v1324 = vunpack.c.l.b16 %v1309
      %v1325 = vpack.c.b16 %v1322, %v1321
      %v1326 = vpack.c.b16 %v1324, %v1323
      %v1330 = vsel %vm702, %v1316, 0
      %1332 = vmatprep.subr.bf16.mxu0 0
      %1333 = vmatpush1.bf16.msra.mxu0 %v1325
      %1334 = vmatprep.subr.bf16.mxu0 0
      %1335 = vmatpush1.bf16.msra.mxu0 %v1326
      %1336 = vmatprep.subr.bf16.mxu0 0
      %1337 = vmatpush1.bf16.msra.mxu0 0
      %1338 = vmatprep.subr.bf16.mxu0 0
      %1339 = vmatpush1.bf16.msra.mxu0 0
      %1340 = vmatprep.subr.bf16.mxu0 0
      %1341 = vmatpush1.bf16.msra.mxu0 0
      %1342 = vmatprep.subr.bf16.mxu0 0
      %1343 = vmatpush1.bf16.msra.mxu0 0
      %1344 = vmatprep.subr.bf16.mxu0 0
      %1345 = vmatpush1.bf16.msra.mxu0 0
      %1346 = vmatprep.subr.bf16.mxu0 0
      %1347 = vmatpush1.bf16.msra.mxu0 0
      %1348 = vmatprep.subr.bf16.mxu0 0
      %1349 = vmatpush1.bf16.msra.mxu0 0
      %1350 = vmatprep.subr.bf16.mxu0 0
      %1351 = vmatpush1.bf16.msra.mxu0 0
      %1352 = vmatprep.subr.bf16.mxu0 0
      %1353 = vmatpush1.bf16.msra.mxu0 0
      %1354 = vmatprep.subr.bf16.mxu0 0
      %1355 = vmatpush1.bf16.msra.mxu0 0
      %1356 = vmatprep.subr.bf16.mxu0 0
      %1357 = vmatpush1.bf16.msra.mxu0 0
      %1358 = vmatprep.subr.bf16.mxu0 0
      %1359 = vmatpush1.bf16.msra.mxu0 0
      %1360 = vmatprep.subr.bf16.mxu0 0
      %1361 = vmatpush1.bf16.msra.mxu0 0
      %1362 = vmatprep.subr.bf16.mxu0 0
      %1363 = vmatpush1.bf16.msra.mxu0 0
      %1364 = vmatprep.mubr.bf16.mxu0 0
      %1365 = vmatmul.mubr.bf16.gmra.mrb[0].mxu0 %v1330
      %v1366 = vpop.f32.mrb[0].mxu0
      %v1367 = vadd.f32 0.0, %v1366
      %v1368 = vpop.f32.mrb[0].mxu0
      %v1369 = vpop.f32.mrb[0].mxu0
      %v1370 = vpop.f32.mrb[0].mxu0
      %1371 = vdwg.mxu0
      %v1372 = vpack.c.bf16 %v678, %v678
      %1373 = vrot.lane.b32.xlu0 %v1325, 96
      %v1374 = vpop.permute.xlu0 %1373
      %1375 = vrot.lane.b32.xlu0 %v1326, 96
      %v1376 = vpop.permute.xlu0 %1375
      %v1380 = vsel %vm702, %v1372, 0
      %1382 = vmatprep.subr.bf16.mxu0 0
      %1383 = vmatpush1.bf16.msra.mxu0 %v1374
      %1384 = vmatprep.subr.bf16.mxu0 0
      %1385 = vmatpush1.bf16.msra.mxu0 %v1376
      %1386 = vmatprep.subr.bf16.mxu0 0
      %1387 = vmatpush1.bf16.msra.mxu0 0
      %1388 = vmatprep.subr.bf16.mxu0 0
      %1389 = vmatpush1.bf16.msra.mxu0 0
      %1390 = vmatprep.subr.bf16.mxu0 0
      %1391 = vmatpush1.bf16.msra.mxu0 0
      %1392 = vmatprep.subr.bf16.mxu0 0
      %1393 = vmatpush1.bf16.msra.mxu0 0
      %1394 = vmatprep.subr.bf16.mxu0 0
      %1395 = vmatpush1.bf16.msra.mxu0 0
      %1396 = vmatprep.subr.bf16.mxu0 0
      %1397 = vmatpush1.bf16.msra.mxu0 0
      %1398 = vmatprep.subr.bf16.mxu0 0
      %1399 = vmatpush1.bf16.msra.mxu0 0
      %1400 = vmatprep.subr.bf16.mxu0 0
      %1401 = vmatpush1.bf16.msra.mxu0 0
      %1402 = vmatprep.subr.bf16.mxu0 0
      %1403 = vmatpush1.bf16.msra.mxu0 0
      %1404 = vmatprep.subr.bf16.mxu0 0
      %1405 = vmatpush1.bf16.msra.mxu0 0
      %1406 = vmatprep.subr.bf16.mxu0 0
      %1407 = vmatpush1.bf16.msra.mxu0 0
      %1408 = vmatprep.subr.bf16.mxu0 0
      %1409 = vmatpush1.bf16.msra.mxu0 0
      %1410 = vmatprep.subr.bf16.mxu0 0
      %1411 = vmatpush1.bf16.msra.mxu0 0
      %1412 = vmatprep.subr.bf16.mxu0 0
      %1413 = vmatpush1.bf16.msra.mxu0 0
      %1414 = vmatprep.mubr.bf16.mxu0 0
      %1415 = vmatmul.mubr.bf16.gmra.mrb[0].mxu0 %v1380
      %v1416 = vpop.f32.mrb[0].mxu0
      %v1417 = vadd.f32 0.0, %v1416
      %v1418 = vpop.f32.mrb[0].mxu0
      %v1419 = vpop.f32.mrb[0].mxu0
      %v1420 = vpop.f32.mrb[0].mxu0
      %1421 = vdwg.mxu0
      %v1422 = vmul.f32 %v1367, 0.35355338
      %v1423 = vpack.c.bf16 %v1422, %v1422
      %v1424 = vpack.c.bf16 %v1417, %v1417
      %v1426 = vsel %vm752, %v1423, 0
      %v1429 = vsel %vm752, %v1424, 0
      %1431 = vmatprep.subr.bf16.mxu0 0
      %1432 = vmatpush1.bf16.xpose.msra.mxu0 %v1429
      %1433 = vmatprep.subr.bf16.mxu0 0
      %1434 = vmatpush1.bf16.xpose.msra.mxu0 0
      %1435 = vmatprep.subr.bf16.mxu0 0
      %1436 = vmatpush1.bf16.xpose.msra.mxu0 0
      %1437 = vmatprep.subr.bf16.mxu0 0
      %1438 = vmatpush1.bf16.xpose.msra.mxu0 0
      %1439 = vmatprep.subr.bf16.mxu0 0
      %1440 = vmatpush1.bf16.xpose.msra.mxu0 0
      %1441 = vmatprep.subr.bf16.mxu0 0
      %1442 = vmatpush1.bf16.xpose.msra.mxu0 0
      %1443 = vmatprep.subr.bf16.mxu0 0
      %1444 = vmatpush1.bf16.xpose.msra.mxu0 0
      %1445 = vmatprep.subr.bf16.mxu0 0
      %1446 = vmatpush1.bf16.xpose.msra.mxu0 0
      %1447 = vmatprep.subr.bf16.mxu0 0
      %1448 = vmatpush1.bf16.xpose.msra.mxu0 0
      %1449 = vmatprep.subr.bf16.mxu0 0
      %1450 = vmatpush1.bf16.xpose.msra.mxu0 0
      %1451 = vmatprep.subr.bf16.mxu0 0
      %1452 = vmatpush1.bf16.xpose.msra.mxu0 0
      %1453 = vmatprep.subr.bf16.mxu0 0
      %1454 = vmatpush1.bf16.xpose.msra.mxu0 0
      %1455 = vmatprep.subr.bf16.mxu0 0
      %1456 = vmatpush1.bf16.xpose.msra.mxu0 0
      %1457 = vmatprep.subr.bf16.mxu0 0
      %1458 = vmatpush1.bf16.xpose.msra.mxu0 0
      %1459 = vmatprep.subr.bf16.mxu0 0
      %1460 = vmatpush1.bf16.xpose.msra.mxu0 0
      %1461 = vmatprep.subr.bf16.mxu0 0
      %1462 = vmatpush1.bf16.xpose.msra.mxu0 0
      %1463 = vmatprep.mubr.bf16.mxu0 0
      %1464 = vmatmul.mubr.bf16.gmra.mrb[0].mxu0 %v1426
      %v1465 = vpop.f32.mrb[0].mxu0
      %v1466 = vadd.f32 0.0, %v1465
      %v1467 = vpop.f32.mrb[0].mxu0
      %v1468 = vpop.f32.mrb[0].mxu0
      %v1469 = vpop.f32.mrb[0].mxu0
      %1470 = vdwg.mxu0
      %vm1471 = vcmp.eq.f32.partialorder %v1315, 0.0
      %v1472 = vsel %vm1471, -1e+20, %v1466
      %v1473 = vsel %vm752, %v1472, -inf
      %1474 = vmax.xlane.f32.xlu0 %v1473
      %v1475 = vpop.xlane.xlu0 %1474
      %v1476 = vsub.f32 %v1472, %v1475
      %v1477 = vmul.f32 %v1476, 1.442695
      %v1478 = vpow.pop %v1477
      %v1479 = vsel %vm752, %v1478, 0.0
      %1480 = vadd.xlane.f32.xlu0 %v1479
      %v1481 = vpop.xlane.xlu0 %1480
      %v1482 = vrcp.pop %v1481
      %v1483 = vmul.f32 %v1478, %v1482
      %v1484 = vpack.c.bf16 %v1483, %v1483
      %1486 = vrot.lane.b32.xlu0 %v1424, 96
      %v1487 = vpop.permute.xlu0 %1486
      %v1489 = vsel %vm752, %v1484, 0
      %v1492 = vsel %vm818, %v1487, 0
      %1494 = vmatprep.subr.bf16.mxu0 0
      %1495 = vmatpush1.bf16.msra.mxu0 %v1492
      %1496 = vmatprep.subr.bf16.mxu0 0
      %1497 = vmatpush1.bf16.msra.mxu0 0
      %1498 = vmatprep.subr.bf16.mxu0 0
      %1499 = vmatpush1.bf16.msra.mxu0 0
      %1500 = vmatprep.subr.bf16.mxu0 0
      %1501 = vmatpush1.bf16.msra.mxu0 0
      %1502 = vmatprep.subr.bf16.mxu0 0
      %1503 = vmatpush1.bf16.msra.mxu0 0
      %1504 = vmatprep.subr.bf16.mxu0 0
      %1505 = vmatpush1.bf16.msra.mxu0 0
      %1506 = vmatprep.subr.bf16.mxu0 0
      %1507 = vmatpush1.bf16.msra.mxu0 0
      %1508 = vmatprep.subr.bf16.mxu0 0
      %1509 = vmatpush1.bf16.msra.mxu0 0
      %1510 = vmatprep.subr.bf16.mxu0 0
      %1511 = vmatpush1.bf16.msra.mxu0 0
      %1512 = vmatprep.subr.bf16.mxu0 0
      %1513 = vmatpush1.bf16.msra.mxu0 0
      %1514 = vmatprep.subr.bf16.mxu0 0
      %1515 = vmatpush1.bf16.msra.mxu0 0
      %1516 = vmatprep.subr.bf16.mxu0 0
      %1517 = vmatpush1.bf16.msra.mxu0 0
      %1518 = vmatprep.subr.bf16.mxu0 0
      %1519 = vmatpush1.bf16.msra.mxu0 0
      %1520 = vmatprep.subr.bf16.mxu0 0
      %1521 = vmatpush1.bf16.msra.mxu0 0
      %1522 = vmatprep.subr.bf16.mxu0 0
      %1523 = vmatpush1.bf16.msra.mxu0 0
      %1524 = vmatprep.subr.bf16.mxu0 0
      %1525 = vmatpush1.bf16.msra.mxu0 0
      %1526 = vmatprep.mubr.bf16.mxu0 0
      %1527 = vmatmul.mubr.bf16.gmra.mrb[0].mxu0 %v1489
      %v1528 = vpop.f32.mrb[0].mxu0
      %v1529 = vadd.f32 0.0, %v1528
      %v1530 = vpop.f32.mrb[0].mxu0
      %v1531 = vpop.f32.mrb[0].mxu0
      %v1532 = vpop.f32.mrb[0].mxu0
      %1533 = vdwg.mxu0
      %1535 = vrot.lane.b32.xlu0 %v1423, 120
      %v1536 = vpop.permute.xlu0 %1535
      %1537 = vrot.lane.b32.xlu0 %v1424, 120
      %v1538 = vpop.permute.xlu0 %1537
      %v1540 = vsel %vm752, %v1536, 0
      %v1543 = vsel %vm752, %v1538, 0
      %1545 = vmatprep.subr.bf16.mxu0 0
      %1546 = vmatpush1.bf16.xpose.msra.mxu0 %v1543
      %1547 = vmatprep.subr.bf16.mxu0 0
      %1548 = vmatpush1.bf16.xpose.msra.mxu0 0
      %1549 = vmatprep.subr.bf16.mxu0 0
      %1550 = vmatpush1.bf16.xpose.msra.mxu0 0
      %1551 = vmatprep.subr.bf16.mxu0 0
      %1552 = vmatpush1.bf16.xpose.msra.mxu0 0
      %1553 = vmatprep.subr.bf16.mxu0 0
      %1554 = vmatpush1.bf16.xpose.msra.mxu0 0
      %1555 = vmatprep.subr.bf16.mxu0 0
      %1556 = vmatpush1.bf16.xpose.msra.mxu0 0
      %1557 = vmatprep.subr.bf16.mxu0 0
      %1558 = vmatpush1.bf16.xpose.msra.mxu0 0
      %1559 = vmatprep.subr.bf16.mxu0 0
      %1560 = vmatpush1.bf16.xpose.msra.mxu0 0
      %1561 = vmatprep.subr.bf16.mxu0 0
      %1562 = vmatpush1.bf16.xpose.msra.mxu0 0
      %1563 = vmatprep.subr.bf16.mxu0 0
      %1564 = vmatpush1.bf16.xpose.msra.mxu0 0
      %1565 = vmatprep.subr.bf16.mxu0 0
      %1566 = vmatpush1.bf16.xpose.msra.mxu0 0
      %1567 = vmatprep.subr.bf16.mxu0 0
      %1568 = vmatpush1.bf16.xpose.msra.mxu0 0
      %1569 = vmatprep.subr.bf16.mxu0 0
      %1570 = vmatpush1.bf16.xpose.msra.mxu0 0
      %1571 = vmatprep.subr.bf16.mxu0 0
      %1572 = vmatpush1.bf16.xpose.msra.mxu0 0
      %1573 = vmatprep.subr.bf16.mxu0 0
      %1574 = vmatpush1.bf16.xpose.msra.mxu0 0
      %1575 = vmatprep.subr.bf16.mxu0 0
      %1576 = vmatpush1.bf16.xpose.msra.mxu0 0
      %1577 = vmatprep.mubr.bf16.mxu0 0
      %1578 = vmatmul.mubr.bf16.gmra.mrb[0].mxu0 %v1540
      %v1579 = vpop.f32.mrb[0].mxu0
      %v1580 = vadd.f32 0.0, %v1579
      %v1581 = vpop.f32.mrb[0].mxu0
      %v1582 = vpop.f32.mrb[0].mxu0
      %v1583 = vpop.f32.mrb[0].mxu0
      %1584 = vdwg.mxu0
      %v1585 = vsel %vm1471, -1e+20, %v1580
      %v1586 = vsel %vm752, %v1585, -inf
      %1587 = vmax.xlane.f32.xlu0 %v1586
      %v1588 = vpop.xlane.xlu0 %1587
      %v1589 = vsub.f32 %v1585, %v1588
      %v1590 = vmul.f32 %v1589, 1.442695
      %v1591 = vpow.pop %v1590
      %v1592 = vsel %vm752, %v1591, 0.0
      %1593 = vadd.xlane.f32.xlu0 %v1592
      %v1594 = vpop.xlane.xlu0 %1593
      %v1595 = vrcp.pop %v1594
      %v1596 = vmul.f32 %v1591, %v1595
      %v1597 = vpack.c.bf16 %v1596, %v1596
      %1598 = vrot.lane.b32.xlu0 %v1424, 88
      %v1599 = vpop.permute.xlu0 %1598
      %v1601 = vsel %vm752, %v1597, 0
      %v1604 = vsel %vm818, %v1599, 0
      %1606 = vmatprep.subr.bf16.mxu0 0
      %1607 = vmatpush1.bf16.msra.mxu0 %v1604
      %1608 = vmatprep.subr.bf16.mxu0 0
      %1609 = vmatpush1.bf16.msra.mxu0 0
      %1610 = vmatprep.subr.bf16.mxu0 0
      %1611 = vmatpush1.bf16.msra.mxu0 0
      %1612 = vmatprep.subr.bf16.mxu0 0
      %1613 = vmatpush1.bf16.msra.mxu0 0
      %1614 = vmatprep.subr.bf16.mxu0 0
      %1615 = vmatpush1.bf16.msra.mxu0 0
      %1616 = vmatprep.subr.bf16.mxu0 0
      %1617 = vmatpush1.bf16.msra.mxu0 0
      %1618 = vmatprep.subr.bf16.mxu0 0
      %1619 = vmatpush1.bf16.msra.mxu0 0
      %1620 = vmatprep.subr.bf16.mxu0 0
      %1621 = vmatpush1.bf16.msra.mxu0 0
      %1622 = vmatprep.subr.bf16.mxu0 0
      %1623 = vmatpush1.bf16.msra.mxu0 0
      %1624 = vmatprep.subr.bf16.mxu0 0
      %1625 = vmatpush1.bf16.msra.mxu0 0
      %1626 = vmatprep.subr.bf16.mxu0 0
      %1627 = vmatpush1.bf16.msra.mxu0 0
      %1628 = vmatprep.subr.bf16.mxu0 0
      %1629 = vmatpush1.bf16.msra.mxu0 0
      %1630 = vmatprep.subr.bf16.mxu0 0
      %1631 = vmatpush1.bf16.msra.mxu0 0
      %1632 = vmatprep.subr.bf16.mxu0 0
      %1633 = vmatpush1.bf16.msra.mxu0 0
      %1634 = vmatprep.subr.bf16.mxu0 0
      %1635 = vmatpush1.bf16.msra.mxu0 0
      %1636 = vmatprep.subr.bf16.mxu0 0
      %1637 = vmatpush1.bf16.msra.mxu0 0
      %1638 = vmatprep.mubr.bf16.mxu0 0
      %1639 = vmatmul.mubr.bf16.gmra.mrb[0].mxu0 %v1601
      %v1640 = vpop.f32.mrb[0].mxu0
      %v1641 = vadd.f32 0.0, %v1640
      %v1642 = vpop.f32.mrb[0].mxu0
      %v1643 = vpop.f32.mrb[0].mxu0
      %v1644 = vpop.f32.mrb[0].mxu0
      %1645 = vdwg.mxu0
      %1646 = vrot.lane.b32.xlu0 %v1423, 112
      %v1647 = vpop.permute.xlu0 %1646
      %1648 = vrot.lane.b32.xlu0 %v1424, 112
      %v1649 = vpop.permute.xlu0 %1648
      %v1651 = vsel %vm752, %v1647, 0
      %v1654 = vsel %vm752, %v1649, 0
      %1656 = vmatprep.subr.bf16.mxu0 0
      %1657 = vmatpush1.bf16.xpose.msra.mxu0 %v1654
      %1658 = vmatprep.subr.bf16.mxu0 0
      %1659 = vmatpush1.bf16.xpose.msra.mxu0 0
      %1660 = vmatprep.subr.bf16.mxu0 0
      %1661 = vmatpush1.bf16.xpose.msra.mxu0 0
      %1662 = vmatprep.subr.bf16.mxu0 0
      %1663 = vmatpush1.bf16.xpose.msra.mxu0 0
      %1664 = vmatprep.subr.bf16.mxu0 0
      %1665 = vmatpush1.bf16.xpose.msra.mxu0 0
      %1666 = vmatprep.subr.bf16.mxu0 0
      %1667 = vmatpush1.bf16.xpose.msra.mxu0 0
      %1668 = vmatprep.subr.bf16.mxu0 0
      %1669 = vmatpush1.bf16.xpose.msra.mxu0 0
      %1670 = vmatprep.subr.bf16.mxu0 0
      %1671 = vmatpush1.bf16.xpose.msra.mxu0 0
      %1672 = vmatprep.subr.bf16.mxu0 0
      %1673 = vmatpush1.bf16.xpose.msra.mxu0 0
      %1674 = vmatprep.subr.bf16.mxu0 0
      %1675 = vmatpush1.bf16.xpose.msra.mxu0 0
      %1676 = vmatprep.subr.bf16.mxu0 0
      %1677 = vmatpush1.bf16.xpose.msra.mxu0 0
      %1678 = vmatprep.subr.bf16.mxu0 0
      %1679 = vmatpush1.bf16.xpose.msra.mxu0 0
      %1680 = vmatprep.subr.bf16.mxu0 0
      %1681 = vmatpush1.bf16.xpose.msra.mxu0 0
      %1682 = vmatprep.subr.bf16.mxu0 0
      %1683 = vmatpush1.bf16.xpose.msra.mxu0 0
      %1684 = vmatprep.subr.bf16.mxu0 0
      %1685 = vmatpush1.bf16.xpose.msra.mxu0 0
      %1686 = vmatprep.subr.bf16.mxu0 0
      %1687 = vmatpush1.bf16.xpose.msra.mxu0 0
      %1688 = vmatprep.mubr.bf16.mxu0 0
      %1689 = vmatmul.mubr.bf16.gmra.mrb[0].mxu0 %v1651
      %v1690 = vpop.f32.mrb[0].mxu0
      %v1691 = vadd.f32 0.0, %v1690
      %v1692 = vpop.f32.mrb[0].mxu0
      %v1693 = vpop.f32.mrb[0].mxu0
      %v1694 = vpop.f32.mrb[0].mxu0
      %1695 = vdwg.mxu0
      %v1696 = vsel %vm1471, -1e+20, %v1691
      %v1697 = vsel %vm752, %v1696, -inf
      %1698 = vmax.xlane.f32.xlu0 %v1697
      %v1699 = vpop.xlane.xlu0 %1698
      %v1700 = vsub.f32 %v1696, %v1699
      %v1701 = vmul.f32 %v1700, 1.442695
      %v1702 = vpow.pop %v1701
      %v1703 = vsel %vm752, %v1702, 0.0
      %1704 = vadd.xlane.f32.xlu0 %v1703
      %v1705 = vpop.xlane.xlu0 %1704
      %v1706 = vrcp.pop %v1705
      %v1707 = vmul.f32 %v1702, %v1706
      %v1708 = vpack.c.bf16 %v1707, %v1707
      %1709 = vrot.lane.b32.xlu0 %v1424, 80
      %v1710 = vpop.permute.xlu0 %1709
      %v1712 = vsel %vm752, %v1708, 0
      %v1715 = vsel %vm818, %v1710, 0
      %1717 = vmatprep.subr.bf16.mxu0 0
      %1718 = vmatpush1.bf16.msra.mxu0 %v1715
      %1719 = vmatprep.subr.bf16.mxu0 0
      %1720 = vmatpush1.bf16.msra.mxu0 0
      %1721 = vmatprep.subr.bf16.mxu0 0
      %1722 = vmatpush1.bf16.msra.mxu0 0
      %1723 = vmatprep.subr.bf16.mxu0 0
      %1724 = vmatpush1.bf16.msra.mxu0 0
      %1725 = vmatprep.subr.bf16.mxu0 0
      %1726 = vmatpush1.bf16.msra.mxu0 0
      %1727 = vmatprep.subr.bf16.mxu0 0
      %1728 = vmatpush1.bf16.msra.mxu0 0
      %1729 = vmatprep.subr.bf16.mxu0 0
      %1730 = vmatpush1.bf16.msra.mxu0 0
      %1731 = vmatprep.subr.bf16.mxu0 0
      %1732 = vmatpush1.bf16.msra.mxu0 0
      %1733 = vmatprep.subr.bf16.mxu0 0
      %1734 = vmatpush1.bf16.msra.mxu0 0
      %1735 = vmatprep.subr.bf16.mxu0 0
      %1736 = vmatpush1.bf16.msra.mxu0 0
      %1737 = vmatprep.subr.bf16.mxu0 0
      %1738 = vmatpush1.bf16.msra.mxu0 0
      %1739 = vmatprep.subr.bf16.mxu0 0
      %1740 = vmatpush1.bf16.msra.mxu0 0
      %1741 = vmatprep.subr.bf16.mxu0 0
      %1742 = vmatpush1.bf16.msra.mxu0 0
      %1743 = vmatprep.subr.bf16.mxu0 0
      %1744 = vmatpush1.bf16.msra.mxu0 0
      %1745 = vmatprep.subr.bf16.mxu0 0
      %1746 = vmatpush1.bf16.msra.mxu0 0
      %1747 = vmatprep.subr.bf16.mxu0 0
      %1748 = vmatpush1.bf16.msra.mxu0 0
      %1749 = vmatprep.mubr.bf16.mxu0 0
      %1750 = vmatmul.mubr.bf16.gmra.mrb[0].mxu0 %v1712
      %v1751 = vpop.f32.mrb[0].mxu0
      %v1752 = vadd.f32 0.0, %v1751
      %v1753 = vpop.f32.mrb[0].mxu0
      %v1754 = vpop.f32.mrb[0].mxu0
      %v1755 = vpop.f32.mrb[0].mxu0
      %1756 = vdwg.mxu0
      %1757 = vrot.lane.b32.xlu0 %v1423, 104
      %v1758 = vpop.permute.xlu0 %1757
      %1759 = vrot.lane.b32.xlu0 %v1424, 104
      %v1760 = vpop.permute.xlu0 %1759
      %v1762 = vsel %vm752, %v1758, 0
      %v1765 = vsel %vm752, %v1760, 0
      %1767 = vmatprep.subr.bf16.mxu0 0
      %1768 = vmatpush1.bf16.xpose.msra.mxu0 %v1765
      %1769 = vmatprep.subr.bf16.mxu0 0
      %1770 = vmatpush1.bf16.xpose.msra.mxu0 0
      %1771 = vmatprep.subr.bf16.mxu0 0
      %1772 = vmatpush1.bf16.xpose.msra.mxu0 0
      %1773 = vmatprep.subr.bf16.mxu0 0
      %1774 = vmatpush1.bf16.xpose.msra.mxu0 0
      %1775 = vmatprep.subr.bf16.mxu0 0
      %1776 = vmatpush1.bf16.xpose.msra.mxu0 0
      %1777 = vmatprep.subr.bf16.mxu0 0
      %1778 = vmatpush1.bf16.xpose.msra.mxu0 0
      %1779 = vmatprep.subr.bf16.mxu0 0
      %1780 = vmatpush1.bf16.xpose.msra.mxu0 0
      %1781 = vmatprep.subr.bf16.mxu0 0
      %1782 = vmatpush1.bf16.xpose.msra.mxu0 0
      %1783 = vmatprep.subr.bf16.mxu0 0
      %1784 = vmatpush1.bf16.xpose.msra.mxu0 0
      %1785 = vmatprep.subr.bf16.mxu0 0
      %1786 = vmatpush1.bf16.xpose.msra.mxu0 0
      %1787 = vmatprep.subr.bf16.mxu0 0
      %1788 = vmatpush1.bf16.xpose.msra.mxu0 0
      %1789 = vmatprep.subr.bf16.mxu0 0
      %1790 = vmatpush1.bf16.xpose.msra.mxu0 0
      %1791 = vmatprep.subr.bf16.mxu0 0
      %1792 = vmatpush1.bf16.xpose.msra.mxu0 0
      %1793 = vmatprep.subr.bf16.mxu0 0
      %1794 = vmatpush1.bf16.xpose.msra.mxu0 0
      %1795 = vmatprep.subr.bf16.mxu0 0
      %1796 = vmatpush1.bf16.xpose.msra.mxu0 0
      %1797 = vmatprep.subr.bf16.mxu0 0
      %1798 = vmatpush1.bf16.xpose.msra.mxu0 0
      %1799 = vmatprep.mubr.bf16.mxu0 0
      %1800 = vmatmul.mubr.bf16.gmra.mrb[0].mxu0 %v1762
      %v1801 = vpop.f32.mrb[0].mxu0
      %v1802 = vadd.f32 0.0, %v1801
      %v1803 = vpop.f32.mrb[0].mxu0
      %v1804 = vpop.f32.mrb[0].mxu0
      %v1805 = vpop.f32.mrb[0].mxu0
      %1806 = vdwg.mxu0
      %v1807 = vsel %vm1471, -1e+20, %v1802
      %v1808 = vsel %vm752, %v1807, -inf
      %1809 = vmax.xlane.f32.xlu0 %v1808
      %v1810 = vpop.xlane.xlu0 %1809
      %v1811 = vsub.f32 %v1807, %v1810
      %v1812 = vmul.f32 %v1811, 1.442695
      %v1813 = vpow.pop %v1812
      %v1814 = vsel %vm752, %v1813, 0.0
      %1815 = vadd.xlane.f32.xlu0 %v1814
      %v1816 = vpop.xlane.xlu0 %1815
      %v1817 = vrcp.pop %v1816
      %v1818 = vmul.f32 %v1813, %v1817
      %v1819 = vpack.c.bf16 %v1818, %v1818
      %1820 = vrot.lane.b32.xlu0 %v1424, 72
      %v1821 = vpop.permute.xlu0 %1820
      %v1823 = vsel %vm752, %v1819, 0
      %v1826 = vsel %vm818, %v1821, 0
      %1828 = vmatprep.subr.bf16.mxu0 0
      %1829 = vmatpush1.bf16.msra.mxu0 %v1826
      %1830 = vmatprep.subr.bf16.mxu0 0
      %1831 = vmatpush1.bf16.msra.mxu0 0
      %1832 = vmatprep.subr.bf16.mxu0 0
      %1833 = vmatpush1.bf16.msra.mxu0 0
      %1834 = vmatprep.subr.bf16.mxu0 0
      %1835 = vmatpush1.bf16.msra.mxu0 0
      %1836 = vmatprep.subr.bf16.mxu0 0
      %1837 = vmatpush1.bf16.msra.mxu0 0
      %1838 = vmatprep.subr.bf16.mxu0 0
      %1839 = vmatpush1.bf16.msra.mxu0 0
      %1840 = vmatprep.subr.bf16.mxu0 0
      %1841 = vmatpush1.bf16.msra.mxu0 0
      %1842 = vmatprep.subr.bf16.mxu0 0
      %1843 = vmatpush1.bf16.msra.mxu0 0
      %1844 = vmatprep.subr.bf16.mxu0 0
      %1845 = vmatpush1.bf16.msra.mxu0 0
      %1846 = vmatprep.subr.bf16.mxu0 0
      %1847 = vmatpush1.bf16.msra.mxu0 0
      %1848 = vmatprep.subr.bf16.mxu0 0
      %1849 = vmatpush1.bf16.msra.mxu0 0
      %1850 = vmatprep.subr.bf16.mxu0 0
      %1851 = vmatpush1.bf16.msra.mxu0 0
      %1852 = vmatprep.subr.bf16.mxu0 0
      %1853 = vmatpush1.bf16.msra.mxu0 0
      %1854 = vmatprep.subr.bf16.mxu0 0
      %1855 = vmatpush1.bf16.msra.mxu0 0
      %1856 = vmatprep.subr.bf16.mxu0 0
      %1857 = vmatpush1.bf16.msra.mxu0 0
      %1858 = vmatprep.subr.bf16.mxu0 0
      %1859 = vmatpush1.bf16.msra.mxu0 0
      %1860 = vmatprep.mubr.bf16.mxu0 0
      %1861 = vmatmul.mubr.bf16.gmra.mrb[0].mxu0 %v1823
      %v1862 = vpop.f32.mrb[0].mxu0
      %v1863 = vadd.f32 0.0, %v1862
      %v1864 = vpop.f32.mrb[0].mxu0
      %v1865 = vpop.f32.mrb[0].mxu0
      %v1866 = vpop.f32.mrb[0].mxu0
      %1867 = vdwg.mxu0
      %1869 = vrot.lane.b32.xlu0 %v1641, 8
      %v1870 = vpop.permute.xlu0 %1869
      %1873 = vrot.lane.b32.xlu0 %v1752, 16
      %v1874 = vpop.permute.xlu0 %1873
      %1877 = vrot.lane.b32.xlu0 %v1863, 24
      %v1878 = vpop.permute.xlu0 %1877
      %v1880 = vsel %vm752, %v1529, %v1870
      %v1881 = vsel %vm1209, %v1880, %v1874
      %v1882 = vsel %vm1211, %v1881, %v1878
      %v1883 = vpack.c.bf16 %v1882, %v1882
      %v1885 = vlaneseq
      %v1886 = vshrl.u32 %v1885, 7
      %v1887 = vsub.s32 0, %v1886
      %v1888 = vrot.slane %v1314, %v1887
      %v1894 = vunpack.c.l.b16 %v1310
      %v1895 = vunpack.c.l.b16 %v1311
      %v1896 = vunpack.c.l.b16 %v1312
      %v1897 = vunpack.c.l.b16 %v1313
      %v1898 = vpack.c.b16 %v1895, %v1894
      %v1899 = vpack.c.b16 %v1897, %v1896
      %v1903 = vsel %vm702, %v1883, 0
      %1905 = vmatprep.subr.bf16.mxu0 0
      %1906 = vmatpush1.bf16.msra.mxu0 %v1898
      %1907 = vmatprep.subr.bf16.mxu0 0
      %1908 = vmatpush1.bf16.msra.mxu0 %v1899
      %1909 = vmatprep.subr.bf16.mxu0 0
      %1910 = vmatpush1.bf16.msra.mxu0 0
      %1911 = vmatprep.subr.bf16.mxu0 0
      %1912 = vmatpush1.bf16.msra.mxu0 0
      %1913 = vmatprep.subr.bf16.mxu0 0
      %1914 = vmatpush1.bf16.msra.mxu0 0
      %1915 = vmatprep.subr.bf16.mxu0 0
      %1916 = vmatpush1.bf16.msra.mxu0 0
      %1917 = vmatprep.subr.bf16.mxu0 0
      %1918 = vmatpush1.bf16.msra.mxu0 0
      %1919 = vmatprep.subr.bf16.mxu0 0
      %1920 = vmatpush1.bf16.msra.mxu0 0
      %1921 = vmatprep.subr.bf16.mxu0 0
      %1922 = vmatpush1.bf16.msra.mxu0 0
      %1923 = vmatprep.subr.bf16.mxu0 0
      %1924 = vmatpush1.bf16.msra.mxu0 0
      %1925 = vmatprep.subr.bf16.mxu0 0
      %1926 = vmatpush1.bf16.msra.mxu0 0
      %1927 = vmatprep.subr.bf16.mxu0 0
      %1928 = vmatpush1.bf16.msra.mxu0 0
      %1929 = vmatprep.subr.bf16.mxu0 0
      %1930 = vmatpush1.bf16.msra.mxu0 0
      %1931 = vmatprep.subr.bf16.mxu0 0
      %1932 = vmatpush1.bf16.msra.mxu0 0
      %1933 = vmatprep.subr.bf16.mxu0 0
      %1934 = vmatpush1.bf16.msra.mxu0 0
      %1935 = vmatprep.subr.bf16.mxu0 0
      %1936 = vmatpush1.bf16.msra.mxu0 0
      %1937 = vmatprep.mubr.bf16.mxu0 0
      %1938 = vmatmul.mubr.bf16.gmra.mrb[0].mxu0 %v1903
      %v1939 = vpop.f32.mrb[0].mxu0
      %v1940 = vadd.f32 %v1888, %v1939
      %v1941 = vpop.f32.mrb[0].mxu0
      %v1942 = vpop.f32.mrb[0].mxu0
      %v1943 = vpop.f32.mrb[0].mxu0
      %1944 = vdwg.mxu0
      %v1945 = vadd.f32 %v1940, %v1305
      %v1946 = vld [vmem:[%s12] sm:$0x1]
      %v1947 = vld [vmem:[%s13] sm:$0x1]
      %v1948 = vsel %vm702, %v1945, 0.0
      %1949 = vadd.xlane.f32.xlu0 %v1948
      %v1950 = vpop.xlane.xlu0 %1949
      %v1951 = vmul.f32 %v1950, %v1281
      %v1952 = vsub.f32 %v1945, %v1951
      %v1953 = vmul.f32 %v1952, %v1952
      %v1954 = vsel %vm702, %v1953, 0.0
      %1955 = vadd.xlane.f32.xlu0 %v1954
      %v1956 = vpop.xlane.xlu0 %1955
      %v1957 = vmul.f32 %v1956, %v1281
      %v1958 = vadd.f32 %v1957, 1e-05
      %v1959 = vrsqrt.pop %v1958
      %v1960 = vmul.f32 %v1952, %v1959
      %v1962 = vlaneseq
      %v1963 = vshrl.u32 %v1962, 7
      %v1964 = vsub.s32 0, %v1963
      %v1965 = vrot.slane %v1946, %v1964
      %v1967 = vmul.f32 %v1960, %v1965
      %v1969 = vlaneseq
      %v1970 = vshrl.u32 %v1969, 7
      %v1971 = vsub.s32 0, %v1970
      %v1972 = vrot.slane %v1947, %v1971
      %v1974 = vadd.f32 %v1967, %v1972
      %v1975 = vld [vmem:[%s14] sm:$0xf]
      %v1976 = vld [vmem:[%s14 + $0x4] sm:$0xf]
      %v1977 = vld [vmem:[%s14 + $0x8] sm:$0xf]
      %v1978 = vld [vmem:[%s14 + $0xc] sm:$0xf]
      %v1979 = vld [vmem:[%s15] sm:$0x1]
      %v1980 = vld [vmem:[%s16] sm:$0xf]
      %v1981 = vld [vmem:[%s16 + $0x4] sm:$0xf]
      %v1982 = vld [vmem:[%s16 + $0x8] sm:$0xf]
      %v1983 = vld [vmem:[%s16 + $0xc] sm:$0xf]
      %v1984 = vld [vmem:[%s16 + $0x10] sm:$0xf]
      %v1985 = vld [vmem:[%s16 + $0x14] sm:$0xf]
      %v1986 = vld [vmem:[%s16 + $0x18] sm:$0xf]
      %v1987 = vld [vmem:[%s16 + $0x1c] sm:$0xf]
      %v1988 = vld [vmem:[%s17] sm:$0x1]
      %v1989 = vpack.c.bf16 %v1974, %v1974
      %v1991 = vlaneseq
      %v1992 = vshrl.u32 %v1991, 7
      %v1993 = vsub.s32 0, %v1992
      %v1994 = vrot.slane %v1979, %v1993
      %v2000 = vunpack.c.l.b16 %v1975
      %v2001 = vunpack.c.l.b16 %v1976
      %v2002 = vunpack.c.l.b16 %v1977
      %v2003 = vunpack.c.l.b16 %v1978
      %v2004 = vpack.c.b16 %v2001, %v2000
      %v2005 = vpack.c.b16 %v2003, %v2002
      %v2009 = vsel %vm702, %v1989, 0
      %2011 = vmatprep.subr.bf16.mxu0 0
      %2012 = vmatpush1.bf16.msra.mxu0 %v2004
      %2013 = vmatprep.subr.bf16.mxu0 0
      %2014 = vmatpush1.bf16.msra.mxu0 %v2005
      %2015 = vmatprep.subr.bf16.mxu0 0
      %2016 = vmatpush1.bf16.msra.mxu0 0
      %2017 = vmatprep.subr.bf16.mxu0 0
      %2018 = vmatpush1.bf16.msra.mxu0 0
      %2019 = vmatprep.subr.bf16.mxu0 0
      %2020 = vmatpush1.bf16.msra.mxu0 0
      %2021 = vmatprep.subr.bf16.mxu0 0
      %2022 = vmatpush1.bf16.msra.mxu0 0
      %2023 = vmatprep.subr.bf16.mxu0 0
      %2024 = vmatpush1.bf16.msra.mxu0 0
      %2025 = vmatprep.subr.bf16.mxu0 0
      %2026 = vmatpush1.bf16.msra.mxu0 0
      %2027 = vmatprep.subr.bf16.mxu0 0
      %2028 = vmatpush1.bf16.msra.mxu0 0
      %2029 = vmatprep.subr.bf16.mxu0 0
      %2030 = vmatpush1.bf16.msra.mxu0 0
      %2031 = vmatprep.subr.bf16.mxu0 0
      %2032 = vmatpush1.bf16.msra.mxu0 0
      %2033 = vmatprep.subr.bf16.mxu0 0
      %2034 = vmatpush1.bf16.msra.mxu0 0
      %2035 = vmatprep.subr.bf16.mxu0 0
      %2036 = vmatpush1.bf16.msra.mxu0 0
      %2037 = vmatprep.subr.bf16.mxu0 0
      %2038 = vmatpush1.bf16.msra.mxu0 0
      %2039 = vmatprep.subr.bf16.mxu0 0
      %2040 = vmatpush1.bf16.msra.mxu0 0
      %2041 = vmatprep.subr.bf16.mxu0 0
      %2042 = vmatpush1.bf16.msra.mxu0 0
      %2043 = vmatprep.mubr.bf16.mxu0 0
      %2044 = vmatmul.mubr.bf16.gmra.mrb[0].mxu0 %v2009
      %v2045 = vpop.f32.mrb[0].mxu0
      %v2046 = vadd.f32 %v1994, %v2045
      %v2047 = vpop.f32.mrb[0].mxu0
      %v2048 = vpop.f32.mrb[0].mxu0
      %v2049 = vpop.f32.mrb[0].mxu0
      %2050 = vdwg.mxu0
      %v2051 = vmax.f32 %v2046, 0.0
      %v2052 = vpack.c.bf16 %v2051, %v2051
      %v2054 = vlaneseq
      %v2055 = vshrl.u32 %v2054, 7
      %v2056 = vsub.s32 0, %v2055
      %v2057 = vrot.slane %v1988, %v2056
      %v2067 = vunpack.c.l.b16 %v1980
      %v2068 = vunpack.c.l.b16 %v1981
      %v2069 = vunpack.c.l.b16 %v1982
      %v2070 = vunpack.c.l.b16 %v1983
      %v2071 = vunpack.c.l.b16 %v1984
      %v2072 = vunpack.c.l.b16 %v1985
      %v2073 = vunpack.c.l.b16 %v1986
      %v2074 = vunpack.c.l.b16 %v1987
      %v2075 = vpack.c.b16 %v2068, %v2067
      %v2076 = vpack.c.b16 %v2070, %v2069
      %v2077 = vpack.c.b16 %v2072, %v2071
      %v2078 = vpack.c.b16 %v2074, %v2073
      %vm2083 = vcmask 523264
      %v2085 = vsel %vm2083, %v2052, 0
      %2087 = vmatprep.subr.bf16.mxu0 0
      %2088 = vmatpush1.bf16.msra.mxu0 %v2075
      %2089 = vmatprep.subr.bf16.mxu0 0
      %2090 = vmatpush1.bf16.msra.mxu0 %v2076
      %2091 = vmatprep.subr.bf16.mxu0 0
      %2092 = vmatpush1.bf16.msra.mxu0 %v2077
      %2093 = vmatprep.subr.bf16.mxu0 0
      %2094 = vmatpush1.bf16.msra.mxu0 %v2078
      %2095 = vmatprep.subr.bf16.mxu0 0
      %2096 = vmatpush1.bf16.msra.mxu0 0
      %2097 = vmatprep.subr.bf16.mxu0 0
      %2098 = vmatpush1.bf16.msra.mxu0 0
      %2099 = vmatprep.subr.bf16.mxu0 0
      %2100 = vmatpush1.bf16.msra.mxu0 0
      %2101 = vmatprep.subr.bf16.mxu0 0
      %2102 = vmatpush1.bf16.msra.mxu0 0
      %2103 = vmatprep.subr.bf16.mxu0 0
      %2104 = vmatpush1.bf16.msra.mxu0 0
      %2105 = vmatprep.subr.bf16.mxu0 0
      %2106 = vmatpush1.bf16.msra.mxu0 0
      %2107 = vmatprep.subr.bf16.mxu0 0
      %2108 = vmatpush1.bf16.msra.mxu0 0
      %2109 = vmatprep.subr.bf16.mxu0 0
      %2110 = vmatpush1.bf16.msra.mxu0 0
      %2111 = vmatprep.subr.bf16.mxu0 0
      %2112 = vmatpush1.bf16.msra.mxu0 0
      %2113 = vmatprep.subr.bf16.mxu0 0
      %2114 = vmatpush1.bf16.msra.mxu0 0
      %2115 = vmatprep.subr.bf16.mxu0 0
      %2116 = vmatpush1.bf16.msra.mxu0 0
      %2117 = vmatprep.subr.bf16.mxu0 0
      %2118 = vmatpush1.bf16.msra.mxu0 0
      %2119 = vmatprep.mubr.bf16.mxu0 0
      %2120 = vmatmul.mubr.bf16.gmra.mrb[0].mxu0 %v2085
      %v2121 = vpop.f32.mrb[0].mxu0
      %v2122 = vadd.f32 %v2057, %v2121
      %v2123 = vpop.f32.mrb[0].mxu0
      %v2124 = vpop.f32.mrb[0].mxu0
      %v2125 = vpop.f32.mrb[0].mxu0
      %2126 = vdwg.mxu0
      %v2127 = vadd.f32 %v2122, %v1974
      %v2128 = vld [vmem:[%s18] sm:$0x1]
      %v2129 = vld [vmem:[%s19] sm:$0x1]
      %v2130 = vsel %vm702, %v2127, 0.0
      %2131 = vadd.xlane.f32.xlu0 %v2130
      %v2132 = vpop.xlane.xlu0 %2131
      %v2133 = vmul.f32 %v2132, %v1281
      %v2134 = vsub.f32 %v2127, %v2133
      %v2135 = vmul.f32 %v2134, %v2134
      %v2136 = vsel %vm702, %v2135, 0.0
      %2137 = vadd.xlane.f32.xlu0 %v2136
      %v2138 = vpop.xlane.xlu0 %2137
      %v2139 = vmul.f32 %v2138, %v1281
      %v2140 = vadd.f32 %v2139, 1e-05
      %v2141 = vrsqrt.pop %v2140
      %v2142 = vmul.f32 %v2134, %v2141
      %v2144 = vlaneseq
      %v2145 = vshrl.u32 %v2144, 7
      %v2146 = vsub.s32 0, %v2145
      %v2147 = vrot.slane %v2128, %v2146
      %v2149 = vmul.f32 %v2142, %v2147
      %v2151 = vlaneseq
      %v2152 = vshrl.u32 %v2151, 7
      %v2153 = vsub.s32 0, %v2152
      %v2154 = vrot.slane %v2129, %v2153
      %v2156 = vadd.f32 %v2149, %v2154
      %2157 = vst.msk [vmem:[%s675] sm:$0xff] %vm702, %v2156
      %p2158 = scmp.lt.s32.totalorder %s31, 1
      %s2159 = scalar_select %p2158, %s31, 1
      %s2160 = smul.addr %s2159, 8
      %s2161 = scalar_lea.vmem %s20, %s2160
      // Predicated region
      $region101: #{transformer_fwd.7} parent=99 // pred_check
        %p2162 = pneg %p489
      $region102: #{transformer_fwd.7} parent=99 // pred_check_branch
        %2164 = sbr.rel (%p2162) target = $region104
      $region103: #{transformer_fwd.7} parent=99 // pred_region
        _
      $region104: #{transformer_fwd.7} parent=99 // pred_fallthru
        _
    $region100: #{transformer_fwd.7} parent=5 // pred_fallthru
      _
    %p2165 = scmp.le.s32.totalorder 2, %s26
    // Predicated region
    $region105: #{transformer_fwd.7} parent=5 // pred_check
      %p2166 = pneg %p2165
    $region106: #{transformer_fwd.7} parent=5 // pred_check_branch
      %2168 = sbr.rel (%p2166) target = $region108
    $region107: #{transformer_fwd.7} parent=5 // pred_region
      %s2169 = ssub.s32 %s26, 2
      // Predicated region
      $region109: #{transformer_fwd.7} parent=107 // pred_check
        %p2170 = pneg %p495
      $region110: #{transformer_fwd.7} parent=107 // pred_check_branch
        %2172 = sbr.rel (%p2170) target = $region112
      $region111: #{transformer_fwd.7} parent=107 // pred_region
        %p2173 = scmp.lt.s32.totalorder %s32, 1
        %s2174 = scalar_select %p2173, %s32, 1
        %s2175 = smul.addr %s2174, 8
        %s2176 = scalar_lea.vmem %s20, %s2175
      $region112: #{transformer_fwd.7} parent=107 // pred_fallthru
        _
    $region108: #{transformer_fwd.7} parent=5 // pred_fallthru
      _
  $region6: #{transformer_fwd.7} parent=0 // loop_footer
    %s30 = sadd.s32 1, %s26
  $region7: #{transformer_fwd.7} parent=0 // loop_footer_branch
    %25 = sbr.rel target = $region3
  $region8: #{transformer_fwd.7} parent=0 // loop_exit
    _

</llo_original>
